<compile_context>
chip_gen: v6e
topology: v6e:2x2x1
jax: 0.10.0
libtpu: 0.0.40
codegen_flags: <defaults>
</compile_context>

<pallas_src>
import jax
import jax.numpy as jnp
from jax.experimental import pallas as pl
from jax.experimental.pallas import tpu as pltpu

EPS = 1e-5


def resblock_kernel(x_ref, w1_ref, w2_ref, g1_ref, b1_ref, g2_ref, b2_ref,
                    out_ref, pad_ref, slab_ref):
    N, H, W, C = x_ref.shape
    Hp, Wp = H + 2, W + 2
    M = N * H * W
    inv_m = 1.0 / M

    # ---- stage padded bf16 activation: single cast, halo zeroed once ----
    pad_ref[:, 1:1 + H, 1:1 + W, :] = x_ref[...].astype(jnp.bfloat16)
    zrow = jnp.zeros((N, 1, Wp, C), jnp.bfloat16)
    zcol = jnp.zeros((N, Hp, 1, C), jnp.bfloat16)
    pad_ref[:, 0:1, :, :] = zrow
    pad_ref[:, H + 1:H + 2, :, :] = zrow
    pad_ref[:, :, 0:1, :] = zcol
    pad_ref[:, :, W + 1:W + 2, :] = zcol

    def conv3x3(w_ref):
        """3x3 conv of whatever activation is currently staged in pad_ref.

        Builds a kx-axis im2col slab (K = 3C) once, then accumulates over ky
        with three bf16 MXU matmuls per image whose lhs are H-shifted slices
        of the slab (W == 8 sublanes => tile-aligned, view-only).
        Returns f32 (M, C) with rows ordered (n, y, x).
        """
        # TODO(synk): the kx in {1,2} source slices are sublane-offset reads;
        # they could be routed through pltpu.roll (XLU slot) instead.
        for kx in range(3):
            slab_ref[:, :, :, kx * C:(kx + 1) * C] = (
                pad_ref[:, :, kx:kx + W, :])
        accs = []
        for n in range(N):
            a = jnp.dot(slab_ref[n, 0:H, :, :].reshape(H * W, 3 * C),
                        w_ref[0], preferred_element_type=jnp.float32)
            for ky in (1, 2):
                a = a + jnp.dot(
                    slab_ref[n, ky:ky + H, :, :].reshape(H * W, 3 * C),
                    w_ref[ky], preferred_element_type=jnp.float32)
            accs.append(a)
        return jnp.concatenate(accs, axis=0) if N > 1 else accs[0]

    def batchnorm(acc, g_ref, b_ref):
        """Training-mode BN (biased batch variance), centered for stability."""
        mu = jnp.sum(acc, axis=0, keepdims=True) * inv_m
        d = acc - mu
        var = jnp.sum(d * d, axis=0, keepdims=True) * inv_m
        return d * (g_ref[...] * jax.lax.rsqrt(var + EPS)) + b_ref[...]

    # ---- conv1 -> bn1 -> relu ----
    h1 = jnp.maximum(batchnorm(conv3x3(w1_ref), g1_ref, b1_ref), 0.0)

    # ---- restage h1 into the same padded buffer (halo is already zero) ----
    pad_ref[:, 1:1 + H, 1:1 + W, :] = (
        h1.reshape(N, H, W, C).astype(jnp.bfloat16))

    # ---- conv2 -> bn2 -> +residual -> relu (lane-dense C=128 store) ----
    h2 = batchnorm(conv3x3(w2_ref), g2_ref, b2_ref)
    residual = x_ref[...].reshape(M, C)            # aligned f32 read
    out = jnp.maximum(h2 + residual, 0.0)
    out_ref[...] = out.reshape(N, H, W, C).astype(out_ref.dtype)


def resblock_pallas(x_nhwc, w1_oihw, w2_oihw, g1, b1, g2, b2):
    """x_nhwc: (N, H, W, C) f32;  w*_oihw: (Cout, Cin, 3, 3) f32 (PyTorch)."""
    N, H, W, C = x_nhwc.shape
    # (Cout, Cin, kH, kW) -> (kH, kW, Cin, Cout) -> (3, 3*Cin, Cout) bf16,
    # K axis ordered kx-major / cin-minor to match the kx slab layout.
    w1 = jnp.transpose(w1_oihw, (2, 3, 1, 0)).reshape(3, 3 * C, C).astype(jnp.bfloat16)
    w2 = jnp.transpose(w2_oihw, (2, 3, 1, 0)).reshape(3, 3 * C, C).astype(jnp.bfloat16)

    vspec = pl.BlockSpec(memory_space=pltpu.MemorySpace.VMEM)
    return pl.pallas_call(
        resblock_kernel,
        out_shape=jax.ShapeDtypeStruct((N, H, W, C), x_nhwc.dtype),
        in_specs=[vspec] * 7,
        out_specs=vspec,
        scratch_shapes=[
            pltpu.VMEM((N, H + 2, W + 2, C), jnp.bfloat16),   # padded x / h1
            pltpu.VMEM((N, H + 2, W, 3 * C), jnp.bfloat16),   # kx im2col slab
        ],
        compiler_params=pltpu.CompilerParams(
            # Small resident footprint (<1 MiB scratch + I/O); generous cap
            # that fits every generation's scoped-VMEM budget.
            vmem_limit_bytes=32 * 1024 * 1024),
    )(x_nhwc, w1, w2,
      g1.reshape(1, C), b1.reshape(1, C),
      g2.reshape(1, C), b2.reshape(1, C))


# ---- pure-JAX f32 reference (same semantics) for a sanity check ----
def resblock_ref(x_nhwc, w1_oihw, w2_oihw, g1, b1, g2, b2):
    def conv(x, w):
        return jax.lax.conv_general_dilated(
            x, w, window_strides=(1, 1), padding=((1, 1), (1, 1)),
            dimension_numbers=('NHWC', 'OIHW', 'NHWC'))

    def bn(x, g, b):
        mu = jnp.mean(x, axis=(0, 1, 2), keepdims=True)
        var = jnp.mean((x - mu) ** 2, axis=(0, 1, 2), keepdims=True)
        return (x - mu) * jax.lax.rsqrt(var + EPS) * g + b

    h = jax.nn.relu(bn(conv(x_nhwc, w1_oihw), g1, b1))
    h = bn(conv(h, w2_oihw), g2, b2)
    return jax.nn.relu(h + x_nhwc)


if __name__ == "__main__":
    # ResBlock default is inplanes = planes = 128 -> lane-dense C = 128.
    N, C, H, W = 2, 128, 8, 8
    key = jax.random.PRNGKey(0)
    k1, k2, kx = jax.random.split(key, 3)

    fan_in = C * 3 * 3
    w1 = jax.random.normal(k1, (C, C, 3, 3), jnp.float32) / jnp.sqrt(fan_in)
    w2 = jax.random.normal(k2, (C, C, 3, 3), jnp.float32) / jnp.sqrt(fan_in)
    # BatchNorm2d default init: gamma=1, beta=0
    g1 = jnp.ones((C,), jnp.float32)
    b1 = jnp.zeros((C,), jnp.float32)
    g2 = jnp.ones((C,), jnp.float32)
    b2 = jnp.zeros((C,), jnp.float32)

    x_nchw = jax.random.normal(kx, (N, C, H, W), jnp.float32)  # PyTorch NCHW
    x_nhwc = jnp.transpose(x_nchw, (0, 2, 3, 1))               # kernel layout

    out = resblock_pallas(x_nhwc, w1, w2, g1, b1, g2, b2)
    out = jax.block_until_ready(out)

    ref = resblock_ref(x_nhwc, w1, w2, g1, b1, g2, b2)
    # bf16 MXU operands -> slightly looser tolerance than a pure-f32 pipeline.
    if not jnp.allclose(out, ref, atol=3e-2, rtol=3e-2):
        raise AssertionError("Pallas ResBlock does not match reference")

    print("KERNEL_OK")
</pallas_src>

<mosaic_0001>
module attributes {stable_mosaic.version = 11 : i64} {
  func.func @resblock_kernel(%arg0: memref<2x8x8x128xf32, #tpu.memory_space<vmem>>, %arg1: memref<3x384x128xbf16, #tpu.memory_space<vmem>>, %arg2: memref<3x384x128xbf16, #tpu.memory_space<vmem>>, %arg3: memref<1x128xf32, #tpu.memory_space<vmem>>, %arg4: memref<1x128xf32, #tpu.memory_space<vmem>>, %arg5: memref<1x128xf32, #tpu.memory_space<vmem>>, %arg6: memref<1x128xf32, #tpu.memory_space<vmem>>, %arg7: memref<2x8x8x128xf32, #tpu.memory_space<vmem>>, %arg8: memref<2x10x10x128xbf16, #tpu.memory_space<vmem>>, %arg9: memref<2x10x8x384xbf16, #tpu.memory_space<vmem>>) attributes {dimension_semantics = [], scalar_prefetch = 0 : i64, scratch_operands = 2 : i64, tpu.core_type = #tpu.core_type<tc>} {
    %c0 = arith.constant 0 : index
    %c0_0 = arith.constant 0 : index
    %c0_1 = arith.constant 0 : index
    %c0_2 = arith.constant 0 : index
    %0 = vector.load %arg0[%c0, %c0_0, %c0_1, %c0_2] : memref<2x8x8x128xf32, #tpu.memory_space<vmem>>, vector<2x8x8x128xf32>
    %1 = arith.truncf %0 : vector<2x8x8x128xf32> to vector<2x8x8x128xbf16>
    %c0_3 = arith.constant 0 : index
    %c1 = arith.constant 1 : index
    %c1_4 = arith.constant 1 : index
    %c0_5 = arith.constant 0 : index
    %2 = vector.load %arg8[%c0_3, %c1, %c1_4, %c0_5] : memref<2x10x10x128xbf16, #tpu.memory_space<vmem>>, vector<2x8x8x128xbf16>
    tpu.vector_store %arg8[%c0_3, %c1, %c1_4, %c0_5], %1 {strides = array<i32>} : memref<2x10x10x128xbf16, #tpu.memory_space<vmem>>, vector<2x8x8x128xbf16>,
    %cst = arith.constant 0.000000e+00 : bf16
    %3 = vector.broadcast %cst : bf16 to vector<2x1x10x128xbf16>
    %cst_6 = arith.constant 0.000000e+00 : bf16
    %4 = vector.broadcast %cst_6 : bf16 to vector<2x10x1x128xbf16>
    %c0_7 = arith.constant 0 : index
    %c0_8 = arith.constant 0 : index
    %c0_9 = arith.constant 0 : index
    %c0_10 = arith.constant 0 : index
    %5 = vector.load %arg8[%c0_7, %c0_8, %c0_9, %c0_10] : memref<2x10x10x128xbf16, #tpu.memory_space<vmem>>, vector<2x1x10x128xbf16>
    tpu.vector_store %arg8[%c0_7, %c0_8, %c0_9, %c0_10], %3 {strides = array<i32>} : memref<2x10x10x128xbf16, #tpu.memory_space<vmem>>, vector<2x1x10x128xbf16>,
    %c0_11 = arith.constant 0 : index
    %c9 = arith.constant 9 : index
    %c0_12 = arith.constant 0 : index
    %c0_13 = arith.constant 0 : index
    %6 = vector.load %arg8[%c0_11, %c9, %c0_12, %c0_13] : memref<2x10x10x128xbf16, #tpu.memory_space<vmem>>, vector<2x1x10x128xbf16>
    tpu.vector_store %arg8[%c0_11, %c9, %c0_12, %c0_13], %3 {strides = array<i32>} : memref<2x10x10x128xbf16, #tpu.memory_space<vmem>>, vector<2x1x10x128xbf16>,
    %c0_14 = arith.constant 0 : index
    %c0_15 = arith.constant 0 : index
    %c0_16 = arith.constant 0 : index
    %c0_17 = arith.constant 0 : index
    %7 = vector.load %arg8[%c0_14, %c0_15, %c0_16, %c0_17] : memref<2x10x10x128xbf16, #tpu.memory_space<vmem>>, vector<2x10x1x128xbf16>
    tpu.vector_store %arg8[%c0_14, %c0_15, %c0_16, %c0_17], %4 {strides = array<i32>} : memref<2x10x10x128xbf16, #tpu.memory_space<vmem>>, vector<2x10x1x128xbf16>,
    %c0_18 = arith.constant 0 : index
    %c0_19 = arith.constant 0 : index
    %c9_20 = arith.constant 9 : index
    %c0_21 = arith.constant 0 : index
    %8 = vector.load %arg8[%c0_18, %c0_19, %c9_20, %c0_21] : memref<2x10x10x128xbf16, #tpu.memory_space<vmem>>, vector<2x10x1x128xbf16>
    tpu.vector_store %arg8[%c0_18, %c0_19, %c9_20, %c0_21], %4 {strides = array<i32>} : memref<2x10x10x128xbf16, #tpu.memory_space<vmem>>, vector<2x10x1x128xbf16>,
    %c0_22 = arith.constant 0 : index
    %c0_23 = arith.constant 0 : index
    %c0_24 = arith.constant 0 : index
    %c0_25 = arith.constant 0 : index
    %9 = vector.load %arg8[%c0_22, %c0_23, %c0_24, %c0_25] : memref<2x10x10x128xbf16, #tpu.memory_space<vmem>>, vector<2x10x8x128xbf16>
    %c0_26 = arith.constant 0 : index
    %c0_27 = arith.constant 0 : index
    %c0_28 = arith.constant 0 : index
    %c0_29 = arith.constant 0 : index
    %10 = vector.load %arg9[%c0_26, %c0_27, %c0_28, %c0_29] : memref<2x10x8x384xbf16, #tpu.memory_space<vmem>>, vector<2x10x8x128xbf16>
    tpu.vector_store %arg9[%c0_26, %c0_27, %c0_28, %c0_29], %9 {strides = array<i32>} : memref<2x10x8x384xbf16, #tpu.memory_space<vmem>>, vector<2x10x8x128xbf16>,
    %c0_30 = arith.constant 0 : index
    %c0_31 = arith.constant 0 : index
    %c1_32 = arith.constant 1 : index
    %c0_33 = arith.constant 0 : index
    %11 = vector.load %arg8[%c0_30, %c0_31, %c1_32, %c0_33] : memref<2x10x10x128xbf16, #tpu.memory_space<vmem>>, vector<2x10x8x128xbf16>
    %c0_34 = arith.constant 0 : index
    %c0_35 = arith.constant 0 : index
    %c0_36 = arith.constant 0 : index
    %c128 = arith.constant 128 : index
    %12 = vector.load %arg9[%c0_34, %c0_35, %c0_36, %c128] : memref<2x10x8x384xbf16, #tpu.memory_space<vmem>>, vector<2x10x8x128xbf16>
    tpu.vector_store %arg9[%c0_34, %c0_35, %c0_36, %c128], %11 {strides = array<i32>} : memref<2x10x8x384xbf16, #tpu.memory_space<vmem>>, vector<2x10x8x128xbf16>,
    %c0_37 = arith.constant 0 : index
    %c0_38 = arith.constant 0 : index
    %c2 = arith.constant 2 : index
    %c0_39 = arith.constant 0 : index
    %13 = vector.load %arg8[%c0_37, %c0_38, %c2, %c0_39] : memref<2x10x10x128xbf16, #tpu.memory_space<vmem>>, vector<2x10x8x128xbf16>
    %c0_40 = arith.constant 0 : index
    %c0_41 = arith.constant 0 : index
    %c0_42 = arith.constant 0 : index
    %c256 = arith.constant 256 : index
    %14 = vector.load %arg9[%c0_40, %c0_41, %c0_42, %c256] : memref<2x10x8x384xbf16, #tpu.memory_space<vmem>>, vector<2x10x8x128xbf16>
    tpu.vector_store %arg9[%c0_40, %c0_41, %c0_42, %c256], %13 {strides = array<i32>} : memref<2x10x8x384xbf16, #tpu.memory_space<vmem>>, vector<2x10x8x128xbf16>,
    %c0_43 = arith.constant 0 : index
    %c0_44 = arith.constant 0 : index
    %c0_45 = arith.constant 0 : index
    %c0_46 = arith.constant 0 : index
    %15 = vector.load %arg9[%c0_43, %c0_44, %c0_45, %c0_46] : memref<2x10x8x384xbf16, #tpu.memory_space<vmem>>, vector<1x8x8x384xbf16>
    %16 = vector.shape_cast %15 : vector<1x8x8x384xbf16> to vector<8x8x384xbf16>
    %17 = vector.shape_cast %16 : vector<8x8x384xbf16> to vector<64x384xbf16>
    %c0_47 = arith.constant 0 : index
    %c0_48 = arith.constant 0 : index
    %c0_49 = arith.constant 0 : index
    %18 = vector.load %arg1[%c0_47, %c0_48, %c0_49] : memref<3x384x128xbf16, #tpu.memory_space<vmem>>, vector<1x384x128xbf16>
    %19 = vector.shape_cast %18 : vector<1x384x128xbf16> to vector<384x128xbf16>
    %cst_50 = arith.constant dense<0.000000e+00> : vector<64x128xf32>
    %20 = tpu.matmul %17, %19, %cst_50 {dimension_numbers = #tpu.dot_dimension_numbers<[1], [0], [0], [1], [0, 0, 1, 1], [], []>} : vector<64x384xbf16>, vector<384x128xbf16>, vector<64x128xf32> -> vector<64x128xf32>
    %c0_51 = arith.constant 0 : index
    %c1_52 = arith.constant 1 : index
    %c0_53 = arith.constant 0 : index
    %c0_54 = arith.constant 0 : index
    %21 = vector.load %arg9[%c0_51, %c1_52, %c0_53, %c0_54] : memref<2x10x8x384xbf16, #tpu.memory_space<vmem>>, vector<1x8x8x384xbf16>
    %22 = vector.shape_cast %21 : vector<1x8x8x384xbf16> to vector<8x8x384xbf16>
    %23 = vector.shape_cast %22 : vector<8x8x384xbf16> to vector<64x384xbf16>
    %c1_55 = arith.constant 1 : index
    %c0_56 = arith.constant 0 : index
    %c0_57 = arith.constant 0 : index
    %24 = vector.load %arg1[%c1_55, %c0_56, %c0_57] : memref<3x384x128xbf16, #tpu.memory_space<vmem>>, vector<1x384x128xbf16>
    %25 = vector.shape_cast %24 : vector<1x384x128xbf16> to vector<384x128xbf16>
    %cst_58 = arith.constant dense<0.000000e+00> : vector<64x128xf32>
    %26 = tpu.matmul %23, %25, %cst_58 {dimension_numbers = #tpu.dot_dimension_numbers<[1], [0], [0], [1], [0, 0, 1, 1], [], []>} : vector<64x384xbf16>, vector<384x128xbf16>, vector<64x128xf32> -> vector<64x128xf32>
    %27 = arith.addf %20, %26 : vector<64x128xf32>
    %c0_59 = arith.constant 0 : index
    %c2_60 = arith.constant 2 : index
    %c0_61 = arith.constant 0 : index
    %c0_62 = arith.constant 0 : index
    %28 = vector.load %arg9[%c0_59, %c2_60, %c0_61, %c0_62] : memref<2x10x8x384xbf16, #tpu.memory_space<vmem>>, vector<1x8x8x384xbf16>
    %29 = vector.shape_cast %28 : vector<1x8x8x384xbf16> to vector<8x8x384xbf16>
    %30 = vector.shape_cast %29 : vector<8x8x384xbf16> to vector<64x384xbf16>
    %c2_63 = arith.constant 2 : index
    %c0_64 = arith.constant 0 : index
    %c0_65 = arith.constant 0 : index
    %31 = vector.load %arg1[%c2_63, %c0_64, %c0_65] : memref<3x384x128xbf16, #tpu.memory_space<vmem>>, vector<1x384x128xbf16>
    %32 = vector.shape_cast %31 : vector<1x384x128xbf16> to vector<384x128xbf16>
    %cst_66 = arith.constant dense<0.000000e+00> : vector<64x128xf32>
    %33 = tpu.matmul %30, %32, %cst_66 {dimension_numbers = #tpu.dot_dimension_numbers<[1], [0], [0], [1], [0, 0, 1, 1], [], []>} : vector<64x384xbf16>, vector<384x128xbf16>, vector<64x128xf32> -> vector<64x128xf32>
    %34 = arith.addf %27, %33 : vector<64x128xf32>
    %c1_67 = arith.constant 1 : index
    %c0_68 = arith.constant 0 : index
    %c0_69 = arith.constant 0 : index
    %c0_70 = arith.constant 0 : index
    %35 = vector.load %arg9[%c1_67, %c0_68, %c0_69, %c0_70] : memref<2x10x8x384xbf16, #tpu.memory_space<vmem>>, vector<1x8x8x384xbf16>
    %36 = vector.shape_cast %35 : vector<1x8x8x384xbf16> to vector<8x8x384xbf16>
    %37 = vector.shape_cast %36 : vector<8x8x384xbf16> to vector<64x384xbf16>
    %c0_71 = arith.constant 0 : index
    %c0_72 = arith.constant 0 : index
    %c0_73 = arith.constant 0 : index
    %38 = vector.load %arg1[%c0_71, %c0_72, %c0_73] : memref<3x384x128xbf16, #tpu.memory_space<vmem>>, vector<1x384x128xbf16>
    %39 = vector.shape_cast %38 : vector<1x384x128xbf16> to vector<384x128xbf16>
    %cst_74 = arith.constant dense<0.000000e+00> : vector<64x128xf32>
    %40 = tpu.matmul %37, %39, %cst_74 {dimension_numbers = #tpu.dot_dimension_numbers<[1], [0], [0], [1], [0, 0, 1, 1], [], []>} : vector<64x384xbf16>, vector<384x128xbf16>, vector<64x128xf32> -> vector<64x128xf32>
    %c1_75 = arith.constant 1 : index
    %c1_76 = arith.constant 1 : index
    %c0_77 = arith.constant 0 : index
    %c0_78 = arith.constant 0 : index
    %41 = vector.load %arg9[%c1_75, %c1_76, %c0_77, %c0_78] : memref<2x10x8x384xbf16, #tpu.memory_space<vmem>>, vector<1x8x8x384xbf16>
    %42 = vector.shape_cast %41 : vector<1x8x8x384xbf16> to vector<8x8x384xbf16>
    %43 = vector.shape_cast %42 : vector<8x8x384xbf16> to vector<64x384xbf16>
    %c1_79 = arith.constant 1 : index
    %c0_80 = arith.constant 0 : index
    %c0_81 = arith.constant 0 : index
    %44 = vector.load %arg1[%c1_79, %c0_80, %c0_81] : memref<3x384x128xbf16, #tpu.memory_space<vmem>>, vector<1x384x128xbf16>
    %45 = vector.shape_cast %44 : vector<1x384x128xbf16> to vector<384x128xbf16>
    %cst_82 = arith.constant dense<0.000000e+00> : vector<64x128xf32>
    %46 = tpu.matmul %43, %45, %cst_82 {dimension_numbers = #tpu.dot_dimension_numbers<[1], [0], [0], [1], [0, 0, 1, 1], [], []>} : vector<64x384xbf16>, vector<384x128xbf16>, vector<64x128xf32> -> vector<64x128xf32>
    %47 = arith.addf %40, %46 : vector<64x128xf32>
    %c1_83 = arith.constant 1 : index
    %c2_84 = arith.constant 2 : index
    %c0_85 = arith.constant 0 : index
    %c0_86 = arith.constant 0 : index
    %48 = vector.load %arg9[%c1_83, %c2_84, %c0_85, %c0_86] : memref<2x10x8x384xbf16, #tpu.memory_space<vmem>>, vector<1x8x8x384xbf16>
    %49 = vector.shape_cast %48 : vector<1x8x8x384xbf16> to vector<8x8x384xbf16>
    %50 = vector.shape_cast %49 : vector<8x8x384xbf16> to vector<64x384xbf16>
    %c2_87 = arith.constant 2 : index
    %c0_88 = arith.constant 0 : index
    %c0_89 = arith.constant 0 : index
    %51 = vector.load %arg1[%c2_87, %c0_88, %c0_89] : memref<3x384x128xbf16, #tpu.memory_space<vmem>>, vector<1x384x128xbf16>
    %52 = vector.shape_cast %51 : vector<1x384x128xbf16> to vector<384x128xbf16>
    %cst_90 = arith.constant dense<0.000000e+00> : vector<64x128xf32>
    %53 = tpu.matmul %50, %52, %cst_90 {dimension_numbers = #tpu.dot_dimension_numbers<[1], [0], [0], [1], [0, 0, 1, 1], [], []>} : vector<64x384xbf16>, vector<384x128xbf16>, vector<64x128xf32> -> vector<64x128xf32>
    %54 = arith.addf %47, %53 : vector<64x128xf32>
    %55 = tpu.concatenate %34, %54 in 0 : vector<64x128xf32>, vector<64x128xf32> -> vector<128x128xf32>
    %cst_91 = arith.constant dense<0.000000e+00> : vector<128xf32>
    %56 = vector.multi_reduction <add>, %55, %cst_91 [0] : vector<128x128xf32> to vector<128xf32>
    %57 = vector.shape_cast %56 : vector<128xf32> to vector<1x128xf32>
    %cst_92 = arith.constant 7.812500e-03 : f32
    %58 = vector.broadcast %cst_92 : f32 to vector<1x128xf32>
    %59 = arith.mulf %57, %58 : vector<1x128xf32>
    %60 = vector.broadcast %59 : vector<1x128xf32> to vector<128x128xf32>
    %61 = arith.subf %55, %60 : vector<128x128xf32>
    %62 = arith.mulf %61, %61 : vector<128x128xf32>
    %cst_93 = arith.constant dense<0.000000e+00> : vector<128xf32>
    %63 = vector.multi_reduction <add>, %62, %cst_93 [0] : vector<128x128xf32> to vector<128xf32>
    %64 = vector.shape_cast %63 : vector<128xf32> to vector<1x128xf32>
    %cst_94 = arith.constant 7.812500e-03 : f32
    %65 = vector.broadcast %cst_94 : f32 to vector<1x128xf32>
    %66 = arith.mulf %64, %65 : vector<1x128xf32>
    %c0_95 = arith.constant 0 : index
    %c0_96 = arith.constant 0 : index
    %67 = vector.load %arg3[%c0_95, %c0_96] : memref<1x128xf32, #tpu.memory_space<vmem>>, vector<1x128xf32>
    %cst_97 = arith.constant 9.99999974E-6 : f32
    %68 = vector.broadcast %cst_97 : f32 to vector<1x128xf32>
    %69 = arith.addf %66, %68 : vector<1x128xf32>
    %70 = math.rsqrt %69 : vector<1x128xf32>
    %71 = arith.mulf %67, %70 : vector<1x128xf32>
    %72 = vector.broadcast %71 : vector<1x128xf32> to vector<128x128xf32>
    %73 = arith.mulf %61, %72 : vector<128x128xf32>
    %c0_98 = arith.constant 0 : index
    %c0_99 = arith.constant 0 : index
    %74 = vector.load %arg4[%c0_98, %c0_99] : memref<1x128xf32, #tpu.memory_space<vmem>>, vector<1x128xf32>
    %75 = vector.broadcast %74 : vector<1x128xf32> to vector<128x128xf32>
    %76 = arith.addf %73, %75 : vector<128x128xf32>
    %cst_100 = arith.constant 0.000000e+00 : f32
    %77 = vector.broadcast %cst_100 : f32 to vector<128x128xf32>
    %78 = arith.maximumf %76, %77 : vector<128x128xf32>
    %79 = vector.shape_cast %78 : vector<128x128xf32> to vector<2x8x8x128xf32>
    %80 = arith.truncf %79 : vector<2x8x8x128xf32> to vector<2x8x8x128xbf16>
    %c0_101 = arith.constant 0 : index
    %c1_102 = arith.constant 1 : index
    %c1_103 = arith.constant 1 : index
    %c0_104 = arith.constant 0 : index
    %81 = vector.load %arg8[%c0_101, %c1_102, %c1_103, %c0_104] : memref<2x10x10x128xbf16, #tpu.memory_space<vmem>>, vector<2x8x8x128xbf16>
    tpu.vector_store %arg8[%c0_101, %c1_102, %c1_103, %c0_104], %80 {strides = array<i32>} : memref<2x10x10x128xbf16, #tpu.memory_space<vmem>>, vector<2x8x8x128xbf16>,
    %c0_105 = arith.constant 0 : index
    %c0_106 = arith.constant 0 : index
    %c0_107 = arith.constant 0 : index
    %c0_108 = arith.constant 0 : index
    %82 = vector.load %arg8[%c0_105, %c0_106, %c0_107, %c0_108] : memref<2x10x10x128xbf16, #tpu.memory_space<vmem>>, vector<2x10x8x128xbf16>
    %c0_109 = arith.constant 0 : index
    %c0_110 = arith.constant 0 : index
    %c0_111 = arith.constant 0 : index
    %c0_112 = arith.constant 0 : index
    %83 = vector.load %arg9[%c0_109, %c0_110, %c0_111, %c0_112] : memref<2x10x8x384xbf16, #tpu.memory_space<vmem>>, vector<2x10x8x128xbf16>
    tpu.vector_store %arg9[%c0_109, %c0_110, %c0_111, %c0_112], %82 {strides = array<i32>} : memref<2x10x8x384xbf16, #tpu.memory_space<vmem>>, vector<2x10x8x128xbf16>,
    %c0_113 = arith.constant 0 : index
    %c0_114 = arith.constant 0 : index
    %c1_115 = arith.constant 1 : index
    %c0_116 = arith.constant 0 : index
    %84 = vector.load %arg8[%c0_113, %c0_114, %c1_115, %c0_116] : memref<2x10x10x128xbf16, #tpu.memory_space<vmem>>, vector<2x10x8x128xbf16>
    %c0_117 = arith.constant 0 : index
    %c0_118 = arith.constant 0 : index
    %c0_119 = arith.constant 0 : index
    %c128_120 = arith.constant 128 : index
    %85 = vector.load %arg9[%c0_117, %c0_118, %c0_119, %c128_120] : memref<2x10x8x384xbf16, #tpu.memory_space<vmem>>, vector<2x10x8x128xbf16>
    tpu.vector_store %arg9[%c0_117, %c0_118, %c0_119, %c128_120], %84 {strides = array<i32>} : memref<2x10x8x384xbf16, #tpu.memory_space<vmem>>, vector<2x10x8x128xbf16>,
    %c0_121 = arith.constant 0 : index
    %c0_122 = arith.constant 0 : index
    %c2_123 = arith.constant 2 : index
    %c0_124 = arith.constant 0 : index
    %86 = vector.load %arg8[%c0_121, %c0_122, %c2_123, %c0_124] : memref<2x10x10x128xbf16, #tpu.memory_space<vmem>>, vector<2x10x8x128xbf16>
    %c0_125 = arith.constant 0 : index
    %c0_126 = arith.constant 0 : index
    %c0_127 = arith.constant 0 : index
    %c256_128 = arith.constant 256 : index
    %87 = vector.load %arg9[%c0_125, %c0_126, %c0_127, %c256_128] : memref<2x10x8x384xbf16, #tpu.memory_space<vmem>>, vector<2x10x8x128xbf16>
    tpu.vector_store %arg9[%c0_125, %c0_126, %c0_127, %c256_128], %86 {strides = array<i32>} : memref<2x10x8x384xbf16, #tpu.memory_space<vmem>>, vector<2x10x8x128xbf16>,
    %c0_129 = arith.constant 0 : index
    %c0_130 = arith.constant 0 : index
    %c0_131 = arith.constant 0 : index
    %c0_132 = arith.constant 0 : index
    %88 = vector.load %arg9[%c0_129, %c0_130, %c0_131, %c0_132] : memref<2x10x8x384xbf16, #tpu.memory_space<vmem>>, vector<1x8x8x384xbf16>
    %89 = vector.shape_cast %88 : vector<1x8x8x384xbf16> to vector<8x8x384xbf16>
    %90 = vector.shape_cast %89 : vector<8x8x384xbf16> to vector<64x384xbf16>
    %c0_133 = arith.constant 0 : index
    %c0_134 = arith.constant 0 : index
    %c0_135 = arith.constant 0 : index
    %91 = vector.load %arg2[%c0_133, %c0_134, %c0_135] : memref<3x384x128xbf16, #tpu.memory_space<vmem>>, vector<1x384x128xbf16>
    %92 = vector.shape_cast %91 : vector<1x384x128xbf16> to vector<384x128xbf16>
    %cst_136 = arith.constant dense<0.000000e+00> : vector<64x128xf32>
    %93 = tpu.matmul %90, %92, %cst_136 {dimension_numbers = #tpu.dot_dimension_numbers<[1], [0], [0], [1], [0, 0, 1, 1], [], []>} : vector<64x384xbf16>, vector<384x128xbf16>, vector<64x128xf32> -> vector<64x128xf32>
    %c0_137 = arith.constant 0 : index
    %c1_138 = arith.constant 1 : index
    %c0_139 = arith.constant 0 : index
    %c0_140 = arith.constant 0 : index
    %94 = vector.load %arg9[%c0_137, %c1_138, %c0_139, %c0_140] : memref<2x10x8x384xbf16, #tpu.memory_space<vmem>>, vector<1x8x8x384xbf16>
    %95 = vector.shape_cast %94 : vector<1x8x8x384xbf16> to vector<8x8x384xbf16>
    %96 = vector.shape_cast %95 : vector<8x8x384xbf16> to vector<64x384xbf16>
    %c1_141 = arith.constant 1 : index
    %c0_142 = arith.constant 0 : index
    %c0_143 = arith.constant 0 : index
    %97 = vector.load %arg2[%c1_141, %c0_142, %c0_143] : memref<3x384x128xbf16, #tpu.memory_space<vmem>>, vector<1x384x128xbf16>
    %98 = vector.shape_cast %97 : vector<1x384x128xbf16> to vector<384x128xbf16>
    %cst_144 = arith.constant dense<0.000000e+00> : vector<64x128xf32>
    %99 = tpu.matmul %96, %98, %cst_144 {dimension_numbers = #tpu.dot_dimension_numbers<[1], [0], [0], [1], [0, 0, 1, 1], [], []>} : vector<64x384xbf16>, vector<384x128xbf16>, vector<64x128xf32> -> vector<64x128xf32>
    %100 = arith.addf %93, %99 : vector<64x128xf32>
    %c0_145 = arith.constant 0 : index
    %c2_146 = arith.constant 2 : index
    %c0_147 = arith.constant 0 : index
    %c0_148 = arith.constant 0 : index
    %101 = vector.load %arg9[%c0_145, %c2_146, %c0_147, %c0_148] : memref<2x10x8x384xbf16, #tpu.memory_space<vmem>>, vector<1x8x8x384xbf16>
    %102 = vector.shape_cast %101 : vector<1x8x8x384xbf16> to vector<8x8x384xbf16>
    %103 = vector.shape_cast %102 : vector<8x8x384xbf16> to vector<64x384xbf16>
    %c2_149 = arith.constant 2 : index
    %c0_150 = arith.constant 0 : index
    %c0_151 = arith.constant 0 : index
    %104 = vector.load %arg2[%c2_149, %c0_150, %c0_151] : memref<3x384x128xbf16, #tpu.memory_space<vmem>>, vector<1x384x128xbf16>
    %105 = vector.shape_cast %104 : vector<1x384x128xbf16> to vector<384x128xbf16>
    %cst_152 = arith.constant dense<0.000000e+00> : vector<64x128xf32>
    %106 = tpu.matmul %103, %105, %cst_152 {dimension_numbers = #tpu.dot_dimension_numbers<[1], [0], [0], [1], [0, 0, 1, 1], [], []>} : vector<64x384xbf16>, vector<384x128xbf16>, vector<64x128xf32> -> vector<64x128xf32>
    %107 = arith.addf %100, %106 : vector<64x128xf32>
    %c1_153 = arith.constant 1 : index
    %c0_154 = arith.constant 0 : index
    %c0_155 = arith.constant 0 : index
    %c0_156 = arith.constant 0 : index
    %108 = vector.load %arg9[%c1_153, %c0_154, %c0_155, %c0_156] : memref<2x10x8x384xbf16, #tpu.memory_space<vmem>>, vector<1x8x8x384xbf16>
    %109 = vector.shape_cast %108 : vector<1x8x8x384xbf16> to vector<8x8x384xbf16>
    %110 = vector.shape_cast %109 : vector<8x8x384xbf16> to vector<64x384xbf16>
    %c0_157 = arith.constant 0 : index
    %c0_158 = arith.constant 0 : index
    %c0_159 = arith.constant 0 : index
    %111 = vector.load %arg2[%c0_157, %c0_158, %c0_159] : memref<3x384x128xbf16, #tpu.memory_space<vmem>>, vector<1x384x128xbf16>
    %112 = vector.shape_cast %111 : vector<1x384x128xbf16> to vector<384x128xbf16>
    %cst_160 = arith.constant dense<0.000000e+00> : vector<64x128xf32>
    %113 = tpu.matmul %110, %112, %cst_160 {dimension_numbers = #tpu.dot_dimension_numbers<[1], [0], [0], [1], [0, 0, 1, 1], [], []>} : vector<64x384xbf16>, vector<384x128xbf16>, vector<64x128xf32> -> vector<64x128xf32>
    %c1_161 = arith.constant 1 : index
    %c1_162 = arith.constant 1 : index
    %c0_163 = arith.constant 0 : index
    %c0_164 = arith.constant 0 : index
    %114 = vector.load %arg9[%c1_161, %c1_162, %c0_163, %c0_164] : memref<2x10x8x384xbf16, #tpu.memory_space<vmem>>, vector<1x8x8x384xbf16>
    %115 = vector.shape_cast %114 : vector<1x8x8x384xbf16> to vector<8x8x384xbf16>
    %116 = vector.shape_cast %115 : vector<8x8x384xbf16> to vector<64x384xbf16>
    %c1_165 = arith.constant 1 : index
    %c0_166 = arith.constant 0 : index
    %c0_167 = arith.constant 0 : index
    %117 = vector.load %arg2[%c1_165, %c0_166, %c0_167] : memref<3x384x128xbf16, #tpu.memory_space<vmem>>, vector<1x384x128xbf16>
    %118 = vector.shape_cast %117 : vector<1x384x128xbf16> to vector<384x128xbf16>
    %cst_168 = arith.constant dense<0.000000e+00> : vector<64x128xf32>
    %119 = tpu.matmul %116, %118, %cst_168 {dimension_numbers = #tpu.dot_dimension_numbers<[1], [0], [0], [1], [0, 0, 1, 1], [], []>} : vector<64x384xbf16>, vector<384x128xbf16>, vector<64x128xf32> -> vector<64x128xf32>
    %120 = arith.addf %113, %119 : vector<64x128xf32>
    %c1_169 = arith.constant 1 : index
    %c2_170 = arith.constant 2 : index
    %c0_171 = arith.constant 0 : index
    %c0_172 = arith.constant 0 : index
    %121 = vector.load %arg9[%c1_169, %c2_170, %c0_171, %c0_172] : memref<2x10x8x384xbf16, #tpu.memory_space<vmem>>, vector<1x8x8x384xbf16>
    %122 = vector.shape_cast %121 : vector<1x8x8x384xbf16> to vector<8x8x384xbf16>
    %123 = vector.shape_cast %122 : vector<8x8x384xbf16> to vector<64x384xbf16>
    %c2_173 = arith.constant 2 : index
    %c0_174 = arith.constant 0 : index
    %c0_175 = arith.constant 0 : index
    %124 = vector.load %arg2[%c2_173, %c0_174, %c0_175] : memref<3x384x128xbf16, #tpu.memory_space<vmem>>, vector<1x384x128xbf16>
    %125 = vector.shape_cast %124 : vector<1x384x128xbf16> to vector<384x128xbf16>
    %cst_176 = arith.constant dense<0.000000e+00> : vector<64x128xf32>
    %126 = tpu.matmul %123, %125, %cst_176 {dimension_numbers = #tpu.dot_dimension_numbers<[1], [0], [0], [1], [0, 0, 1, 1], [], []>} : vector<64x384xbf16>, vector<384x128xbf16>, vector<64x128xf32> -> vector<64x128xf32>
    %127 = arith.addf %120, %126 : vector<64x128xf32>
    %128 = tpu.concatenate %107, %127 in 0 : vector<64x128xf32>, vector<64x128xf32> -> vector<128x128xf32>
    %cst_177 = arith.constant dense<0.000000e+00> : vector<128xf32>
    %129 = vector.multi_reduction <add>, %128, %cst_177 [0] : vector<128x128xf32> to vector<128xf32>
    %130 = vector.shape_cast %129 : vector<128xf32> to vector<1x128xf32>
    %cst_178 = arith.constant 7.812500e-03 : f32
    %131 = vector.broadcast %cst_178 : f32 to vector<1x128xf32>
    %132 = arith.mulf %130, %131 : vector<1x128xf32>
    %133 = vector.broadcast %132 : vector<1x128xf32> to vector<128x128xf32>
    %134 = arith.subf %128, %133 : vector<128x128xf32>
    %135 = arith.mulf %134, %134 : vector<128x128xf32>
    %cst_179 = arith.constant dense<0.000000e+00> : vector<128xf32>
    %136 = vector.multi_reduction <add>, %135, %cst_179 [0] : vector<128x128xf32> to vector<128xf32>
    %137 = vector.shape_cast %136 : vector<128xf32> to vector<1x128xf32>
    %cst_180 = arith.constant 7.812500e-03 : f32
    %138 = vector.broadcast %cst_180 : f32 to vector<1x128xf32>
    %139 = arith.mulf %137, %138 : vector<1x128xf32>
    %c0_181 = arith.constant 0 : index
    %c0_182 = arith.constant 0 : index
    %140 = vector.load %arg5[%c0_181, %c0_182] : memref<1x128xf32, #tpu.memory_space<vmem>>, vector<1x128xf32>
    %cst_183 = arith.constant 9.99999974E-6 : f32
    %141 = vector.broadcast %cst_183 : f32 to vector<1x128xf32>
    %142 = arith.addf %139, %141 : vector<1x128xf32>
    %143 = math.rsqrt %142 : vector<1x128xf32>
    %144 = arith.mulf %140, %143 : vector<1x128xf32>
    %145 = vector.broadcast %144 : vector<1x128xf32> to vector<128x128xf32>
    %146 = arith.mulf %134, %145 : vector<128x128xf32>
    %c0_184 = arith.constant 0 : index
    %c0_185 = arith.constant 0 : index
    %147 = vector.load %arg6[%c0_184, %c0_185] : memref<1x128xf32, #tpu.memory_space<vmem>>, vector<1x128xf32>
    %148 = vector.broadcast %147 : vector<1x128xf32> to vector<128x128xf32>
    %149 = arith.addf %146, %148 : vector<128x128xf32>
    %c0_186 = arith.constant 0 : index
    %c0_187 = arith.constant 0 : index
    %c0_188 = arith.constant 0 : index
    %c0_189 = arith.constant 0 : index
    %150 = vector.load %arg0[%c0_186, %c0_187, %c0_188, %c0_189] : memref<2x8x8x128xf32, #tpu.memory_space<vmem>>, vector<2x8x8x128xf32>
    %151 = vector.shape_cast %150 : vector<2x8x8x128xf32> to vector<128x128xf32>
    %152 = arith.addf %149, %151 : vector<128x128xf32>
    %cst_190 = arith.constant 0.000000e+00 : f32
    %153 = vector.broadcast %cst_190 : f32 to vector<128x128xf32>
    %154 = arith.maximumf %152, %153 : vector<128x128xf32>
    %155 = vector.shape_cast %154 : vector<128x128xf32> to vector<2x8x8x128xf32>
    %c0_191 = arith.constant 0 : index
    %c0_192 = arith.constant 0 : index
    %c0_193 = arith.constant 0 : index
    %c0_194 = arith.constant 0 : index
    %156 = vector.load %arg7[%c0_191, %c0_192, %c0_193, %c0_194] : memref<2x8x8x128xf32, #tpu.memory_space<vmem>>, vector<2x8x8x128xf32>
    tpu.vector_store %arg7[%c0_191, %c0_192, %c0_193, %c0_194], %155 {strides = array<i32>} : memref<2x8x8x128xf32, #tpu.memory_space<vmem>>, vector<2x8x8x128xf32>,
    return
  }
}

</mosaic_0001>

<llo_original>
// kernel: tpu_custom_call.1
$region0: #{tpu_custom_call.1}
  #allocation0 [shape = 'u32[]', space=smem, size = 0x4, offset = 0x4, fixed_abs, tag = 'smem constant byte address 0x4 - core index']
  #allocation1 [shape = 'u32[144,128]{1,0:T(1,128)}', space=vmem, size = 0x12000, scoped, tag = 'internal scratch']
  #allocation2 [shape = 'bf16[2,10,10,128]{3,2,1,0:T(8,128)(2,1)}', space=vmem, size = 0x14000, scoped, tag = 'scratch operand']
  #allocation3 [shape = 'bf16[2,10,8,384]{3,2,1,0:T(8,128)(2,1)}', space=vmem, size = 0x1e000, scoped, tag = 'scratch operand']
  %s0 = inlined_call_operand.hbm [shape: f32[2,8,8,128], index: 0, kind: input, shape index: {}]
  %s1 = inlined_call_operand.hbm [shape: bf16[3,384,128], index: 1, kind: input, shape index: {}]
  %s2 = inlined_call_operand.hbm [shape: bf16[3,384,128], index: 2, kind: input, shape index: {}]
  %s3 = inlined_call_operand.vmem [shape: f32[1,128], index: 3, kind: input, shape index: {}]
  %s4 = inlined_call_operand.vmem [shape: f32[1,128], index: 4, kind: input, shape index: {}]
  %s5 = inlined_call_operand.vmem [shape: f32[1,128], index: 5, kind: input, shape index: {}]
  %s6 = inlined_call_operand.vmem [shape: f32[1,128], index: 6, kind: input, shape index: {}]
  %s7 = inlined_call_operand.hbm [shape: f32[2,8,8,128], index: 7, kind: output, shape index: {}]
  %s8 = sld [smem:[#allocation0]]
  $region50: #{tpu_custom_call.1} parent=0
    _
  %s10 = ssub.s32 1, %s8
  %s11 = scalar_select 0, %s10, %s8
  $region1: #{tpu_custom_call.1} parent=0
    #allocation4 [shape = 'u8[65536]{0}', space=vmem, size = 0x10000, scoped, tag = 'input window, operand 0, single buffered']
    #allocation5 [shape = 's32[1]{0}', space=sflag, size = 0x4, scoped, tag = 'scoped memory for tpu_custom_call.1']
    #allocation6 [shape = 's32[1]{0}', space=sflag, size = 0x4, scoped, tag = 'scoped memory for tpu_custom_call.1']
    #allocation7 [shape = 'u8[294912]{0}', space=vmem, size = 0x48000, scoped, tag = 'input window, operand 1, single buffered']
    #allocation8 [shape = 's32[1]{0}', space=sflag, size = 0x4, scoped, tag = 'scoped memory for tpu_custom_call.1']
    #allocation9 [shape = 'u8[294912]{0}', space=vmem, size = 0x48000, scoped, tag = 'input window, operand 2, single buffered']
    #allocation10 [shape = 'u8[65536]{0}', space=vmem, size = 0x10000, scoped, tag = 'output window, operand 0, single buffered']
    %12 = vsyncpa [#allocation5], 0
    %13 = vsyncpa [#allocation8], 0
    %14 = vsyncpa [#allocation6], 0
    // Predicated region
    $region2: #{tpu_custom_call.1} parent=1 // pred_check
      _
    $region3: #{tpu_custom_call.1} parent=1 // pred_check_branch
      %16 = sbr.rel (0) target = $region5
    $region4: #{tpu_custom_call.1} parent=1 // pred_region
      %s18 = ssub.s32 2048, 2048
      %19 = vsyncadd [#allocation5], %s18
      %s20 = sshll.u32 [#allocation4], 4
      %s21 = int_to_ptr.vmem [resolvable:$true] %s20
      %26 = dma.hbm_to_vmem [thread:$0]  %s0, 2048, %s21, [#allocation5], 128, 128, 8
    $region5: #{tpu_custom_call.1} parent=1 // pred_fallthru
      _
    // Predicated region
    $region6: #{tpu_custom_call.1} parent=1 // pred_check
      _
    $region7: #{tpu_custom_call.1} parent=1 // pred_check_branch
      %28 = sbr.rel (0) target = $region9
    $region8: #{tpu_custom_call.1} parent=1 // pred_region
      %s30 = ssub.s32 9216, 9216
      %31 = vsyncadd [#allocation8], %s30
      %s32 = sshll.u32 [#allocation7], 4
      %s33 = int_to_ptr.vmem [resolvable:$true] %s32
      %38 = dma.hbm_to_vmem [thread:$0]  %s1, 9216, %s33, [#allocation8], 64, 64, 4
    $region9: #{tpu_custom_call.1} parent=1 // pred_fallthru
      _
    // Predicated region
    $region10: #{tpu_custom_call.1} parent=1 // pred_check
      _
    $region11: #{tpu_custom_call.1} parent=1 // pred_check_branch
      %40 = sbr.rel (0) target = $region13
    $region12: #{tpu_custom_call.1} parent=1 // pred_region
      %s42 = ssub.s32 9216, 9216
      %43 = vsyncadd [#allocation8], %s42
      %s44 = sshll.u32 [#allocation9], 4
      %s45 = int_to_ptr.vmem [resolvable:$true] %s44
      %50 = dma.hbm_to_vmem [thread:$0]  %s2, 9216, %s45, [#allocation8], 64, 64, 4
    $region13: #{tpu_custom_call.1} parent=1 // pred_fallthru
      _
    // Predicated region
    $region14: #{tpu_custom_call.1} parent=1 // pred_check
      _
    $region15: #{tpu_custom_call.1} parent=1 // pred_check_branch
      %52 = sbr.rel (0) target = $region17
    $region16: #{tpu_custom_call.1} parent=1 // pred_region
      _
    $region17: #{tpu_custom_call.1} parent=1 // pred_fallthru
      _
    // Predicated region
    $region18: #{tpu_custom_call.1} parent=1 // pred_check
      _
    $region19: #{tpu_custom_call.1} parent=1 // pred_check_branch
      %54 = sbr.rel (0) target = $region21
    $region20: #{tpu_custom_call.1} parent=1 // pred_region
      _
    $region21: #{tpu_custom_call.1} parent=1 // pred_fallthru
      _
    // Predicated region
    $region22: #{tpu_custom_call.1} parent=1 // pred_check
      _
    $region23: #{tpu_custom_call.1} parent=1 // pred_check_branch
      %56 = sbr.rel (0) target = $region25
    $region24: #{tpu_custom_call.1} parent=1 // pred_region
      _
    $region25: #{tpu_custom_call.1} parent=1 // pred_fallthru
      _
    // Predicated region
    $region26: #{tpu_custom_call.1} parent=1 // pred_check
      _
    $region27: #{tpu_custom_call.1} parent=1 // pred_check_branch
      %58 = sbr.rel (0) target = $region29
    $region28: #{tpu_custom_call.1} parent=1 // pred_region
      _
    $region29: #{tpu_custom_call.1} parent=1 // pred_fallthru
      _
    // Predicated region
    $region30: #{tpu_custom_call.1} parent=1 // pred_check
      _
    $region31: #{tpu_custom_call.1} parent=1 // pred_check_branch
      %60 = sbr.rel (0) target = $region33
    $region32: #{tpu_custom_call.1} parent=1 // pred_region
      %61 = dma.done [#allocation5], 2048
    $region33: #{tpu_custom_call.1} parent=1 // pred_fallthru
      _
    // Predicated region
    $region34: #{tpu_custom_call.1} parent=1 // pred_check
      _
    $region35: #{tpu_custom_call.1} parent=1 // pred_check_branch
      %63 = sbr.rel (0) target = $region37
    $region36: #{tpu_custom_call.1} parent=1 // pred_region
      %64 = dma.done [#allocation8], 9216
    $region37: #{tpu_custom_call.1} parent=1 // pred_fallthru
      _
    // Predicated region
    $region38: #{tpu_custom_call.1} parent=1 // pred_check
      _
    $region39: #{tpu_custom_call.1} parent=1 // pred_check_branch
      %66 = sbr.rel (0) target = $region41
    $region40: #{tpu_custom_call.1} parent=1 // pred_region
      %67 = dma.done [#allocation8], 9216
    $region41: #{tpu_custom_call.1} parent=1 // pred_fallthru
      _
    %v69 = vld [vmem:[#allocation4] sm:$0xff]
    %v70 = vld [vmem:[#allocation4 + $0x8] sm:$0xff]
    %v71 = vld [vmem:[#allocation4 + $0x10] sm:$0xff]
    %v72 = vld [vmem:[#allocation4 + $0x18] sm:$0xff]
    %v73 = vld [vmem:[#allocation4 + $0x20] sm:$0xff]
    %v74 = vld [vmem:[#allocation4 + $0x28] sm:$0xff]
    %v75 = vld [vmem:[#allocation4 + $0x30] sm:$0xff]
    %v76 = vld [vmem:[#allocation4 + $0x38] sm:$0xff]
    %v77 = vld [vmem:[#allocation4 + $0x40] sm:$0xff]
    %v78 = vld [vmem:[#allocation4 + $0x48] sm:$0xff]
    %v79 = vld [vmem:[#allocation4 + $0x50] sm:$0xff]
    %v80 = vld [vmem:[#allocation4 + $0x58] sm:$0xff]
    %v81 = vld [vmem:[#allocation4 + $0x60] sm:$0xff]
    %v82 = vld [vmem:[#allocation4 + $0x68] sm:$0xff]
    %v83 = vld [vmem:[#allocation4 + $0x70] sm:$0xff]
    %v84 = vld [vmem:[#allocation4 + $0x78] sm:$0xff]
    %v85 = vpack.c.bf16 %v69, %v69
    %v86 = vpack.c.bf16 %v70, %v70
    %v87 = vpack.c.bf16 %v71, %v71
    %v88 = vpack.c.bf16 %v72, %v72
    %v89 = vpack.c.bf16 %v73, %v73
    %v90 = vpack.c.bf16 %v74, %v74
    %v91 = vpack.c.bf16 %v75, %v75
    %v92 = vpack.c.bf16 %v76, %v76
    %v93 = vpack.c.bf16 %v77, %v77
    %v94 = vpack.c.bf16 %v78, %v78
    %v95 = vpack.c.bf16 %v79, %v79
    %v96 = vpack.c.bf16 %v80, %v80
    %v97 = vpack.c.bf16 %v81, %v81
    %v98 = vpack.c.bf16 %v82, %v82
    %v99 = vpack.c.bf16 %v83, %v83
    %v100 = vpack.c.bf16 %v84, %v84
    %v117 = vunpack.c.l.b16 %v85
    %v118 = vunpack.c.l.b16 %v86
    %v119 = vunpack.c.l.b16 %v87
    %v120 = vunpack.c.l.b16 %v88
    %v121 = vunpack.c.l.b16 %v89
    %v122 = vunpack.c.l.b16 %v90
    %v123 = vunpack.c.l.b16 %v91
    %v124 = vunpack.c.l.b16 %v92
    %v125 = vunpack.c.l.b16 %v93
    %v126 = vunpack.c.l.b16 %v94
    %v127 = vunpack.c.l.b16 %v95
    %v128 = vunpack.c.l.b16 %v96
    %v129 = vunpack.c.l.b16 %v97
    %v130 = vunpack.c.l.b16 %v98
    %v131 = vunpack.c.l.b16 %v99
    %v132 = vunpack.c.l.b16 %v100
    %v133 = vpack.c.b16 %v117, %v117
    %v134 = vpack.c.b16 %v118, %v118
    %v135 = vpack.c.b16 %v119, %v119
    %v136 = vpack.c.b16 %v120, %v120
    %v137 = vpack.c.b16 %v121, %v121
    %v138 = vpack.c.b16 %v122, %v122
    %v139 = vpack.c.b16 %v123, %v123
    %v140 = vpack.c.b16 %v124, %v124
    %v141 = vpack.c.b16 %v125, %v125
    %v142 = vpack.c.b16 %v126, %v126
    %v143 = vpack.c.b16 %v127, %v127
    %v144 = vpack.c.b16 %v128, %v128
    %v145 = vpack.c.b16 %v129, %v129
    %v146 = vpack.c.b16 %v130, %v130
    %v147 = vpack.c.b16 %v131, %v131
    %v148 = vpack.c.b16 %v132, %v132
    %v150 = vshrl.u32 %v133, 16
    %v152 = vrot.slane %v150, 7
    %v153 = vshll.u32 %v133, 16
    %v155 = vor.u32 %v152, %v153
    %v156 = vrot.slane %v152, 4
    %v158 = vshrl.u32 %v134, 16
    %v160 = vrot.slane %v158, 7
    %v161 = vshll.u32 %v134, 16
    %v163 = vor.u32 %v160, %v161
    %v164 = vrot.slane %v160, 4
    %v166 = vshrl.u32 %v135, 16
    %v168 = vrot.slane %v166, 7
    %v169 = vshll.u32 %v135, 16
    %v171 = vor.u32 %v168, %v169
    %v172 = vrot.slane %v168, 4
    %v174 = vshrl.u32 %v136, 16
    %v176 = vrot.slane %v174, 7
    %v177 = vshll.u32 %v136, 16
    %v179 = vor.u32 %v176, %v177
    %v180 = vrot.slane %v176, 4
    %v182 = vshrl.u32 %v137, 16
    %v184 = vrot.slane %v182, 7
    %v185 = vshll.u32 %v137, 16
    %v187 = vor.u32 %v184, %v185
    %v188 = vrot.slane %v184, 4
    %v190 = vshrl.u32 %v138, 16
    %v192 = vrot.slane %v190, 7
    %v193 = vshll.u32 %v138, 16
    %v195 = vor.u32 %v192, %v193
    %v196 = vrot.slane %v192, 4
    %v198 = vshrl.u32 %v139, 16
    %v200 = vrot.slane %v198, 7
    %v201 = vshll.u32 %v139, 16
    %v203 = vor.u32 %v200, %v201
    %v204 = vrot.slane %v200, 4
    %v206 = vshrl.u32 %v140, 16
    %v208 = vrot.slane %v206, 7
    %v209 = vshll.u32 %v140, 16
    %v211 = vor.u32 %v208, %v209
    %v212 = vrot.slane %v208, 4
    %v214 = vshrl.u32 %v141, 16
    %v216 = vrot.slane %v214, 7
    %v217 = vshll.u32 %v141, 16
    %v219 = vor.u32 %v216, %v217
    %v220 = vrot.slane %v216, 4
    %v222 = vshrl.u32 %v142, 16
    %v224 = vrot.slane %v222, 7
    %v225 = vshll.u32 %v142, 16
    %v227 = vor.u32 %v224, %v225
    %v228 = vrot.slane %v224, 4
    %v230 = vshrl.u32 %v143, 16
    %v232 = vrot.slane %v230, 7
    %v233 = vshll.u32 %v143, 16
    %v235 = vor.u32 %v232, %v233
    %v236 = vrot.slane %v232, 4
    %v238 = vshrl.u32 %v144, 16
    %v240 = vrot.slane %v238, 7
    %v241 = vshll.u32 %v144, 16
    %v243 = vor.u32 %v240, %v241
    %v244 = vrot.slane %v240, 4
    %v246 = vshrl.u32 %v145, 16
    %v248 = vrot.slane %v246, 7
    %v249 = vshll.u32 %v145, 16
    %v251 = vor.u32 %v248, %v249
    %v252 = vrot.slane %v248, 4
    %v254 = vshrl.u32 %v146, 16
    %v256 = vrot.slane %v254, 7
    %v257 = vshll.u32 %v146, 16
    %v259 = vor.u32 %v256, %v257
    %v260 = vrot.slane %v256, 4
    %v262 = vshrl.u32 %v147, 16
    %v264 = vrot.slane %v262, 7
    %v265 = vshll.u32 %v147, 16
    %v267 = vor.u32 %v264, %v265
    %v268 = vrot.slane %v264, 4
    %v270 = vshrl.u32 %v148, 16
    %v272 = vrot.slane %v270, 7
    %v273 = vshll.u32 %v148, 16
    %v275 = vor.u32 %v272, %v273
    %v276 = vrot.slane %v272, 4
    %s309 = scalar_lea.vmem [#allocation2], 8
    %vm310 = vcmask 1043456
    %vm311 = vsmask.f32 7938
    %vm312 = vmand %vm310, %vm311
    %v313 = vld [vmem:[%s309] sm:$0xf]
    %v314 = vsel %vm312, %v155, %v313
    %315 = vst [vmem:[%s309] sm:$0xf] %v314
    %vm316 = vcmask 1040384
    %vm317 = vsmask.f32 256
    %vm318 = vmand %vm316, %vm317
    %v319 = vld [vmem:[%s309 + $0x4] sm:$0x1]
    %v320 = vsel %vm318, %v156, %v319
    %321 = vst [vmem:[%s309 + $0x4] sm:$0x1] %v320
    %v322 = vld [vmem:[%s309 + $0x8] sm:$0xf]
    %v323 = vsel %vm312, %v163, %v322
    %324 = vst [vmem:[%s309 + $0x8] sm:$0xf] %v323
    %v325 = vld [vmem:[%s309 + $0xc] sm:$0x1]
    %v326 = vsel %vm318, %v164, %v325
    %327 = vst [vmem:[%s309 + $0xc] sm:$0x1] %v326
    %v328 = vld [vmem:[%s309 + $0x10] sm:$0xf]
    %v329 = vsel %vm312, %v171, %v328
    %330 = vst [vmem:[%s309 + $0x10] sm:$0xf] %v329
    %v331 = vld [vmem:[%s309 + $0x14] sm:$0x1]
    %v332 = vsel %vm318, %v172, %v331
    %333 = vst [vmem:[%s309 + $0x14] sm:$0x1] %v332
    %v334 = vld [vmem:[%s309 + $0x18] sm:$0xf]
    %v335 = vsel %vm312, %v179, %v334
    %336 = vst [vmem:[%s309 + $0x18] sm:$0xf] %v335
    %v337 = vld [vmem:[%s309 + $0x1c] sm:$0x1]
    %v338 = vsel %vm318, %v180, %v337
    %339 = vst [vmem:[%s309 + $0x1c] sm:$0x1] %v338
    %v340 = vld [vmem:[%s309 + $0x20] sm:$0xf]
    %v341 = vsel %vm312, %v187, %v340
    %342 = vst [vmem:[%s309 + $0x20] sm:$0xf] %v341
    %v343 = vld [vmem:[%s309 + $0x24] sm:$0x1]
    %v344 = vsel %vm318, %v188, %v343
    %345 = vst [vmem:[%s309 + $0x24] sm:$0x1] %v344
    %v346 = vld [vmem:[%s309 + $0x28] sm:$0xf]
    %v347 = vsel %vm312, %v195, %v346
    %348 = vst [vmem:[%s309 + $0x28] sm:$0xf] %v347
    %v349 = vld [vmem:[%s309 + $0x2c] sm:$0x1]
    %v350 = vsel %vm318, %v196, %v349
    %351 = vst [vmem:[%s309 + $0x2c] sm:$0x1] %v350
    %v352 = vld [vmem:[%s309 + $0x30] sm:$0xf]
    %v353 = vsel %vm312, %v203, %v352
    %354 = vst [vmem:[%s309 + $0x30] sm:$0xf] %v353
    %v355 = vld [vmem:[%s309 + $0x34] sm:$0x1]
    %v356 = vsel %vm318, %v204, %v355
    %357 = vst [vmem:[%s309 + $0x34] sm:$0x1] %v356
    %v358 = vld [vmem:[%s309 + $0x38] sm:$0xf]
    %v359 = vsel %vm312, %v211, %v358
    %360 = vst [vmem:[%s309 + $0x38] sm:$0xf] %v359
    %v361 = vld [vmem:[%s309 + $0x3c] sm:$0x1]
    %v362 = vsel %vm318, %v212, %v361
    %363 = vst [vmem:[%s309 + $0x3c] sm:$0x1] %v362
    %v364 = vld [vmem:[%s309 + $0x50] sm:$0xf]
    %v365 = vsel %vm312, %v219, %v364
    %366 = vst [vmem:[%s309 + $0x50] sm:$0xf] %v365
    %v367 = vld [vmem:[%s309 + $0x54] sm:$0x1]
    %v368 = vsel %vm318, %v220, %v367
    %369 = vst [vmem:[%s309 + $0x54] sm:$0x1] %v368
    %v370 = vld [vmem:[%s309 + $0x58] sm:$0xf]
    %v371 = vsel %vm312, %v227, %v370
    %372 = vst [vmem:[%s309 + $0x58] sm:$0xf] %v371
    %v373 = vld [vmem:[%s309 + $0x5c] sm:$0x1]
    %v374 = vsel %vm318, %v228, %v373
    %375 = vst [vmem:[%s309 + $0x5c] sm:$0x1] %v374
    %v376 = vld [vmem:[%s309 + $0x60] sm:$0xf]
    %v377 = vsel %vm312, %v235, %v376
    %378 = vst [vmem:[%s309 + $0x60] sm:$0xf] %v377
    %v379 = vld [vmem:[%s309 + $0x64] sm:$0x1]
    %v380 = vsel %vm318, %v236, %v379
    %381 = vst [vmem:[%s309 + $0x64] sm:$0x1] %v380
    %v382 = vld [vmem:[%s309 + $0x68] sm:$0xf]
    %v383 = vsel %vm312, %v243, %v382
    %384 = vst [vmem:[%s309 + $0x68] sm:$0xf] %v383
    %v385 = vld [vmem:[%s309 + $0x6c] sm:$0x1]
    %v386 = vsel %vm318, %v244, %v385
    %387 = vst [vmem:[%s309 + $0x6c] sm:$0x1] %v386
    %v388 = vld [vmem:[%s309 + $0x70] sm:$0xf]
    %v389 = vsel %vm312, %v251, %v388
    %390 = vst [vmem:[%s309 + $0x70] sm:$0xf] %v389
    %v391 = vld [vmem:[%s309 + $0x74] sm:$0x1]
    %v392 = vsel %vm318, %v252, %v391
    %393 = vst [vmem:[%s309 + $0x74] sm:$0x1] %v392
    %v394 = vld [vmem:[%s309 + $0x78] sm:$0xf]
    %v395 = vsel %vm312, %v259, %v394
    %396 = vst [vmem:[%s309 + $0x78] sm:$0xf] %v395
    %v397 = vld [vmem:[%s309 + $0x7c] sm:$0x1]
    %v398 = vsel %vm318, %v260, %v397
    %399 = vst [vmem:[%s309 + $0x7c] sm:$0x1] %v398
    %v400 = vld [vmem:[%s309 + $0x80] sm:$0xf]
    %v401 = vsel %vm312, %v267, %v400
    %402 = vst [vmem:[%s309 + $0x80] sm:$0xf] %v401
    %v403 = vld [vmem:[%s309 + $0x84] sm:$0x1]
    %v404 = vsel %vm318, %v268, %v403
    %405 = vst [vmem:[%s309 + $0x84] sm:$0x1] %v404
    %v406 = vld [vmem:[%s309 + $0x88] sm:$0xf]
    %v407 = vsel %vm312, %v275, %v406
    %408 = vst [vmem:[%s309 + $0x88] sm:$0xf] %v407
    %v409 = vld [vmem:[%s309 + $0x8c] sm:$0x1]
    %v410 = vsel %vm318, %v276, %v409
    %411 = vst [vmem:[%s309 + $0x8c] sm:$0x1] %v410
    %412 = vst [vmem:[#allocation2] sm:$0xf] 0
    %413 = vst [vmem:[#allocation2 + $0x4] sm:$0x1] 0
    %414 = vst [vmem:[#allocation2 + $0x50] sm:$0xf] 0
    %415 = vst [vmem:[#allocation2 + $0x54] sm:$0x1] 0
    %s416 = scalar_lea.vmem [#allocation2], 72
    %417 = vst [vmem:[%s416] sm:$0xf] 0
    %418 = vst [vmem:[%s416 + $0x4] sm:$0x1] 0
    %419 = vst [vmem:[%s416 + $0x50] sm:$0xf] 0
    %420 = vst [vmem:[%s416 + $0x54] sm:$0x1] 0
    %v421 = vld [vmem:[#allocation2] sm:$0x1]
    %v422 = vsel %vm318, 0, %v421
    %423 = vst [vmem:[#allocation2] sm:$0x1] %v422
    %v424 = vld [vmem:[#allocation2 + $0x8] sm:$0x1]
    %v425 = vsel %vm318, 0, %v424
    %426 = vst [vmem:[#allocation2 + $0x8] sm:$0x1] %v425
    %v427 = vld [vmem:[#allocation2 + $0x10] sm:$0x1]
    %v428 = vsel %vm318, 0, %v427
    %429 = vst [vmem:[#allocation2 + $0x10] sm:$0x1] %v428
    %v430 = vld [vmem:[#allocation2 + $0x18] sm:$0x1]
    %v431 = vsel %vm318, 0, %v430
    %432 = vst [vmem:[#allocation2 + $0x18] sm:$0x1] %v431
    %v433 = vld [vmem:[#allocation2 + $0x20] sm:$0x1]
    %v434 = vsel %vm318, 0, %v433
    %435 = vst [vmem:[#allocation2 + $0x20] sm:$0x1] %v434
    %v436 = vld [vmem:[#allocation2 + $0x28] sm:$0x1]
    %v437 = vsel %vm318, 0, %v436
    %438 = vst [vmem:[#allocation2 + $0x28] sm:$0x1] %v437
    %v439 = vld [vmem:[#allocation2 + $0x30] sm:$0x1]
    %v440 = vsel %vm318, 0, %v439
    %441 = vst [vmem:[#allocation2 + $0x30] sm:$0x1] %v440
    %v442 = vld [vmem:[#allocation2 + $0x38] sm:$0x1]
    %v443 = vsel %vm318, 0, %v442
    %444 = vst [vmem:[#allocation2 + $0x38] sm:$0x1] %v443
    %v445 = vld [vmem:[#allocation2 + $0x40] sm:$0x1]
    %v446 = vsel %vm318, 0, %v445
    %447 = vst [vmem:[#allocation2 + $0x40] sm:$0x1] %v446
    %v448 = vld [vmem:[#allocation2 + $0x48] sm:$0x1]
    %v449 = vsel %vm318, 0, %v448
    %450 = vst [vmem:[#allocation2 + $0x48] sm:$0x1] %v449
    %v451 = vld [vmem:[#allocation2 + $0x50] sm:$0x1]
    %v452 = vsel %vm318, 0, %v451
    %453 = vst [vmem:[#allocation2 + $0x50] sm:$0x1] %v452
    %v454 = vld [vmem:[#allocation2 + $0x58] sm:$0x1]
    %v455 = vsel %vm318, 0, %v454
    %456 = vst [vmem:[#allocation2 + $0x58] sm:$0x1] %v455
    %v457 = vld [vmem:[#allocation2 + $0x60] sm:$0x1]
    %v458 = vsel %vm318, 0, %v457
    %459 = vst [vmem:[#allocation2 + $0x60] sm:$0x1] %v458
    %v460 = vld [vmem:[#allocation2 + $0x68] sm:$0x1]
    %v461 = vsel %vm318, 0, %v460
    %462 = vst [vmem:[#allocation2 + $0x68] sm:$0x1] %v461
    %v463 = vld [vmem:[#allocation2 + $0x70] sm:$0x1]
    %v464 = vsel %vm318, 0, %v463
    %465 = vst [vmem:[#allocation2 + $0x70] sm:$0x1] %v464
    %v466 = vld [vmem:[#allocation2 + $0x78] sm:$0x1]
    %v467 = vsel %vm318, 0, %v466
    %468 = vst [vmem:[#allocation2 + $0x78] sm:$0x1] %v467
    %v469 = vld [vmem:[#allocation2 + $0x80] sm:$0x1]
    %v470 = vsel %vm318, 0, %v469
    %471 = vst [vmem:[#allocation2 + $0x80] sm:$0x1] %v470
    %v472 = vld [vmem:[#allocation2 + $0x88] sm:$0x1]
    %v473 = vsel %vm318, 0, %v472
    %474 = vst [vmem:[#allocation2 + $0x88] sm:$0x1] %v473
    %v475 = vld [vmem:[#allocation2 + $0x90] sm:$0x1]
    %v476 = vsel %vm318, 0, %v475
    %477 = vst [vmem:[#allocation2 + $0x90] sm:$0x1] %v476
    %v478 = vld [vmem:[#allocation2 + $0x98] sm:$0x1]
    %v479 = vsel %vm318, 0, %v478
    %480 = vst [vmem:[#allocation2 + $0x98] sm:$0x1] %v479
    %vm481 = vmand %vm316, %vm311
    %v482 = vld [vmem:[#allocation2 + $0x4] sm:$0x1]
    %v483 = vsel %vm481, 0, %v482
    %484 = vst [vmem:[#allocation2 + $0x4] sm:$0x1] %v483
    %v485 = vld [vmem:[#allocation2 + $0xc] sm:$0x1]
    %v486 = vsel %vm481, 0, %v485
    %487 = vst [vmem:[#allocation2 + $0xc] sm:$0x1] %v486
    %v488 = vld [vmem:[#allocation2 + $0x14] sm:$0x1]
    %v489 = vsel %vm481, 0, %v488
    %490 = vst [vmem:[#allocation2 + $0x14] sm:$0x1] %v489
    %v491 = vld [vmem:[#allocation2 + $0x1c] sm:$0x1]
    %v492 = vsel %vm481, 0, %v491
    %493 = vst [vmem:[#allocation2 + $0x1c] sm:$0x1] %v492
    %v494 = vld [vmem:[#allocation2 + $0x24] sm:$0x1]
    %v495 = vsel %vm481, 0, %v494
    %496 = vst [vmem:[#allocation2 + $0x24] sm:$0x1] %v495
    %v497 = vld [vmem:[#allocation2 + $0x2c] sm:$0x1]
    %v498 = vsel %vm481, 0, %v497
    %499 = vst [vmem:[#allocation2 + $0x2c] sm:$0x1] %v498
    %v500 = vld [vmem:[#allocation2 + $0x34] sm:$0x1]
    %v501 = vsel %vm481, 0, %v500
    %502 = vst [vmem:[#allocation2 + $0x34] sm:$0x1] %v501
    %v503 = vld [vmem:[#allocation2 + $0x3c] sm:$0x1]
    %v504 = vsel %vm481, 0, %v503
    %505 = vst [vmem:[#allocation2 + $0x3c] sm:$0x1] %v504
    %v506 = vld [vmem:[#allocation2 + $0x44] sm:$0x1]
    %v507 = vsel %vm481, 0, %v506
    %508 = vst [vmem:[#allocation2 + $0x44] sm:$0x1] %v507
    %v509 = vld [vmem:[#allocation2 + $0x4c] sm:$0x1]
    %v510 = vsel %vm481, 0, %v509
    %511 = vst [vmem:[#allocation2 + $0x4c] sm:$0x1] %v510
    %v512 = vld [vmem:[#allocation2 + $0x54] sm:$0x1]
    %v513 = vsel %vm481, 0, %v512
    %514 = vst [vmem:[#allocation2 + $0x54] sm:$0x1] %v513
    %v515 = vld [vmem:[#allocation2 + $0x5c] sm:$0x1]
    %v516 = vsel %vm481, 0, %v515
    %517 = vst [vmem:[#allocation2 + $0x5c] sm:$0x1] %v516
    %v518 = vld [vmem:[#allocation2 + $0x64] sm:$0x1]
    %v519 = vsel %vm481, 0, %v518
    %520 = vst [vmem:[#allocation2 + $0x64] sm:$0x1] %v519
    %v521 = vld [vmem:[#allocation2 + $0x6c] sm:$0x1]
    %v522 = vsel %vm481, 0, %v521
    %523 = vst [vmem:[#allocation2 + $0x6c] sm:$0x1] %v522
    %v524 = vld [vmem:[#allocation2 + $0x74] sm:$0x1]
    %v525 = vsel %vm481, 0, %v524
    %526 = vst [vmem:[#allocation2 + $0x74] sm:$0x1] %v525
    %v527 = vld [vmem:[#allocation2 + $0x7c] sm:$0x1]
    %v528 = vsel %vm481, 0, %v527
    %529 = vst [vmem:[#allocation2 + $0x7c] sm:$0x1] %v528
    %v530 = vld [vmem:[#allocation2 + $0x84] sm:$0x1]
    %v531 = vsel %vm481, 0, %v530
    %532 = vst [vmem:[#allocation2 + $0x84] sm:$0x1] %v531
    %v533 = vld [vmem:[#allocation2 + $0x8c] sm:$0x1]
    %v534 = vsel %vm481, 0, %v533
    %535 = vst [vmem:[#allocation2 + $0x8c] sm:$0x1] %v534
    %v536 = vld [vmem:[#allocation2 + $0x94] sm:$0x1]
    %v537 = vsel %vm481, 0, %v536
    %538 = vst [vmem:[#allocation2 + $0x94] sm:$0x1] %v537
    %v539 = vld [vmem:[#allocation2 + $0x9c] sm:$0x1]
    %v540 = vsel %vm481, 0, %v539
    %541 = vst [vmem:[#allocation2 + $0x9c] sm:$0x1] %v540
    %v542 = vld [vmem:[#allocation2] sm:$0xf]
    %v543 = vld [vmem:[#allocation2 + $0x8] sm:$0xf]
    %v544 = vld [vmem:[#allocation2 + $0x10] sm:$0xf]
    %v545 = vld [vmem:[#allocation2 + $0x18] sm:$0xf]
    %v546 = vld [vmem:[#allocation2 + $0x20] sm:$0xf]
    %v547 = vld [vmem:[#allocation2 + $0x28] sm:$0xf]
    %v548 = vld [vmem:[#allocation2 + $0x30] sm:$0xf]
    %v549 = vld [vmem:[#allocation2 + $0x38] sm:$0xf]
    %v550 = vld [vmem:[#allocation2 + $0x40] sm:$0xf]
    %v551 = vld [vmem:[#allocation2 + $0x48] sm:$0xf]
    %v552 = vld [vmem:[#allocation2 + $0x50] sm:$0xf]
    %v553 = vld [vmem:[#allocation2 + $0x58] sm:$0xf]
    %v554 = vld [vmem:[#allocation2 + $0x60] sm:$0xf]
    %v555 = vld [vmem:[#allocation2 + $0x68] sm:$0xf]
    %v556 = vld [vmem:[#allocation2 + $0x70] sm:$0xf]
    %v557 = vld [vmem:[#allocation2 + $0x78] sm:$0xf]
    %v558 = vld [vmem:[#allocation2 + $0x80] sm:$0xf]
    %v559 = vld [vmem:[#allocation2 + $0x88] sm:$0xf]
    %v560 = vld [vmem:[#allocation2 + $0x90] sm:$0xf]
    %v561 = vld [vmem:[#allocation2 + $0x98] sm:$0xf]
    %562 = vst [vmem:[#allocation3] sm:$0xf] %v542
    %563 = vst [vmem:[#allocation3 + $0xc] sm:$0xf] %v543
    %564 = vst [vmem:[#allocation3 + $0x18] sm:$0xf] %v544
    %565 = vst [vmem:[#allocation3 + $0x24] sm:$0xf] %v545
    %566 = vst [vmem:[#allocation3 + $0x30] sm:$0xf] %v546
    %567 = vst [vmem:[#allocation3 + $0x3c] sm:$0xf] %v547
    %568 = vst [vmem:[#allocation3 + $0x48] sm:$0xf] %v548
    %569 = vst [vmem:[#allocation3 + $0x54] sm:$0xf] %v549
    %570 = vst [vmem:[#allocation3 + $0x60] sm:$0xf] %v550
    %571 = vst [vmem:[#allocation3 + $0x6c] sm:$0xf] %v551
    %572 = vst [vmem:[#allocation3 + $0x78] sm:$0xf] %v552
    %573 = vst [vmem:[#allocation3 + $0x84] sm:$0xf] %v553
    %574 = vst [vmem:[#allocation3 + $0x90] sm:$0xf] %v554
    %575 = vst [vmem:[#allocation3 + $0x9c] sm:$0xf] %v555
    %576 = vst [vmem:[#allocation3 + $0xa8] sm:$0xf] %v556
    %577 = vst [vmem:[#allocation3 + $0xb4] sm:$0xf] %v557
    %578 = vst [vmem:[#allocation3 + $0xc0] sm:$0xf] %v558
    %579 = vst [vmem:[#allocation3 + $0xcc] sm:$0xf] %v559
    %580 = vst [vmem:[#allocation3 + $0xd8] sm:$0xf] %v560
    %581 = vst [vmem:[#allocation3 + $0xe4] sm:$0xf] %v561
    %v582 = vld [vmem:[#allocation2] sm:$0xf]
    %v583 = vld [vmem:[#allocation2 + $0x4] sm:$0x1]
    %v584 = vld [vmem:[#allocation2 + $0x8] sm:$0xf]
    %v585 = vld [vmem:[#allocation2 + $0xc] sm:$0x1]
    %v586 = vld [vmem:[#allocation2 + $0x10] sm:$0xf]
    %v587 = vld [vmem:[#allocation2 + $0x14] sm:$0x1]
    %v588 = vld [vmem:[#allocation2 + $0x18] sm:$0xf]
    %v589 = vld [vmem:[#allocation2 + $0x1c] sm:$0x1]
    %v590 = vld [vmem:[#allocation2 + $0x20] sm:$0xf]
    %v591 = vld [vmem:[#allocation2 + $0x24] sm:$0x1]
    %v592 = vld [vmem:[#allocation2 + $0x28] sm:$0xf]
    %v593 = vld [vmem:[#allocation2 + $0x2c] sm:$0x1]
    %v594 = vld [vmem:[#allocation2 + $0x30] sm:$0xf]
    %v595 = vld [vmem:[#allocation2 + $0x34] sm:$0x1]
    %v596 = vld [vmem:[#allocation2 + $0x38] sm:$0xf]
    %v597 = vld [vmem:[#allocation2 + $0x3c] sm:$0x1]
    %v598 = vld [vmem:[#allocation2 + $0x40] sm:$0xf]
    %v599 = vld [vmem:[#allocation2 + $0x44] sm:$0x1]
    %v600 = vld [vmem:[#allocation2 + $0x48] sm:$0xf]
    %v601 = vld [vmem:[#allocation2 + $0x4c] sm:$0x1]
    %v602 = vld [vmem:[#allocation2 + $0x50] sm:$0xf]
    %v603 = vld [vmem:[#allocation2 + $0x54] sm:$0x1]
    %v604 = vld [vmem:[#allocation2 + $0x58] sm:$0xf]
    %v605 = vld [vmem:[#allocation2 + $0x5c] sm:$0x1]
    %v606 = vld [vmem:[#allocation2 + $0x60] sm:$0xf]
    %v607 = vld [vmem:[#allocation2 + $0x64] sm:$0x1]
    %v608 = vld [vmem:[#allocation2 + $0x68] sm:$0xf]
    %v609 = vld [vmem:[#allocation2 + $0x6c] sm:$0x1]
    %v610 = vld [vmem:[#allocation2 + $0x70] sm:$0xf]
    %v611 = vld [vmem:[#allocation2 + $0x74] sm:$0x1]
    %v612 = vld [vmem:[#allocation2 + $0x78] sm:$0xf]
    %v613 = vld [vmem:[#allocation2 + $0x7c] sm:$0x1]
    %v614 = vld [vmem:[#allocation2 + $0x80] sm:$0xf]
    %v615 = vld [vmem:[#allocation2 + $0x84] sm:$0x1]
    %v616 = vld [vmem:[#allocation2 + $0x88] sm:$0xf]
    %v617 = vld [vmem:[#allocation2 + $0x8c] sm:$0x1]
    %v618 = vld [vmem:[#allocation2 + $0x90] sm:$0xf]
    %v619 = vld [vmem:[#allocation2 + $0x94] sm:$0x1]
    %v620 = vld [vmem:[#allocation2 + $0x98] sm:$0xf]
    %v621 = vld [vmem:[#allocation2 + $0x9c] sm:$0x1]
    %vm622 = vsmask.f32 3328
    %vm623 = vsmask.f32 7440
    %vm624 = vmor %vm622, %vm623
    %v626 = vshrl.u32 %v582, 16
    %v628 = vrot.slane %v626, 4
    %v629 = vshll.u32 %v582, 16
    %v631 = vrot.slane %v629, 5
    %v632 = vor.u32 %v628, %v631
    %v633 = vrot.slane %v632, 4
    %v635 = vshll.u32 %v583, 16
    %v637 = vrot.slane %v635, 5
    %v638 = vsel %vm624, %v633, %v637
    %v640 = vshrl.u32 %v584, 16
    %v642 = vrot.slane %v640, 4
    %v643 = vshll.u32 %v584, 16
    %v645 = vrot.slane %v643, 5
    %v646 = vor.u32 %v642, %v645
    %v647 = vrot.slane %v646, 4
    %v649 = vshll.u32 %v585, 16
    %v651 = vrot.slane %v649, 5
    %v652 = vsel %vm624, %v647, %v651
    %v654 = vshrl.u32 %v586, 16
    %v656 = vrot.slane %v654, 4
    %v657 = vshll.u32 %v586, 16
    %v659 = vrot.slane %v657, 5
    %v660 = vor.u32 %v656, %v659
    %v661 = vrot.slane %v660, 4
    %v663 = vshll.u32 %v587, 16
    %v665 = vrot.slane %v663, 5
    %v666 = vsel %vm624, %v661, %v665
    %v668 = vshrl.u32 %v588, 16
    %v670 = vrot.slane %v668, 4
    %v671 = vshll.u32 %v588, 16
    %v673 = vrot.slane %v671, 5
    %v674 = vor.u32 %v670, %v673
    %v675 = vrot.slane %v674, 4
    %v677 = vshll.u32 %v589, 16
    %v679 = vrot.slane %v677, 5
    %v680 = vsel %vm624, %v675, %v679
    %v682 = vshrl.u32 %v590, 16
    %v684 = vrot.slane %v682, 4
    %v685 = vshll.u32 %v590, 16
    %v687 = vrot.slane %v685, 5
    %v688 = vor.u32 %v684, %v687
    %v689 = vrot.slane %v688, 4
    %v691 = vshll.u32 %v591, 16
    %v693 = vrot.slane %v691, 5
    %v694 = vsel %vm624, %v689, %v693
    %v696 = vshrl.u32 %v592, 16
    %v698 = vrot.slane %v696, 4
    %v699 = vshll.u32 %v592, 16
    %v701 = vrot.slane %v699, 5
    %v702 = vor.u32 %v698, %v701
    %v703 = vrot.slane %v702, 4
    %v705 = vshll.u32 %v593, 16
    %v707 = vrot.slane %v705, 5
    %v708 = vsel %vm624, %v703, %v707
    %v710 = vshrl.u32 %v594, 16
    %v712 = vrot.slane %v710, 4
    %v713 = vshll.u32 %v594, 16
    %v715 = vrot.slane %v713, 5
    %v716 = vor.u32 %v712, %v715
    %v717 = vrot.slane %v716, 4
    %v719 = vshll.u32 %v595, 16
    %v721 = vrot.slane %v719, 5
    %v722 = vsel %vm624, %v717, %v721
    %v724 = vshrl.u32 %v596, 16
    %v726 = vrot.slane %v724, 4
    %v727 = vshll.u32 %v596, 16
    %v729 = vrot.slane %v727, 5
    %v730 = vor.u32 %v726, %v729
    %v731 = vrot.slane %v730, 4
    %v733 = vshll.u32 %v597, 16
    %v735 = vrot.slane %v733, 5
    %v736 = vsel %vm624, %v731, %v735
    %v738 = vshrl.u32 %v598, 16
    %v740 = vrot.slane %v738, 4
    %v741 = vshll.u32 %v598, 16
    %v743 = vrot.slane %v741, 5
    %v744 = vor.u32 %v740, %v743
    %v745 = vrot.slane %v744, 4
    %v747 = vshll.u32 %v599, 16
    %v749 = vrot.slane %v747, 5
    %v750 = vsel %vm624, %v745, %v749
    %v752 = vshrl.u32 %v600, 16
    %v754 = vrot.slane %v752, 4
    %v755 = vshll.u32 %v600, 16
    %v757 = vrot.slane %v755, 5
    %v758 = vor.u32 %v754, %v757
    %v759 = vrot.slane %v758, 4
    %v761 = vshll.u32 %v601, 16
    %v763 = vrot.slane %v761, 5
    %v764 = vsel %vm624, %v759, %v763
    %v766 = vshrl.u32 %v602, 16
    %v768 = vrot.slane %v766, 4
    %v769 = vshll.u32 %v602, 16
    %v771 = vrot.slane %v769, 5
    %v772 = vor.u32 %v768, %v771
    %v773 = vrot.slane %v772, 4
    %v775 = vshll.u32 %v603, 16
    %v777 = vrot.slane %v775, 5
    %v778 = vsel %vm624, %v773, %v777
    %v780 = vshrl.u32 %v604, 16
    %v782 = vrot.slane %v780, 4
    %v783 = vshll.u32 %v604, 16
    %v785 = vrot.slane %v783, 5
    %v786 = vor.u32 %v782, %v785
    %v787 = vrot.slane %v786, 4
    %v789 = vshll.u32 %v605, 16
    %v791 = vrot.slane %v789, 5
    %v792 = vsel %vm624, %v787, %v791
    %v794 = vshrl.u32 %v606, 16
    %v796 = vrot.slane %v794, 4
    %v797 = vshll.u32 %v606, 16
    %v799 = vrot.slane %v797, 5
    %v800 = vor.u32 %v796, %v799
    %v801 = vrot.slane %v800, 4
    %v803 = vshll.u32 %v607, 16
    %v805 = vrot.slane %v803, 5
    %v806 = vsel %vm624, %v801, %v805
    %v808 = vshrl.u32 %v608, 16
    %v810 = vrot.slane %v808, 4
    %v811 = vshll.u32 %v608, 16
    %v813 = vrot.slane %v811, 5
    %v814 = vor.u32 %v810, %v813
    %v815 = vrot.slane %v814, 4
    %v817 = vshll.u32 %v609, 16
    %v819 = vrot.slane %v817, 5
    %v820 = vsel %vm624, %v815, %v819
    %v822 = vshrl.u32 %v610, 16
    %v824 = vrot.slane %v822, 4
    %v825 = vshll.u32 %v610, 16
    %v827 = vrot.slane %v825, 5
    %v828 = vor.u32 %v824, %v827
    %v829 = vrot.slane %v828, 4
    %v831 = vshll.u32 %v611, 16
    %v833 = vrot.slane %v831, 5
    %v834 = vsel %vm624, %v829, %v833
    %v836 = vshrl.u32 %v612, 16
    %v838 = vrot.slane %v836, 4
    %v839 = vshll.u32 %v612, 16
    %v841 = vrot.slane %v839, 5
    %v842 = vor.u32 %v838, %v841
    %v843 = vrot.slane %v842, 4
    %v845 = vshll.u32 %v613, 16
    %v847 = vrot.slane %v845, 5
    %v848 = vsel %vm624, %v843, %v847
    %v850 = vshrl.u32 %v614, 16
    %v852 = vrot.slane %v850, 4
    %v853 = vshll.u32 %v614, 16
    %v855 = vrot.slane %v853, 5
    %v856 = vor.u32 %v852, %v855
    %v857 = vrot.slane %v856, 4
    %v859 = vshll.u32 %v615, 16
    %v861 = vrot.slane %v859, 5
    %v862 = vsel %vm624, %v857, %v861
    %v864 = vshrl.u32 %v616, 16
    %v866 = vrot.slane %v864, 4
    %v867 = vshll.u32 %v616, 16
    %v869 = vrot.slane %v867, 5
    %v870 = vor.u32 %v866, %v869
    %v871 = vrot.slane %v870, 4
    %v873 = vshll.u32 %v617, 16
    %v875 = vrot.slane %v873, 5
    %v876 = vsel %vm624, %v871, %v875
    %v878 = vshrl.u32 %v618, 16
    %v880 = vrot.slane %v878, 4
    %v881 = vshll.u32 %v618, 16
    %v883 = vrot.slane %v881, 5
    %v884 = vor.u32 %v880, %v883
    %v885 = vrot.slane %v884, 4
    %v887 = vshll.u32 %v619, 16
    %v889 = vrot.slane %v887, 5
    %v890 = vsel %vm624, %v885, %v889
    %v892 = vshrl.u32 %v620, 16
    %v894 = vrot.slane %v892, 4
    %v895 = vshll.u32 %v620, 16
    %v897 = vrot.slane %v895, 5
    %v898 = vor.u32 %v894, %v897
    %v899 = vrot.slane %v898, 4
    %v901 = vshll.u32 %v621, 16
    %v903 = vrot.slane %v901, 5
    %v904 = vsel %vm624, %v899, %v903
    %925 = vst [vmem:[#allocation3 + $0x4] sm:$0xf] %v638
    %926 = vst [vmem:[#allocation3 + $0x10] sm:$0xf] %v652
    %927 = vst [vmem:[#allocation3 + $0x1c] sm:$0xf] %v666
    %928 = vst [vmem:[#allocation3 + $0x28] sm:$0xf] %v680
    %929 = vst [vmem:[#allocation3 + $0x34] sm:$0xf] %v694
    %930 = vst [vmem:[#allocation3 + $0x40] sm:$0xf] %v708
    %931 = vst [vmem:[#allocation3 + $0x4c] sm:$0xf] %v722
    %932 = vst [vmem:[#allocation3 + $0x58] sm:$0xf] %v736
    %933 = vst [vmem:[#allocation3 + $0x64] sm:$0xf] %v750
    %934 = vst [vmem:[#allocation3 + $0x70] sm:$0xf] %v764
    %935 = vst [vmem:[#allocation3 + $0x7c] sm:$0xf] %v778
    %936 = vst [vmem:[#allocation3 + $0x88] sm:$0xf] %v792
    %937 = vst [vmem:[#allocation3 + $0x94] sm:$0xf] %v806
    %938 = vst [vmem:[#allocation3 + $0xa0] sm:$0xf] %v820
    %939 = vst [vmem:[#allocation3 + $0xac] sm:$0xf] %v834
    %940 = vst [vmem:[#allocation3 + $0xb8] sm:$0xf] %v848
    %941 = vst [vmem:[#allocation3 + $0xc4] sm:$0xf] %v862
    %942 = vst [vmem:[#allocation3 + $0xd0] sm:$0xf] %v876
    %943 = vst [vmem:[#allocation3 + $0xdc] sm:$0xf] %v890
    %944 = vst [vmem:[#allocation3 + $0xe8] sm:$0xf] %v904
    %v945 = vld [vmem:[#allocation2] sm:$0xe]
    %v946 = vld [vmem:[#allocation2 + $0x4] sm:$0x1]
    %v947 = vld [vmem:[#allocation2 + $0x8] sm:$0xe]
    %v948 = vld [vmem:[#allocation2 + $0xc] sm:$0x1]
    %v949 = vld [vmem:[#allocation2 + $0x10] sm:$0xe]
    %v950 = vld [vmem:[#allocation2 + $0x14] sm:$0x1]
    %v951 = vld [vmem:[#allocation2 + $0x18] sm:$0xe]
    %v952 = vld [vmem:[#allocation2 + $0x1c] sm:$0x1]
    %v953 = vld [vmem:[#allocation2 + $0x20] sm:$0xe]
    %v954 = vld [vmem:[#allocation2 + $0x24] sm:$0x1]
    %v955 = vld [vmem:[#allocation2 + $0x28] sm:$0xe]
    %v956 = vld [vmem:[#allocation2 + $0x2c] sm:$0x1]
    %v957 = vld [vmem:[#allocation2 + $0x30] sm:$0xe]
    %v958 = vld [vmem:[#allocation2 + $0x34] sm:$0x1]
    %v959 = vld [vmem:[#allocation2 + $0x38] sm:$0xe]
    %v960 = vld [vmem:[#allocation2 + $0x3c] sm:$0x1]
    %v961 = vld [vmem:[#allocation2 + $0x40] sm:$0xe]
    %v962 = vld [vmem:[#allocation2 + $0x44] sm:$0x1]
    %v963 = vld [vmem:[#allocation2 + $0x48] sm:$0xe]
    %v964 = vld [vmem:[#allocation2 + $0x4c] sm:$0x1]
    %v965 = vld [vmem:[#allocation2 + $0x50] sm:$0xe]
    %v966 = vld [vmem:[#allocation2 + $0x54] sm:$0x1]
    %v967 = vld [vmem:[#allocation2 + $0x58] sm:$0xe]
    %v968 = vld [vmem:[#allocation2 + $0x5c] sm:$0x1]
    %v969 = vld [vmem:[#allocation2 + $0x60] sm:$0xe]
    %v970 = vld [vmem:[#allocation2 + $0x64] sm:$0x1]
    %v971 = vld [vmem:[#allocation2 + $0x68] sm:$0xe]
    %v972 = vld [vmem:[#allocation2 + $0x6c] sm:$0x1]
    %v973 = vld [vmem:[#allocation2 + $0x70] sm:$0xe]
    %v974 = vld [vmem:[#allocation2 + $0x74] sm:$0x1]
    %v975 = vld [vmem:[#allocation2 + $0x78] sm:$0xe]
    %v976 = vld [vmem:[#allocation2 + $0x7c] sm:$0x1]
    %v977 = vld [vmem:[#allocation2 + $0x80] sm:$0xe]
    %v978 = vld [vmem:[#allocation2 + $0x84] sm:$0x1]
    %v979 = vld [vmem:[#allocation2 + $0x88] sm:$0xe]
    %v980 = vld [vmem:[#allocation2 + $0x8c] sm:$0x1]
    %v981 = vld [vmem:[#allocation2 + $0x90] sm:$0xe]
    %v982 = vld [vmem:[#allocation2 + $0x94] sm:$0x1]
    %v983 = vld [vmem:[#allocation2 + $0x98] sm:$0xe]
    %v984 = vld [vmem:[#allocation2 + $0x9c] sm:$0x1]
    %vm1025 = vcmask 1042432
    %vm1026 = vcmask 1046532
    %vm1027 = vmor %vm1025, %vm1026
    %v1028 = vrot.slane %v945, 5
    %v1029 = vrot.slane %v1028, 4
    %v1030 = vrot.slane %v946, 5
    %v1031 = vsel %vm1027, %v1029, %v1030
    %v1032 = vrot.slane %v947, 5
    %v1033 = vrot.slane %v1032, 4
    %v1034 = vrot.slane %v948, 5
    %v1035 = vsel %vm1027, %v1033, %v1034
    %v1036 = vrot.slane %v949, 5
    %v1037 = vrot.slane %v1036, 4
    %v1038 = vrot.slane %v950, 5
    %v1039 = vsel %vm1027, %v1037, %v1038
    %v1040 = vrot.slane %v951, 5
    %v1041 = vrot.slane %v1040, 4
    %v1042 = vrot.slane %v952, 5
    %v1043 = vsel %vm1027, %v1041, %v1042
    %v1044 = vrot.slane %v953, 5
    %v1045 = vrot.slane %v1044, 4
    %v1046 = vrot.slane %v954, 5
    %v1047 = vsel %vm1027, %v1045, %v1046
    %v1048 = vrot.slane %v955, 5
    %v1049 = vrot.slane %v1048, 4
    %v1050 = vrot.slane %v956, 5
    %v1051 = vsel %vm1027, %v1049, %v1050
    %v1052 = vrot.slane %v957, 5
    %v1053 = vrot.slane %v1052, 4
    %v1054 = vrot.slane %v958, 5
    %v1055 = vsel %vm1027, %v1053, %v1054
    %v1056 = vrot.slane %v959, 5
    %v1057 = vrot.slane %v1056, 4
    %v1058 = vrot.slane %v960, 5
    %v1059 = vsel %vm1027, %v1057, %v1058
    %v1060 = vrot.slane %v961, 5
    %v1061 = vrot.slane %v1060, 4
    %v1062 = vrot.slane %v962, 5
    %v1063 = vsel %vm1027, %v1061, %v1062
    %v1064 = vrot.slane %v963, 5
    %v1065 = vrot.slane %v1064, 4
    %v1066 = vrot.slane %v964, 5
    %v1067 = vsel %vm1027, %v1065, %v1066
    %v1068 = vrot.slane %v965, 5
    %v1069 = vrot.slane %v1068, 4
    %v1070 = vrot.slane %v966, 5
    %v1071 = vsel %vm1027, %v1069, %v1070
    %v1072 = vrot.slane %v967, 5
    %v1073 = vrot.slane %v1072, 4
    %v1074 = vrot.slane %v968, 5
    %v1075 = vsel %vm1027, %v1073, %v1074
    %v1076 = vrot.slane %v969, 5
    %v1077 = vrot.slane %v1076, 4
    %v1078 = vrot.slane %v970, 5
    %v1079 = vsel %vm1027, %v1077, %v1078
    %v1080 = vrot.slane %v971, 5
    %v1081 = vrot.slane %v1080, 4
    %v1082 = vrot.slane %v972, 5
    %v1083 = vsel %vm1027, %v1081, %v1082
    %v1084 = vrot.slane %v973, 5
    %v1085 = vrot.slane %v1084, 4
    %v1086 = vrot.slane %v974, 5
    %v1087 = vsel %vm1027, %v1085, %v1086
    %v1088 = vrot.slane %v975, 5
    %v1089 = vrot.slane %v1088, 4
    %v1090 = vrot.slane %v976, 5
    %v1091 = vsel %vm1027, %v1089, %v1090
    %v1092 = vrot.slane %v977, 5
    %v1093 = vrot.slane %v1092, 4
    %v1094 = vrot.slane %v978, 5
    %v1095 = vsel %vm1027, %v1093, %v1094
    %v1096 = vrot.slane %v979, 5
    %v1097 = vrot.slane %v1096, 4
    %v1098 = vrot.slane %v980, 5
    %v1099 = vsel %vm1027, %v1097, %v1098
    %v1100 = vrot.slane %v981, 5
    %v1101 = vrot.slane %v1100, 4
    %v1102 = vrot.slane %v982, 5
    %v1103 = vsel %vm1027, %v1101, %v1102
    %v1104 = vrot.slane %v983, 5
    %v1105 = vrot.slane %v1104, 4
    %v1106 = vrot.slane %v984, 5
    %v1107 = vsel %vm1027, %v1105, %v1106
    %1128 = vst [vmem:[#allocation3 + $0x8] sm:$0xf] %v1031
    %1129 = vst [vmem:[#allocation3 + $0x14] sm:$0xf] %v1035
    %1130 = vst [vmem:[#allocation3 + $0x20] sm:$0xf] %v1039
    %1131 = vst [vmem:[#allocation3 + $0x2c] sm:$0xf] %v1043
    %1132 = vst [vmem:[#allocation3 + $0x38] sm:$0xf] %v1047
    %1133 = vst [vmem:[#allocation3 + $0x44] sm:$0xf] %v1051
    %1134 = vst [vmem:[#allocation3 + $0x50] sm:$0xf] %v1055
    %1135 = vst [vmem:[#allocation3 + $0x5c] sm:$0xf] %v1059
    %1136 = vst [vmem:[#allocation3 + $0x68] sm:$0xf] %v1063
    %1137 = vst [vmem:[#allocation3 + $0x74] sm:$0xf] %v1067
    %1138 = vst [vmem:[#allocation3 + $0x80] sm:$0xf] %v1071
    %1139 = vst [vmem:[#allocation3 + $0x8c] sm:$0xf] %v1075
    %1140 = vst [vmem:[#allocation3 + $0x98] sm:$0xf] %v1079
    %1141 = vst [vmem:[#allocation3 + $0xa4] sm:$0xf] %v1083
    %1142 = vst [vmem:[#allocation3 + $0xb0] sm:$0xf] %v1087
    %1143 = vst [vmem:[#allocation3 + $0xbc] sm:$0xf] %v1091
    %1144 = vst [vmem:[#allocation3 + $0xc8] sm:$0xf] %v1095
    %1145 = vst [vmem:[#allocation3 + $0xd4] sm:$0xf] %v1099
    %1146 = vst [vmem:[#allocation3 + $0xe0] sm:$0xf] %v1103
    %1147 = vst [vmem:[#allocation3 + $0xec] sm:$0xf] %v1107
    %v1148 = vld [vmem:[#allocation3] sm:$0xff]
    %v1149 = vld [vmem:[#allocation3 + $0x8] sm:$0xf]
    %v1150 = vld [vmem:[#allocation3 + $0xc] sm:$0xff]
    %v1151 = vld [vmem:[#allocation3 + $0x14] sm:$0xf]
    %v1152 = vld [vmem:[#allocation3 + $0x18] sm:$0xff]
    %v1153 = vld [vmem:[#allocation3 + $0x20] sm:$0xf]
    %v1154 = vld [vmem:[#allocation3 + $0x24] sm:$0xff]
    %v1155 = vld [vmem:[#allocation3 + $0x2c] sm:$0xf]
    %v1156 = vld [vmem:[#allocation3 + $0x30] sm:$0xff]
    %v1157 = vld [vmem:[#allocation3 + $0x38] sm:$0xf]
    %v1158 = vld [vmem:[#allocation3 + $0x3c] sm:$0xff]
    %v1159 = vld [vmem:[#allocation3 + $0x44] sm:$0xf]
    %v1160 = vld [vmem:[#allocation3 + $0x48] sm:$0xff]
    %v1161 = vld [vmem:[#allocation3 + $0x50] sm:$0xf]
    %v1162 = vld [vmem:[#allocation3 + $0x54] sm:$0xff]
    %v1163 = vld [vmem:[#allocation3 + $0x5c] sm:$0xf]
    %v1164 = vld [vmem:[#allocation7] sm:$0xf]
    %v1165 = vld [vmem:[#allocation7 + $0x4] sm:$0xf]
    %v1166 = vld [vmem:[#allocation7 + $0x8] sm:$0xf]
    %v1167 = vld [vmem:[#allocation7 + $0xc] sm:$0xf]
    %v1168 = vld [vmem:[#allocation7 + $0x10] sm:$0xf]
    %v1169 = vld [vmem:[#allocation7 + $0x14] sm:$0xf]
    %v1170 = vld [vmem:[#allocation7 + $0x18] sm:$0xf]
    %v1171 = vld [vmem:[#allocation7 + $0x1c] sm:$0xf]
    %v1172 = vld [vmem:[#allocation7 + $0x20] sm:$0xf]
    %v1173 = vld [vmem:[#allocation7 + $0x24] sm:$0xf]
    %v1174 = vld [vmem:[#allocation7 + $0x28] sm:$0xf]
    %v1175 = vld [vmem:[#allocation7 + $0x2c] sm:$0xf]
    %v1176 = vld [vmem:[#allocation7 + $0x30] sm:$0xf]
    %v1177 = vld [vmem:[#allocation7 + $0x34] sm:$0xf]
    %v1178 = vld [vmem:[#allocation7 + $0x38] sm:$0xf]
    %v1179 = vld [vmem:[#allocation7 + $0x3c] sm:$0xf]
    %v1180 = vld [vmem:[#allocation7 + $0x40] sm:$0xf]
    %v1181 = vld [vmem:[#allocation7 + $0x44] sm:$0xf]
    %v1182 = vld [vmem:[#allocation7 + $0x48] sm:$0xf]
    %v1183 = vld [vmem:[#allocation7 + $0x4c] sm:$0xf]
    %v1184 = vld [vmem:[#allocation7 + $0x50] sm:$0xf]
    %v1185 = vld [vmem:[#allocation7 + $0x54] sm:$0xf]
    %v1186 = vld [vmem:[#allocation7 + $0x58] sm:$0xf]
    %v1187 = vld [vmem:[#allocation7 + $0x5c] sm:$0xf]
    %v1188 = vld [vmem:[#allocation7 + $0x60] sm:$0xf]
    %v1189 = vld [vmem:[#allocation7 + $0x64] sm:$0xf]
    %v1190 = vld [vmem:[#allocation7 + $0x68] sm:$0xf]
    %v1191 = vld [vmem:[#allocation7 + $0x6c] sm:$0xf]
    %v1192 = vld [vmem:[#allocation7 + $0x70] sm:$0xf]
    %v1193 = vld [vmem:[#allocation7 + $0x74] sm:$0xf]
    %v1194 = vld [vmem:[#allocation7 + $0x78] sm:$0xf]
    %v1195 = vld [vmem:[#allocation7 + $0x7c] sm:$0xf]
    %v1196 = vld [vmem:[#allocation7 + $0x80] sm:$0xf]
    %v1197 = vld [vmem:[#allocation7 + $0x84] sm:$0xf]
    %v1198 = vld [vmem:[#allocation7 + $0x88] sm:$0xf]
    %v1199 = vld [vmem:[#allocation7 + $0x8c] sm:$0xf]
    %v1200 = vld [vmem:[#allocation7 + $0x90] sm:$0xf]
    %v1201 = vld [vmem:[#allocation7 + $0x94] sm:$0xf]
    %v1202 = vld [vmem:[#allocation7 + $0x98] sm:$0xf]
    %v1203 = vld [vmem:[#allocation7 + $0x9c] sm:$0xf]
    %v1204 = vld [vmem:[#allocation7 + $0xa0] sm:$0xf]
    %v1205 = vld [vmem:[#allocation7 + $0xa4] sm:$0xf]
    %v1206 = vld [vmem:[#allocation7 + $0xa8] sm:$0xf]
    %v1207 = vld [vmem:[#allocation7 + $0xac] sm:$0xf]
    %v1208 = vld [vmem:[#allocation7 + $0xb0] sm:$0xf]
    %v1209 = vld [vmem:[#allocation7 + $0xb4] sm:$0xf]
    %v1210 = vld [vmem:[#allocation7 + $0xb8] sm:$0xf]
    %v1211 = vld [vmem:[#allocation7 + $0xbc] sm:$0xf]
    %s1212 = scalar_lea.vmem [#allocation3], 12
    %v1213 = vld [vmem:[%s1212] sm:$0xff]
    %v1214 = vld [vmem:[%s1212 + $0x8] sm:$0xf]
    %v1215 = vld [vmem:[%s1212 + $0xc] sm:$0xff]
    %v1216 = vld [vmem:[%s1212 + $0x14] sm:$0xf]
    %v1217 = vld [vmem:[%s1212 + $0x18] sm:$0xff]
    %v1218 = vld [vmem:[%s1212 + $0x20] sm:$0xf]
    %v1219 = vld [vmem:[%s1212 + $0x24] sm:$0xff]
    %v1220 = vld [vmem:[%s1212 + $0x2c] sm:$0xf]
    %v1221 = vld [vmem:[%s1212 + $0x30] sm:$0xff]
    %v1222 = vld [vmem:[%s1212 + $0x38] sm:$0xf]
    %v1223 = vld [vmem:[%s1212 + $0x3c] sm:$0xff]
    %v1224 = vld [vmem:[%s1212 + $0x44] sm:$0xf]
    %v1225 = vld [vmem:[%s1212 + $0x48] sm:$0xff]
    %v1226 = vld [vmem:[%s1212 + $0x50] sm:$0xf]
    %v1227 = vld [vmem:[%s1212 + $0x54] sm:$0xff]
    %v1228 = vld [vmem:[%s1212 + $0x5c] sm:$0xf]
    %s1229 = scalar_lea.vmem [#allocation7], 192
    %v1230 = vld [vmem:[%s1229] sm:$0xf]
    %v1231 = vld [vmem:[%s1229 + $0x4] sm:$0xf]
    %v1232 = vld [vmem:[%s1229 + $0x8] sm:$0xf]
    %v1233 = vld [vmem:[%s1229 + $0xc] sm:$0xf]
    %v1234 = vld [vmem:[%s1229 + $0x10] sm:$0xf]
    %v1235 = vld [vmem:[%s1229 + $0x14] sm:$0xf]
    %v1236 = vld [vmem:[%s1229 + $0x18] sm:$0xf]
    %v1237 = vld [vmem:[%s1229 + $0x1c] sm:$0xf]
    %v1238 = vld [vmem:[%s1229 + $0x20] sm:$0xf]
    %v1239 = vld [vmem:[%s1229 + $0x24] sm:$0xf]
    %v1240 = vld [vmem:[%s1229 + $0x28] sm:$0xf]
    %v1241 = vld [vmem:[%s1229 + $0x2c] sm:$0xf]
    %v1242 = vld [vmem:[%s1229 + $0x30] sm:$0xf]
    %v1243 = vld [vmem:[%s1229 + $0x34] sm:$0xf]
    %v1244 = vld [vmem:[%s1229 + $0x38] sm:$0xf]
    %v1245 = vld [vmem:[%s1229 + $0x3c] sm:$0xf]
    %v1246 = vld [vmem:[%s1229 + $0x40] sm:$0xf]
    %v1247 = vld [vmem:[%s1229 + $0x44] sm:$0xf]
    %v1248 = vld [vmem:[%s1229 + $0x48] sm:$0xf]
    %v1249 = vld [vmem:[%s1229 + $0x4c] sm:$0xf]
    %v1250 = vld [vmem:[%s1229 + $0x50] sm:$0xf]
    %v1251 = vld [vmem:[%s1229 + $0x54] sm:$0xf]
    %v1252 = vld [vmem:[%s1229 + $0x58] sm:$0xf]
    %v1253 = vld [vmem:[%s1229 + $0x5c] sm:$0xf]
    %v1254 = vld [vmem:[%s1229 + $0x60] sm:$0xf]
    %v1255 = vld [vmem:[%s1229 + $0x64] sm:$0xf]
    %v1256 = vld [vmem:[%s1229 + $0x68] sm:$0xf]
    %v1257 = vld [vmem:[%s1229 + $0x6c] sm:$0xf]
    %v1258 = vld [vmem:[%s1229 + $0x70] sm:$0xf]
    %v1259 = vld [vmem:[%s1229 + $0x74] sm:$0xf]
    %v1260 = vld [vmem:[%s1229 + $0x78] sm:$0xf]
    %v1261 = vld [vmem:[%s1229 + $0x7c] sm:$0xf]
    %v1262 = vld [vmem:[%s1229 + $0x80] sm:$0xf]
    %v1263 = vld [vmem:[%s1229 + $0x84] sm:$0xf]
    %v1264 = vld [vmem:[%s1229 + $0x88] sm:$0xf]
    %v1265 = vld [vmem:[%s1229 + $0x8c] sm:$0xf]
    %v1266 = vld [vmem:[%s1229 + $0x90] sm:$0xf]
    %v1267 = vld [vmem:[%s1229 + $0x94] sm:$0xf]
    %v1268 = vld [vmem:[%s1229 + $0x98] sm:$0xf]
    %v1269 = vld [vmem:[%s1229 + $0x9c] sm:$0xf]
    %v1270 = vld [vmem:[%s1229 + $0xa0] sm:$0xf]
    %v1271 = vld [vmem:[%s1229 + $0xa4] sm:$0xf]
    %v1272 = vld [vmem:[%s1229 + $0xa8] sm:$0xf]
    %v1273 = vld [vmem:[%s1229 + $0xac] sm:$0xf]
    %v1274 = vld [vmem:[%s1229 + $0xb0] sm:$0xf]
    %v1275 = vld [vmem:[%s1229 + $0xb4] sm:$0xf]
    %v1276 = vld [vmem:[%s1229 + $0xb8] sm:$0xf]
    %v1277 = vld [vmem:[%s1229 + $0xbc] sm:$0xf]
    %v1294 = vunpack.c.l.b16 %v1213
    %v1295 = vunpack.c.h.b16 %v1213
    %v1296 = vunpack.c.l.b16 %v1214
    %v1297 = vunpack.c.l.b16 %v1215
    %v1298 = vunpack.c.h.b16 %v1215
    %v1299 = vunpack.c.l.b16 %v1216
    %v1300 = vunpack.c.l.b16 %v1217
    %v1301 = vunpack.c.h.b16 %v1217
    %v1302 = vunpack.c.l.b16 %v1218
    %v1303 = vunpack.c.l.b16 %v1219
    %v1304 = vunpack.c.h.b16 %v1219
    %v1305 = vunpack.c.l.b16 %v1220
    %v1306 = vunpack.c.l.b16 %v1221
    %v1307 = vunpack.c.h.b16 %v1221
    %v1308 = vunpack.c.l.b16 %v1222
    %v1309 = vunpack.c.l.b16 %v1223
    %v1310 = vunpack.c.h.b16 %v1223
    %v1311 = vunpack.c.l.b16 %v1224
    %v1312 = vunpack.c.l.b16 %v1225
    %v1313 = vunpack.c.h.b16 %v1225
    %v1314 = vunpack.c.l.b16 %v1226
    %v1315 = vunpack.c.l.b16 %v1227
    %v1316 = vunpack.c.h.b16 %v1227
    %v1317 = vunpack.c.l.b16 %v1228
    %v1318 = vpack.c.b16 %v1297, %v1294
    %v1319 = vpack.c.b16 %v1298, %v1295
    %v1320 = vpack.c.b16 %v1299, %v1296
    %v1321 = vpack.c.b16 %v1303, %v1300
    %v1322 = vpack.c.b16 %v1304, %v1301
    %v1323 = vpack.c.b16 %v1305, %v1302
    %v1324 = vpack.c.b16 %v1309, %v1306
    %v1325 = vpack.c.b16 %v1310, %v1307
    %v1326 = vpack.c.b16 %v1311, %v1308
    %v1327 = vpack.c.b16 %v1315, %v1312
    %v1328 = vpack.c.b16 %v1316, %v1313
    %v1329 = vpack.c.b16 %v1317, %v1314
    %v1390 = vunpack.c.l.b16 %v1230
    %v1391 = vunpack.c.l.b16 %v1231
    %v1392 = vunpack.c.l.b16 %v1232
    %v1393 = vunpack.c.l.b16 %v1233
    %v1394 = vunpack.c.l.b16 %v1234
    %v1395 = vunpack.c.l.b16 %v1235
    %v1396 = vunpack.c.l.b16 %v1236
    %v1397 = vunpack.c.l.b16 %v1237
    %v1398 = vunpack.c.l.b16 %v1238
    %v1399 = vunpack.c.l.b16 %v1239
    %v1400 = vunpack.c.l.b16 %v1240
    %v1401 = vunpack.c.l.b16 %v1241
    %v1402 = vunpack.c.l.b16 %v1242
    %v1403 = vunpack.c.l.b16 %v1243
    %v1404 = vunpack.c.l.b16 %v1244
    %v1405 = vunpack.c.l.b16 %v1245
    %v1406 = vunpack.c.l.b16 %v1246
    %v1407 = vunpack.c.l.b16 %v1247
    %v1408 = vunpack.c.l.b16 %v1248
    %v1409 = vunpack.c.l.b16 %v1249
    %v1410 = vunpack.c.l.b16 %v1250
    %v1411 = vunpack.c.l.b16 %v1251
    %v1412 = vunpack.c.l.b16 %v1252
    %v1413 = vunpack.c.l.b16 %v1253
    %v1414 = vunpack.c.l.b16 %v1254
    %v1415 = vunpack.c.l.b16 %v1255
    %v1416 = vunpack.c.l.b16 %v1256
    %v1417 = vunpack.c.l.b16 %v1257
    %v1418 = vunpack.c.l.b16 %v1258
    %v1419 = vunpack.c.l.b16 %v1259
    %v1420 = vunpack.c.l.b16 %v1260
    %v1421 = vunpack.c.l.b16 %v1261
    %v1422 = vunpack.c.l.b16 %v1262
    %v1423 = vunpack.c.l.b16 %v1263
    %v1424 = vunpack.c.l.b16 %v1264
    %v1425 = vunpack.c.l.b16 %v1265
    %v1426 = vunpack.c.l.b16 %v1266
    %v1427 = vunpack.c.l.b16 %v1267
    %v1428 = vunpack.c.l.b16 %v1268
    %v1429 = vunpack.c.l.b16 %v1269
    %v1430 = vunpack.c.l.b16 %v1270
    %v1431 = vunpack.c.l.b16 %v1271
    %v1432 = vunpack.c.l.b16 %v1272
    %v1433 = vunpack.c.l.b16 %v1273
    %v1434 = vunpack.c.l.b16 %v1274
    %v1435 = vunpack.c.l.b16 %v1275
    %v1436 = vunpack.c.l.b16 %v1276
    %v1437 = vunpack.c.l.b16 %v1277
    %v1438 = vpack.c.b16 %v1391, %v1390
    %v1439 = vpack.c.b16 %v1393, %v1392
    %v1440 = vpack.c.b16 %v1395, %v1394
    %v1441 = vpack.c.b16 %v1397, %v1396
    %v1442 = vpack.c.b16 %v1399, %v1398
    %v1443 = vpack.c.b16 %v1401, %v1400
    %v1444 = vpack.c.b16 %v1403, %v1402
    %v1445 = vpack.c.b16 %v1405, %v1404
    %v1446 = vpack.c.b16 %v1407, %v1406
    %v1447 = vpack.c.b16 %v1409, %v1408
    %v1448 = vpack.c.b16 %v1411, %v1410
    %v1449 = vpack.c.b16 %v1413, %v1412
    %v1450 = vpack.c.b16 %v1415, %v1414
    %v1451 = vpack.c.b16 %v1417, %v1416
    %v1452 = vpack.c.b16 %v1419, %v1418
    %v1453 = vpack.c.b16 %v1421, %v1420
    %v1454 = vpack.c.b16 %v1423, %v1422
    %v1455 = vpack.c.b16 %v1425, %v1424
    %v1456 = vpack.c.b16 %v1427, %v1426
    %v1457 = vpack.c.b16 %v1429, %v1428
    %v1458 = vpack.c.b16 %v1431, %v1430
    %v1459 = vpack.c.b16 %v1433, %v1432
    %v1460 = vpack.c.b16 %v1435, %v1434
    %v1461 = vpack.c.b16 %v1437, %v1436
    %1486 = vmatprep.subr.bf16.mxu0 0
    %1487 = vmatpush1.bf16.msra.mxu0 %v1445
    %1488 = vmatprep.subr.bf16.mxu0 0
    %1489 = vmatpush1.bf16.msra.mxu0 %v1444
    %1490 = vmatprep.subr.bf16.mxu0 0
    %1491 = vmatpush1.bf16.msra.mxu0 %v1443
    %1492 = vmatprep.subr.bf16.mxu0 0
    %1493 = vmatpush1.bf16.msra.mxu0 %v1442
    %1494 = vmatprep.subr.bf16.mxu0 0
    %1495 = vmatpush1.bf16.msra.mxu0 %v1441
    %1496 = vmatprep.subr.bf16.mxu0 0
    %1497 = vmatpush1.bf16.msra.mxu0 %v1440
    %1498 = vmatprep.subr.bf16.mxu0 0
    %1499 = vmatpush1.bf16.msra.mxu0 %v1439
    %1500 = vmatprep.subr.bf16.mxu0 0
    %1501 = vmatpush1.bf16.msra.mxu0 %v1438
    %1502 = vmatprep.subr.bf16.mxu0 0
    %1503 = vmatpush2.bf16.msra.mxu0 %v1453
    %1504 = vmatprep.subr.bf16.mxu0 0
    %1505 = vmatpush2.bf16.msra.mxu0 %v1452
    %1506 = vmatprep.subr.bf16.mxu0 0
    %1507 = vmatpush2.bf16.msra.mxu0 %v1451
    %1508 = vmatprep.subr.bf16.mxu0 0
    %1509 = vmatpush2.bf16.msra.mxu0 %v1450
    %1510 = vmatprep.subr.bf16.mxu0 0
    %1511 = vmatpush2.bf16.msra.mxu0 %v1449
    %1512 = vmatprep.subr.bf16.mxu0 0
    %1513 = vmatpush2.bf16.msra.mxu0 %v1448
    %1514 = vmatprep.subr.bf16.mxu0 0
    %1515 = vmatpush2.bf16.msra.mxu0 %v1447
    %1516 = vmatprep.subr.bf16.mxu0 0
    %1517 = vmatpush2.bf16.msra.mxu0 %v1446
    %1518 = vmatprep.mubr.bf16.mxu0 %v1319
    %1519 = vmatmul.mubr.bf16.gmra.mxu0 %v1318
    %v1520 = vpop.f32.mrf.mxu0
    %v1521 = vadd.f32 0.0, %v1520
    %v1522 = vpop.f32.mrf.mxu0
    %v1523 = vpop.f32.mrf.mxu0
    %v1524 = vadd.f32 0.0, %v1523
    %v1525 = vpop.f32.mrf.mxu0
    %1526 = vmatprep.mubr.bf16.mxu0 %v1322
    %1527 = vmatmul.mubr.bf16.gmra.mxu0 %v1321
    %v1528 = vpop.f32.mrf.mxu0
    %v1529 = vadd.f32 0.0, %v1528
    %v1530 = vpop.f32.mrf.mxu0
    %v1531 = vpop.f32.mrf.mxu0
    %v1532 = vadd.f32 0.0, %v1531
    %v1533 = vpop.f32.mrf.mxu0
    %1534 = vmatprep.mubr.bf16.mxu0 %v1325
    %1535 = vmatmul.mubr.bf16.gmra.mxu0 %v1324
    %v1536 = vpop.f32.mrf.mxu0
    %v1537 = vadd.f32 0.0, %v1536
    %v1538 = vpop.f32.mrf.mxu0
    %v1539 = vpop.f32.mrf.mxu0
    %v1540 = vadd.f32 0.0, %v1539
    %v1541 = vpop.f32.mrf.mxu0
    %1542 = vmatprep.mubr.bf16.mxu0 %v1328
    %1543 = vmatmul.mubr.bf16.gmra.mxu0 %v1327
    %v1544 = vpop.f32.mrf.mxu0
    %v1545 = vadd.f32 0.0, %v1544
    %v1546 = vpop.f32.mrf.mxu0
    %v1547 = vpop.f32.mrf.mxu0
    %v1548 = vadd.f32 0.0, %v1547
    %v1549 = vpop.f32.mrf.mxu0
    %1550 = vdwg.mxu0
    %1551 = vmatprep.subr.bf16.mxu0 0
    %1552 = vmatpush1.bf16.msra.mxu0 %v1461
    %1553 = vmatprep.subr.bf16.mxu0 0
    %1554 = vmatpush1.bf16.msra.mxu0 %v1460
    %1555 = vmatprep.subr.bf16.mxu0 0
    %1556 = vmatpush1.bf16.msra.mxu0 %v1459
    %1557 = vmatprep.subr.bf16.mxu0 0
    %1558 = vmatpush1.bf16.msra.mxu0 %v1458
    %1559 = vmatprep.subr.bf16.mxu0 0
    %1560 = vmatpush1.bf16.msra.mxu0 %v1457
    %1561 = vmatprep.subr.bf16.mxu0 0
    %1562 = vmatpush1.bf16.msra.mxu0 %v1456
    %1563 = vmatprep.subr.bf16.mxu0 0
    %1564 = vmatpush1.bf16.msra.mxu0 %v1455
    %1565 = vmatprep.subr.bf16.mxu0 0
    %1566 = vmatpush1.bf16.msra.mxu0 %v1454
    %1567 = vmatprep.subr.bf16.mxu0 0
    %1568 = vmatpush2.bf16.msra.mxu0 0
    %1569 = vmatprep.subr.bf16.mxu0 0
    %1570 = vmatpush2.bf16.msra.mxu0 0
    %1571 = vmatprep.subr.bf16.mxu0 0
    %1572 = vmatpush2.bf16.msra.mxu0 0
    %1573 = vmatprep.subr.bf16.mxu0 0
    %1574 = vmatpush2.bf16.msra.mxu0 0
    %1575 = vmatprep.subr.bf16.mxu0 0
    %1576 = vmatpush2.bf16.msra.mxu0 0
    %1577 = vmatprep.subr.bf16.mxu0 0
    %1578 = vmatpush2.bf16.msra.mxu0 0
    %1579 = vmatprep.subr.bf16.mxu0 0
    %1580 = vmatpush2.bf16.msra.mxu0 0
    %1581 = vmatprep.subr.bf16.mxu0 0
    %1582 = vmatpush2.bf16.msra.mxu0 0
    %1583 = vmatprep.mubr.bf16.mxu0 0
    %1584 = vmatmul.mubr.bf16.gmra.mxu0 %v1320
    %v1585 = vpop.f32.mrf.mxu0
    %v1586 = vadd.f32 %v1521, %v1585
    %v1587 = vpop.f32.mrf.mxu0
    %v1588 = vpop.f32.mrf.mxu0
    %v1589 = vadd.f32 %v1524, %v1588
    %v1590 = vpop.f32.mrf.mxu0
    %1591 = vmatprep.mubr.bf16.mxu0 0
    %1592 = vmatmul.mubr.bf16.gmra.mxu0 %v1323
    %v1593 = vpop.f32.mrf.mxu0
    %v1594 = vadd.f32 %v1529, %v1593
    %v1595 = vpop.f32.mrf.mxu0
    %v1596 = vpop.f32.mrf.mxu0
    %v1597 = vadd.f32 %v1532, %v1596
    %v1598 = vpop.f32.mrf.mxu0
    %1599 = vmatprep.mubr.bf16.mxu0 0
    %1600 = vmatmul.mubr.bf16.gmra.mxu0 %v1326
    %v1601 = vpop.f32.mrf.mxu0
    %v1602 = vadd.f32 %v1537, %v1601
    %v1603 = vpop.f32.mrf.mxu0
    %v1604 = vpop.f32.mrf.mxu0
    %v1605 = vadd.f32 %v1540, %v1604
    %v1606 = vpop.f32.mrf.mxu0
    %1607 = vmatprep.mubr.bf16.mxu0 0
    %1608 = vmatmul.mubr.bf16.gmra.mxu0 %v1329
    %v1609 = vpop.f32.mrf.mxu0
    %v1610 = vadd.f32 %v1545, %v1609
    %v1611 = vpop.f32.mrf.mxu0
    %v1612 = vpop.f32.mrf.mxu0
    %v1613 = vadd.f32 %v1548, %v1612
    %v1614 = vpop.f32.mrf.mxu0
    %1615 = vdwg.mxu0
    %v1632 = vunpack.c.l.b16 %v1148
    %v1633 = vunpack.c.h.b16 %v1148
    %v1634 = vunpack.c.l.b16 %v1149
    %v1635 = vunpack.c.l.b16 %v1150
    %v1636 = vunpack.c.h.b16 %v1150
    %v1637 = vunpack.c.l.b16 %v1151
    %v1638 = vunpack.c.l.b16 %v1152
    %v1639 = vunpack.c.h.b16 %v1152
    %v1640 = vunpack.c.l.b16 %v1153
    %v1641 = vunpack.c.l.b16 %v1154
    %v1642 = vunpack.c.h.b16 %v1154
    %v1643 = vunpack.c.l.b16 %v1155
    %v1644 = vunpack.c.l.b16 %v1156
    %v1645 = vunpack.c.h.b16 %v1156
    %v1646 = vunpack.c.l.b16 %v1157
    %v1647 = vunpack.c.l.b16 %v1158
    %v1648 = vunpack.c.h.b16 %v1158
    %v1649 = vunpack.c.l.b16 %v1159
    %v1650 = vunpack.c.l.b16 %v1160
    %v1651 = vunpack.c.h.b16 %v1160
    %v1652 = vunpack.c.l.b16 %v1161
    %v1653 = vunpack.c.l.b16 %v1162
    %v1654 = vunpack.c.h.b16 %v1162
    %v1655 = vunpack.c.l.b16 %v1163
    %v1656 = vpack.c.b16 %v1635, %v1632
    %v1657 = vpack.c.b16 %v1636, %v1633
    %v1658 = vpack.c.b16 %v1637, %v1634
    %v1659 = vpack.c.b16 %v1641, %v1638
    %v1660 = vpack.c.b16 %v1642, %v1639
    %v1661 = vpack.c.b16 %v1643, %v1640
    %v1662 = vpack.c.b16 %v1647, %v1644
    %v1663 = vpack.c.b16 %v1648, %v1645
    %v1664 = vpack.c.b16 %v1649, %v1646
    %v1665 = vpack.c.b16 %v1653, %v1650
    %v1666 = vpack.c.b16 %v1654, %v1651
    %v1667 = vpack.c.b16 %v1655, %v1652
    %v1728 = vunpack.c.l.b16 %v1164
    %v1729 = vunpack.c.l.b16 %v1165
    %v1730 = vunpack.c.l.b16 %v1166
    %v1731 = vunpack.c.l.b16 %v1167
    %v1732 = vunpack.c.l.b16 %v1168
    %v1733 = vunpack.c.l.b16 %v1169
    %v1734 = vunpack.c.l.b16 %v1170
    %v1735 = vunpack.c.l.b16 %v1171
    %v1736 = vunpack.c.l.b16 %v1172
    %v1737 = vunpack.c.l.b16 %v1173
    %v1738 = vunpack.c.l.b16 %v1174
    %v1739 = vunpack.c.l.b16 %v1175
    %v1740 = vunpack.c.l.b16 %v1176
    %v1741 = vunpack.c.l.b16 %v1177
    %v1742 = vunpack.c.l.b16 %v1178
    %v1743 = vunpack.c.l.b16 %v1179
    %v1744 = vunpack.c.l.b16 %v1180
    %v1745 = vunpack.c.l.b16 %v1181
    %v1746 = vunpack.c.l.b16 %v1182
    %v1747 = vunpack.c.l.b16 %v1183
    %v1748 = vunpack.c.l.b16 %v1184
    %v1749 = vunpack.c.l.b16 %v1185
    %v1750 = vunpack.c.l.b16 %v1186
    %v1751 = vunpack.c.l.b16 %v1187
    %v1752 = vunpack.c.l.b16 %v1188
    %v1753 = vunpack.c.l.b16 %v1189
    %v1754 = vunpack.c.l.b16 %v1190
    %v1755 = vunpack.c.l.b16 %v1191
    %v1756 = vunpack.c.l.b16 %v1192
    %v1757 = vunpack.c.l.b16 %v1193
    %v1758 = vunpack.c.l.b16 %v1194
    %v1759 = vunpack.c.l.b16 %v1195
    %v1760 = vunpack.c.l.b16 %v1196
    %v1761 = vunpack.c.l.b16 %v1197
    %v1762 = vunpack.c.l.b16 %v1198
    %v1763 = vunpack.c.l.b16 %v1199
    %v1764 = vunpack.c.l.b16 %v1200
    %v1765 = vunpack.c.l.b16 %v1201
    %v1766 = vunpack.c.l.b16 %v1202
    %v1767 = vunpack.c.l.b16 %v1203
    %v1768 = vunpack.c.l.b16 %v1204
    %v1769 = vunpack.c.l.b16 %v1205
    %v1770 = vunpack.c.l.b16 %v1206
    %v1771 = vunpack.c.l.b16 %v1207
    %v1772 = vunpack.c.l.b16 %v1208
    %v1773 = vunpack.c.l.b16 %v1209
    %v1774 = vunpack.c.l.b16 %v1210
    %v1775 = vunpack.c.l.b16 %v1211
    %v1776 = vpack.c.b16 %v1729, %v1728
    %v1777 = vpack.c.b16 %v1731, %v1730
    %v1778 = vpack.c.b16 %v1733, %v1732
    %v1779 = vpack.c.b16 %v1735, %v1734
    %v1780 = vpack.c.b16 %v1737, %v1736
    %v1781 = vpack.c.b16 %v1739, %v1738
    %v1782 = vpack.c.b16 %v1741, %v1740
    %v1783 = vpack.c.b16 %v1743, %v1742
    %v1784 = vpack.c.b16 %v1745, %v1744
    %v1785 = vpack.c.b16 %v1747, %v1746
    %v1786 = vpack.c.b16 %v1749, %v1748
    %v1787 = vpack.c.b16 %v1751, %v1750
    %v1788 = vpack.c.b16 %v1753, %v1752
    %v1789 = vpack.c.b16 %v1755, %v1754
    %v1790 = vpack.c.b16 %v1757, %v1756
    %v1791 = vpack.c.b16 %v1759, %v1758
    %v1792 = vpack.c.b16 %v1761, %v1760
    %v1793 = vpack.c.b16 %v1763, %v1762
    %v1794 = vpack.c.b16 %v1765, %v1764
    %v1795 = vpack.c.b16 %v1767, %v1766
    %v1796 = vpack.c.b16 %v1769, %v1768
    %v1797 = vpack.c.b16 %v1771, %v1770
    %v1798 = vpack.c.b16 %v1773, %v1772
    %v1799 = vpack.c.b16 %v1775, %v1774
    %1824 = vmatprep.subr.bf16.mxu0 0
    %1825 = vmatpush1.bf16.msra.mxu0 %v1783
    %1826 = vmatprep.subr.bf16.mxu0 0
    %1827 = vmatpush1.bf16.msra.mxu0 %v1782
    %1828 = vmatprep.subr.bf16.mxu0 0
    %1829 = vmatpush1.bf16.msra.mxu0 %v1781
    %1830 = vmatprep.subr.bf16.mxu0 0
    %1831 = vmatpush1.bf16.msra.mxu0 %v1780
    %1832 = vmatprep.subr.bf16.mxu0 0
    %1833 = vmatpush1.bf16.msra.mxu0 %v1779
    %1834 = vmatprep.subr.bf16.mxu0 0
    %1835 = vmatpush1.bf16.msra.mxu0 %v1778
    %1836 = vmatprep.subr.bf16.mxu0 0
    %1837 = vmatpush1.bf16.msra.mxu0 %v1777
    %1838 = vmatprep.subr.bf16.mxu0 0
    %1839 = vmatpush1.bf16.msra.mxu0 %v1776
    %1840 = vmatprep.subr.bf16.mxu0 0
    %1841 = vmatpush2.bf16.msra.mxu0 %v1791
    %1842 = vmatprep.subr.bf16.mxu0 0
    %1843 = vmatpush2.bf16.msra.mxu0 %v1790
    %1844 = vmatprep.subr.bf16.mxu0 0
    %1845 = vmatpush2.bf16.msra.mxu0 %v1789
    %1846 = vmatprep.subr.bf16.mxu0 0
    %1847 = vmatpush2.bf16.msra.mxu0 %v1788
    %1848 = vmatprep.subr.bf16.mxu0 0
    %1849 = vmatpush2.bf16.msra.mxu0 %v1787
    %1850 = vmatprep.subr.bf16.mxu0 0
    %1851 = vmatpush2.bf16.msra.mxu0 %v1786
    %1852 = vmatprep.subr.bf16.mxu0 0
    %1853 = vmatpush2.bf16.msra.mxu0 %v1785
    %1854 = vmatprep.subr.bf16.mxu0 0
    %1855 = vmatpush2.bf16.msra.mxu0 %v1784
    %1856 = vmatprep.mubr.bf16.mxu0 %v1657
    %1857 = vmatmul.mubr.bf16.gmra.mxu0 %v1656
    %v1858 = vpop.f32.mrf.mxu0
    %v1859 = vadd.f32 %v1586, %v1858
    %v1860 = vpop.f32.mrf.mxu0
    %v1861 = vpop.f32.mrf.mxu0
    %v1862 = vadd.f32 %v1589, %v1861
    %v1863 = vpop.f32.mrf.mxu0
    %1864 = vmatprep.mubr.bf16.mxu0 %v1660
    %1865 = vmatmul.mubr.bf16.gmra.mxu0 %v1659
    %v1866 = vpop.f32.mrf.mxu0
    %v1867 = vadd.f32 %v1594, %v1866
    %v1868 = vpop.f32.mrf.mxu0
    %v1869 = vpop.f32.mrf.mxu0
    %v1870 = vadd.f32 %v1597, %v1869
    %v1871 = vpop.f32.mrf.mxu0
    %1872 = vmatprep.mubr.bf16.mxu0 %v1663
    %1873 = vmatmul.mubr.bf16.gmra.mxu0 %v1662
    %v1874 = vpop.f32.mrf.mxu0
    %v1875 = vadd.f32 %v1602, %v1874
    %v1876 = vpop.f32.mrf.mxu0
    %v1877 = vpop.f32.mrf.mxu0
    %v1878 = vadd.f32 %v1605, %v1877
    %v1879 = vpop.f32.mrf.mxu0
    %1880 = vmatprep.mubr.bf16.mxu0 %v1666
    %1881 = vmatmul.mubr.bf16.gmra.mxu0 %v1665
    %v1882 = vpop.f32.mrf.mxu0
    %v1883 = vadd.f32 %v1610, %v1882
    %v1884 = vpop.f32.mrf.mxu0
    %v1885 = vpop.f32.mrf.mxu0
    %v1886 = vadd.f32 %v1613, %v1885
    %v1887 = vpop.f32.mrf.mxu0
    %1888 = vdwg.mxu0
    %1889 = vmatprep.subr.bf16.mxu0 0
    %1890 = vmatpush1.bf16.msra.mxu0 %v1799
    %1891 = vmatprep.subr.bf16.mxu0 0
    %1892 = vmatpush1.bf16.msra.mxu0 %v1798
    %1893 = vmatprep.subr.bf16.mxu0 0
    %1894 = vmatpush1.bf16.msra.mxu0 %v1797
    %1895 = vmatprep.subr.bf16.mxu0 0
    %1896 = vmatpush1.bf16.msra.mxu0 %v1796
    %1897 = vmatprep.subr.bf16.mxu0 0
    %1898 = vmatpush1.bf16.msra.mxu0 %v1795
    %1899 = vmatprep.subr.bf16.mxu0 0
    %1900 = vmatpush1.bf16.msra.mxu0 %v1794
    %1901 = vmatprep.subr.bf16.mxu0 0
    %1902 = vmatpush1.bf16.msra.mxu0 %v1793
    %1903 = vmatprep.subr.bf16.mxu0 0
    %1904 = vmatpush1.bf16.msra.mxu0 %v1792
    %1905 = vmatprep.subr.bf16.mxu0 0
    %1906 = vmatpush2.bf16.msra.mxu0 0
    %1907 = vmatprep.subr.bf16.mxu0 0
    %1908 = vmatpush2.bf16.msra.mxu0 0
    %1909 = vmatprep.subr.bf16.mxu0 0
    %1910 = vmatpush2.bf16.msra.mxu0 0
    %1911 = vmatprep.subr.bf16.mxu0 0
    %1912 = vmatpush2.bf16.msra.mxu0 0
    %1913 = vmatprep.subr.bf16.mxu0 0
    %1914 = vmatpush2.bf16.msra.mxu0 0
    %1915 = vmatprep.subr.bf16.mxu0 0
    %1916 = vmatpush2.bf16.msra.mxu0 0
    %1917 = vmatprep.subr.bf16.mxu0 0
    %1918 = vmatpush2.bf16.msra.mxu0 0
    %1919 = vmatprep.subr.bf16.mxu0 0
    %1920 = vmatpush2.bf16.msra.mxu0 0
    %1921 = vmatprep.mubr.bf16.mxu0 0
    %1922 = vmatmul.mubr.bf16.gmra.mxu0 %v1658
    %v1923 = vpop.f32.mrf.mxu0
    %v1924 = vadd.f32 %v1859, %v1923
    %v1925 = vpop.f32.mrf.mxu0
    %v1926 = vpop.f32.mrf.mxu0
    %v1927 = vadd.f32 %v1862, %v1926
    %v1928 = vpop.f32.mrf.mxu0
    %1929 = vmatprep.mubr.bf16.mxu0 0
    %1930 = vmatmul.mubr.bf16.gmra.mxu0 %v1661
    %v1931 = vpop.f32.mrf.mxu0
    %v1932 = vadd.f32 %v1867, %v1931
    %v1933 = vpop.f32.mrf.mxu0
    %v1934 = vpop.f32.mrf.mxu0
    %v1935 = vadd.f32 %v1870, %v1934
    %v1936 = vpop.f32.mrf.mxu0
    %1937 = vmatprep.mubr.bf16.mxu0 0
    %1938 = vmatmul.mubr.bf16.gmra.mxu0 %v1664
    %v1939 = vpop.f32.mrf.mxu0
    %v1940 = vadd.f32 %v1875, %v1939
    %v1941 = vpop.f32.mrf.mxu0
    %v1942 = vpop.f32.mrf.mxu0
    %v1943 = vadd.f32 %v1878, %v1942
    %v1944 = vpop.f32.mrf.mxu0
    %1945 = vmatprep.mubr.bf16.mxu0 0
    %1946 = vmatmul.mubr.bf16.gmra.mxu0 %v1667
    %v1947 = vpop.f32.mrf.mxu0
    %v1948 = vadd.f32 %v1883, %v1947
    %v1949 = vpop.f32.mrf.mxu0
    %v1950 = vpop.f32.mrf.mxu0
    %v1951 = vadd.f32 %v1886, %v1950
    %v1952 = vpop.f32.mrf.mxu0
    %1953 = vdwg.mxu0
    %s1954 = scalar_lea.vmem [#allocation3], 24
    %v1955 = vld [vmem:[%s1954] sm:$0xff]
    %v1956 = vld [vmem:[%s1954 + $0x8] sm:$0xf]
    %v1957 = vld [vmem:[%s1954 + $0xc] sm:$0xff]
    %v1958 = vld [vmem:[%s1954 + $0x14] sm:$0xf]
    %v1959 = vld [vmem:[%s1954 + $0x18] sm:$0xff]
    %v1960 = vld [vmem:[%s1954 + $0x20] sm:$0xf]
    %v1961 = vld [vmem:[%s1954 + $0x24] sm:$0xff]
    %v1962 = vld [vmem:[%s1954 + $0x2c] sm:$0xf]
    %v1963 = vld [vmem:[%s1954 + $0x30] sm:$0xff]
    %v1964 = vld [vmem:[%s1954 + $0x38] sm:$0xf]
    %v1965 = vld [vmem:[%s1954 + $0x3c] sm:$0xff]
    %v1966 = vld [vmem:[%s1954 + $0x44] sm:$0xf]
    %v1967 = vld [vmem:[%s1954 + $0x48] sm:$0xff]
    %v1968 = vld [vmem:[%s1954 + $0x50] sm:$0xf]
    %v1969 = vld [vmem:[%s1954 + $0x54] sm:$0xff]
    %v1970 = vld [vmem:[%s1954 + $0x5c] sm:$0xf]
    %s1971 = scalar_lea.vmem [#allocation7], 384
    %v1972 = vld [vmem:[%s1971] sm:$0xf]
    %v1973 = vld [vmem:[%s1971 + $0x4] sm:$0xf]
    %v1974 = vld [vmem:[%s1971 + $0x8] sm:$0xf]
    %v1975 = vld [vmem:[%s1971 + $0xc] sm:$0xf]
    %v1976 = vld [vmem:[%s1971 + $0x10] sm:$0xf]
    %v1977 = vld [vmem:[%s1971 + $0x14] sm:$0xf]
    %v1978 = vld [vmem:[%s1971 + $0x18] sm:$0xf]
    %v1979 = vld [vmem:[%s1971 + $0x1c] sm:$0xf]
    %v1980 = vld [vmem:[%s1971 + $0x20] sm:$0xf]
    %v1981 = vld [vmem:[%s1971 + $0x24] sm:$0xf]
    %v1982 = vld [vmem:[%s1971 + $0x28] sm:$0xf]
    %v1983 = vld [vmem:[%s1971 + $0x2c] sm:$0xf]
    %v1984 = vld [vmem:[%s1971 + $0x30] sm:$0xf]
    %v1985 = vld [vmem:[%s1971 + $0x34] sm:$0xf]
    %v1986 = vld [vmem:[%s1971 + $0x38] sm:$0xf]
    %v1987 = vld [vmem:[%s1971 + $0x3c] sm:$0xf]
    %v1988 = vld [vmem:[%s1971 + $0x40] sm:$0xf]
    %v1989 = vld [vmem:[%s1971 + $0x44] sm:$0xf]
    %v1990 = vld [vmem:[%s1971 + $0x48] sm:$0xf]
    %v1991 = vld [vmem:[%s1971 + $0x4c] sm:$0xf]
    %v1992 = vld [vmem:[%s1971 + $0x50] sm:$0xf]
    %v1993 = vld [vmem:[%s1971 + $0x54] sm:$0xf]
    %v1994 = vld [vmem:[%s1971 + $0x58] sm:$0xf]
    %v1995 = vld [vmem:[%s1971 + $0x5c] sm:$0xf]
    %v1996 = vld [vmem:[%s1971 + $0x60] sm:$0xf]
    %v1997 = vld [vmem:[%s1971 + $0x64] sm:$0xf]
    %v1998 = vld [vmem:[%s1971 + $0x68] sm:$0xf]
    %v1999 = vld [vmem:[%s1971 + $0x6c] sm:$0xf]
    %v2000 = vld [vmem:[%s1971 + $0x70] sm:$0xf]
    %v2001 = vld [vmem:[%s1971 + $0x74] sm:$0xf]
    %v2002 = vld [vmem:[%s1971 + $0x78] sm:$0xf]
    %v2003 = vld [vmem:[%s1971 + $0x7c] sm:$0xf]
    %v2004 = vld [vmem:[%s1971 + $0x80] sm:$0xf]
    %v2005 = vld [vmem:[%s1971 + $0x84] sm:$0xf]
    %v2006 = vld [vmem:[%s1971 + $0x88] sm:$0xf]
    %v2007 = vld [vmem:[%s1971 + $0x8c] sm:$0xf]
    %v2008 = vld [vmem:[%s1971 + $0x90] sm:$0xf]
    %v2009 = vld [vmem:[%s1971 + $0x94] sm:$0xf]
    %v2010 = vld [vmem:[%s1971 + $0x98] sm:$0xf]
    %v2011 = vld [vmem:[%s1971 + $0x9c] sm:$0xf]
    %v2012 = vld [vmem:[%s1971 + $0xa0] sm:$0xf]
    %v2013 = vld [vmem:[%s1971 + $0xa4] sm:$0xf]
    %v2014 = vld [vmem:[%s1971 + $0xa8] sm:$0xf]
    %v2015 = vld [vmem:[%s1971 + $0xac] sm:$0xf]
    %v2016 = vld [vmem:[%s1971 + $0xb0] sm:$0xf]
    %v2017 = vld [vmem:[%s1971 + $0xb4] sm:$0xf]
    %v2018 = vld [vmem:[%s1971 + $0xb8] sm:$0xf]
    %v2019 = vld [vmem:[%s1971 + $0xbc] sm:$0xf]
    %v2036 = vunpack.c.l.b16 %v1955
    %v2037 = vunpack.c.h.b16 %v1955
    %v2038 = vunpack.c.l.b16 %v1956
    %v2039 = vunpack.c.l.b16 %v1957
    %v2040 = vunpack.c.h.b16 %v1957
    %v2041 = vunpack.c.l.b16 %v1958
    %v2042 = vunpack.c.l.b16 %v1959
    %v2043 = vunpack.c.h.b16 %v1959
    %v2044 = vunpack.c.l.b16 %v1960
    %v2045 = vunpack.c.l.b16 %v1961
    %v2046 = vunpack.c.h.b16 %v1961
    %v2047 = vunpack.c.l.b16 %v1962
    %v2048 = vunpack.c.l.b16 %v1963
    %v2049 = vunpack.c.h.b16 %v1963
    %v2050 = vunpack.c.l.b16 %v1964
    %v2051 = vunpack.c.l.b16 %v1965
    %v2052 = vunpack.c.h.b16 %v1965
    %v2053 = vunpack.c.l.b16 %v1966
    %v2054 = vunpack.c.l.b16 %v1967
    %v2055 = vunpack.c.h.b16 %v1967
    %v2056 = vunpack.c.l.b16 %v1968
    %v2057 = vunpack.c.l.b16 %v1969
    %v2058 = vunpack.c.h.b16 %v1969
    %v2059 = vunpack.c.l.b16 %v1970
    %v2060 = vpack.c.b16 %v2039, %v2036
    %v2061 = vpack.c.b16 %v2040, %v2037
    %v2062 = vpack.c.b16 %v2041, %v2038
    %v2063 = vpack.c.b16 %v2045, %v2042
    %v2064 = vpack.c.b16 %v2046, %v2043
    %v2065 = vpack.c.b16 %v2047, %v2044
    %v2066 = vpack.c.b16 %v2051, %v2048
    %v2067 = vpack.c.b16 %v2052, %v2049
    %v2068 = vpack.c.b16 %v2053, %v2050
    %v2069 = vpack.c.b16 %v2057, %v2054
    %v2070 = vpack.c.b16 %v2058, %v2055
    %v2071 = vpack.c.b16 %v2059, %v2056
    %v2132 = vunpack.c.l.b16 %v1972
    %v2133 = vunpack.c.l.b16 %v1973
    %v2134 = vunpack.c.l.b16 %v1974
    %v2135 = vunpack.c.l.b16 %v1975
    %v2136 = vunpack.c.l.b16 %v1976
    %v2137 = vunpack.c.l.b16 %v1977
    %v2138 = vunpack.c.l.b16 %v1978
    %v2139 = vunpack.c.l.b16 %v1979
    %v2140 = vunpack.c.l.b16 %v1980
    %v2141 = vunpack.c.l.b16 %v1981
    %v2142 = vunpack.c.l.b16 %v1982
    %v2143 = vunpack.c.l.b16 %v1983
    %v2144 = vunpack.c.l.b16 %v1984
    %v2145 = vunpack.c.l.b16 %v1985
    %v2146 = vunpack.c.l.b16 %v1986
    %v2147 = vunpack.c.l.b16 %v1987
    %v2148 = vunpack.c.l.b16 %v1988
    %v2149 = vunpack.c.l.b16 %v1989
    %v2150 = vunpack.c.l.b16 %v1990
    %v2151 = vunpack.c.l.b16 %v1991
    %v2152 = vunpack.c.l.b16 %v1992
    %v2153 = vunpack.c.l.b16 %v1993
    %v2154 = vunpack.c.l.b16 %v1994
    %v2155 = vunpack.c.l.b16 %v1995
    %v2156 = vunpack.c.l.b16 %v1996
    %v2157 = vunpack.c.l.b16 %v1997
    %v2158 = vunpack.c.l.b16 %v1998
    %v2159 = vunpack.c.l.b16 %v1999
    %v2160 = vunpack.c.l.b16 %v2000
    %v2161 = vunpack.c.l.b16 %v2001
    %v2162 = vunpack.c.l.b16 %v2002
    %v2163 = vunpack.c.l.b16 %v2003
    %v2164 = vunpack.c.l.b16 %v2004
    %v2165 = vunpack.c.l.b16 %v2005
    %v2166 = vunpack.c.l.b16 %v2006
    %v2167 = vunpack.c.l.b16 %v2007
    %v2168 = vunpack.c.l.b16 %v2008
    %v2169 = vunpack.c.l.b16 %v2009
    %v2170 = vunpack.c.l.b16 %v2010
    %v2171 = vunpack.c.l.b16 %v2011
    %v2172 = vunpack.c.l.b16 %v2012
    %v2173 = vunpack.c.l.b16 %v2013
    %v2174 = vunpack.c.l.b16 %v2014
    %v2175 = vunpack.c.l.b16 %v2015
    %v2176 = vunpack.c.l.b16 %v2016
    %v2177 = vunpack.c.l.b16 %v2017
    %v2178 = vunpack.c.l.b16 %v2018
    %v2179 = vunpack.c.l.b16 %v2019
    %v2180 = vpack.c.b16 %v2133, %v2132
    %v2181 = vpack.c.b16 %v2135, %v2134
    %v2182 = vpack.c.b16 %v2137, %v2136
    %v2183 = vpack.c.b16 %v2139, %v2138
    %v2184 = vpack.c.b16 %v2141, %v2140
    %v2185 = vpack.c.b16 %v2143, %v2142
    %v2186 = vpack.c.b16 %v2145, %v2144
    %v2187 = vpack.c.b16 %v2147, %v2146
    %v2188 = vpack.c.b16 %v2149, %v2148
    %v2189 = vpack.c.b16 %v2151, %v2150
    %v2190 = vpack.c.b16 %v2153, %v2152
    %v2191 = vpack.c.b16 %v2155, %v2154
    %v2192 = vpack.c.b16 %v2157, %v2156
    %v2193 = vpack.c.b16 %v2159, %v2158
    %v2194 = vpack.c.b16 %v2161, %v2160
    %v2195 = vpack.c.b16 %v2163, %v2162
    %v2196 = vpack.c.b16 %v2165, %v2164
    %v2197 = vpack.c.b16 %v2167, %v2166
    %v2198 = vpack.c.b16 %v2169, %v2168
    %v2199 = vpack.c.b16 %v2171, %v2170
    %v2200 = vpack.c.b16 %v2173, %v2172
    %v2201 = vpack.c.b16 %v2175, %v2174
    %v2202 = vpack.c.b16 %v2177, %v2176
    %v2203 = vpack.c.b16 %v2179, %v2178
    %2228 = vmatprep.subr.bf16.mxu0 0
    %2229 = vmatpush1.bf16.msra.mxu0 %v2187
    %2230 = vmatprep.subr.bf16.mxu0 0
    %2231 = vmatpush1.bf16.msra.mxu0 %v2186
    %2232 = vmatprep.subr.bf16.mxu0 0
    %2233 = vmatpush1.bf16.msra.mxu0 %v2185
    %2234 = vmatprep.subr.bf16.mxu0 0
    %2235 = vmatpush1.bf16.msra.mxu0 %v2184
    %2236 = vmatprep.subr.bf16.mxu0 0
    %2237 = vmatpush1.bf16.msra.mxu0 %v2183
    %2238 = vmatprep.subr.bf16.mxu0 0
    %2239 = vmatpush1.bf16.msra.mxu0 %v2182
    %2240 = vmatprep.subr.bf16.mxu0 0
    %2241 = vmatpush1.bf16.msra.mxu0 %v2181
    %2242 = vmatprep.subr.bf16.mxu0 0
    %2243 = vmatpush1.bf16.msra.mxu0 %v2180
    %2244 = vmatprep.subr.bf16.mxu0 0
    %2245 = vmatpush2.bf16.msra.mxu0 %v2195
    %2246 = vmatprep.subr.bf16.mxu0 0
    %2247 = vmatpush2.bf16.msra.mxu0 %v2194
    %2248 = vmatprep.subr.bf16.mxu0 0
    %2249 = vmatpush2.bf16.msra.mxu0 %v2193
    %2250 = vmatprep.subr.bf16.mxu0 0
    %2251 = vmatpush2.bf16.msra.mxu0 %v2192
    %2252 = vmatprep.subr.bf16.mxu0 0
    %2253 = vmatpush2.bf16.msra.mxu0 %v2191
    %2254 = vmatprep.subr.bf16.mxu0 0
    %2255 = vmatpush2.bf16.msra.mxu0 %v2190
    %2256 = vmatprep.subr.bf16.mxu0 0
    %2257 = vmatpush2.bf16.msra.mxu0 %v2189
    %2258 = vmatprep.subr.bf16.mxu0 0
    %2259 = vmatpush2.bf16.msra.mxu0 %v2188
    %2260 = vmatprep.mubr.bf16.mxu0 %v2061
    %2261 = vmatmul.mubr.bf16.gmra.mxu0 %v2060
    %v2262 = vpop.f32.mrf.mxu0
    %v2263 = vadd.f32 0.0, %v2262
    %v2264 = vpop.f32.mrf.mxu0
    %v2265 = vpop.f32.mrf.mxu0
    %v2266 = vadd.f32 0.0, %v2265
    %v2267 = vpop.f32.mrf.mxu0
    %2268 = vmatprep.mubr.bf16.mxu0 %v2064
    %2269 = vmatmul.mubr.bf16.gmra.mxu0 %v2063
    %v2270 = vpop.f32.mrf.mxu0
    %v2271 = vadd.f32 0.0, %v2270
    %v2272 = vpop.f32.mrf.mxu0
    %v2273 = vpop.f32.mrf.mxu0
    %v2274 = vadd.f32 0.0, %v2273
    %v2275 = vpop.f32.mrf.mxu0
    %2276 = vmatprep.mubr.bf16.mxu0 %v2067
    %2277 = vmatmul.mubr.bf16.gmra.mxu0 %v2066
    %v2278 = vpop.f32.mrf.mxu0
    %v2279 = vadd.f32 0.0, %v2278
    %v2280 = vpop.f32.mrf.mxu0
    %v2281 = vpop.f32.mrf.mxu0
    %v2282 = vadd.f32 0.0, %v2281
    %v2283 = vpop.f32.mrf.mxu0
    %2284 = vmatprep.mubr.bf16.mxu0 %v2070
    %2285 = vmatmul.mubr.bf16.gmra.mxu0 %v2069
    %v2286 = vpop.f32.mrf.mxu0
    %v2287 = vadd.f32 0.0, %v2286
    %v2288 = vpop.f32.mrf.mxu0
    %v2289 = vpop.f32.mrf.mxu0
    %v2290 = vadd.f32 0.0, %v2289
    %v2291 = vpop.f32.mrf.mxu0
    %2292 = vdwg.mxu0
    %2293 = vmatprep.subr.bf16.mxu0 0
    %2294 = vmatpush1.bf16.msra.mxu0 %v2203
    %2295 = vmatprep.subr.bf16.mxu0 0
    %2296 = vmatpush1.bf16.msra.mxu0 %v2202
    %2297 = vmatprep.subr.bf16.mxu0 0
    %2298 = vmatpush1.bf16.msra.mxu0 %v2201
    %2299 = vmatprep.subr.bf16.mxu0 0
    %2300 = vmatpush1.bf16.msra.mxu0 %v2200
    %2301 = vmatprep.subr.bf16.mxu0 0
    %2302 = vmatpush1.bf16.msra.mxu0 %v2199
    %2303 = vmatprep.subr.bf16.mxu0 0
    %2304 = vmatpush1.bf16.msra.mxu0 %v2198
    %2305 = vmatprep.subr.bf16.mxu0 0
    %2306 = vmatpush1.bf16.msra.mxu0 %v2197
    %2307 = vmatprep.subr.bf16.mxu0 0
    %2308 = vmatpush1.bf16.msra.mxu0 %v2196
    %2309 = vmatprep.subr.bf16.mxu0 0
    %2310 = vmatpush2.bf16.msra.mxu0 0
    %2311 = vmatprep.subr.bf16.mxu0 0
    %2312 = vmatpush2.bf16.msra.mxu0 0
    %2313 = vmatprep.subr.bf16.mxu0 0
    %2314 = vmatpush2.bf16.msra.mxu0 0
    %2315 = vmatprep.subr.bf16.mxu0 0
    %2316 = vmatpush2.bf16.msra.mxu0 0
    %2317 = vmatprep.subr.bf16.mxu0 0
    %2318 = vmatpush2.bf16.msra.mxu0 0
    %2319 = vmatprep.subr.bf16.mxu0 0
    %2320 = vmatpush2.bf16.msra.mxu0 0
    %2321 = vmatprep.subr.bf16.mxu0 0
    %2322 = vmatpush2.bf16.msra.mxu0 0
    %2323 = vmatprep.subr.bf16.mxu0 0
    %2324 = vmatpush2.bf16.msra.mxu0 0
    %2325 = vmatprep.mubr.bf16.mxu0 0
    %2326 = vmatmul.mubr.bf16.gmra.mxu0 %v2062
    %v2327 = vpop.f32.mrf.mxu0
    %v2328 = vadd.f32 %v2263, %v2327
    %v2329 = vpop.f32.mrf.mxu0
    %v2330 = vpop.f32.mrf.mxu0
    %v2331 = vadd.f32 %v2266, %v2330
    %v2332 = vpop.f32.mrf.mxu0
    %2333 = vmatprep.mubr.bf16.mxu0 0
    %2334 = vmatmul.mubr.bf16.gmra.mxu0 %v2065
    %v2335 = vpop.f32.mrf.mxu0
    %v2336 = vadd.f32 %v2271, %v2335
    %v2337 = vpop.f32.mrf.mxu0
    %v2338 = vpop.f32.mrf.mxu0
    %v2339 = vadd.f32 %v2274, %v2338
    %v2340 = vpop.f32.mrf.mxu0
    %2341 = vmatprep.mubr.bf16.mxu0 0
    %2342 = vmatmul.mubr.bf16.gmra.mxu0 %v2068
    %v2343 = vpop.f32.mrf.mxu0
    %v2344 = vadd.f32 %v2279, %v2343
    %v2345 = vpop.f32.mrf.mxu0
    %v2346 = vpop.f32.mrf.mxu0
    %v2347 = vadd.f32 %v2282, %v2346
    %v2348 = vpop.f32.mrf.mxu0
    %2349 = vmatprep.mubr.bf16.mxu0 0
    %2350 = vmatmul.mubr.bf16.gmra.mxu0 %v2071
    %v2351 = vpop.f32.mrf.mxu0
    %v2352 = vadd.f32 %v2287, %v2351
    %v2353 = vpop.f32.mrf.mxu0
    %v2354 = vpop.f32.mrf.mxu0
    %v2355 = vadd.f32 %v2290, %v2354
    %v2356 = vpop.f32.mrf.mxu0
    %2357 = vdwg.mxu0
    %v2358 = vadd.f32 %v1924, %v2328
    %v2359 = vadd.f32 %v1927, %v2331
    %v2360 = vadd.f32 %v1932, %v2336
    %v2361 = vadd.f32 %v1935, %v2339
    %v2362 = vadd.f32 %v1940, %v2344
    %v2363 = vadd.f32 %v1943, %v2347
    %v2364 = vadd.f32 %v1948, %v2352
    %v2365 = vadd.f32 %v1951, %v2355
    %s2366 = scalar_lea.vmem [#allocation3], 120
    %v2367 = vld [vmem:[%s2366] sm:$0xff]
    %v2368 = vld [vmem:[%s2366 + $0x8] sm:$0xf]
    %v2369 = vld [vmem:[%s2366 + $0xc] sm:$0xff]
    %v2370 = vld [vmem:[%s2366 + $0x14] sm:$0xf]
    %v2371 = vld [vmem:[%s2366 + $0x18] sm:$0xff]
    %v2372 = vld [vmem:[%s2366 + $0x20] sm:$0xf]
    %v2373 = vld [vmem:[%s2366 + $0x24] sm:$0xff]
    %v2374 = vld [vmem:[%s2366 + $0x2c] sm:$0xf]
    %v2375 = vld [vmem:[%s2366 + $0x30] sm:$0xff]
    %v2376 = vld [vmem:[%s2366 + $0x38] sm:$0xf]
    %v2377 = vld [vmem:[%s2366 + $0x3c] sm:$0xff]
    %v2378 = vld [vmem:[%s2366 + $0x44] sm:$0xf]
    %v2379 = vld [vmem:[%s2366 + $0x48] sm:$0xff]
    %v2380 = vld [vmem:[%s2366 + $0x50] sm:$0xf]
    %v2381 = vld [vmem:[%s2366 + $0x54] sm:$0xff]
    %v2382 = vld [vmem:[%s2366 + $0x5c] sm:$0xf]
    %s2383 = scalar_lea.vmem [#allocation3], 132
    %v2384 = vld [vmem:[%s2383] sm:$0xff]
    %v2385 = vld [vmem:[%s2383 + $0x8] sm:$0xf]
    %v2386 = vld [vmem:[%s2383 + $0xc] sm:$0xff]
    %v2387 = vld [vmem:[%s2383 + $0x14] sm:$0xf]
    %v2388 = vld [vmem:[%s2383 + $0x18] sm:$0xff]
    %v2389 = vld [vmem:[%s2383 + $0x20] sm:$0xf]
    %v2390 = vld [vmem:[%s2383 + $0x24] sm:$0xff]
    %v2391 = vld [vmem:[%s2383 + $0x2c] sm:$0xf]
    %v2392 = vld [vmem:[%s2383 + $0x30] sm:$0xff]
    %v2393 = vld [vmem:[%s2383 + $0x38] sm:$0xf]
    %v2394 = vld [vmem:[%s2383 + $0x3c] sm:$0xff]
    %v2395 = vld [vmem:[%s2383 + $0x44] sm:$0xf]
    %v2396 = vld [vmem:[%s2383 + $0x48] sm:$0xff]
    %v2397 = vld [vmem:[%s2383 + $0x50] sm:$0xf]
    %v2398 = vld [vmem:[%s2383 + $0x54] sm:$0xff]
    %v2399 = vld [vmem:[%s2383 + $0x5c] sm:$0xf]
    %v2416 = vunpack.c.l.b16 %v2384
    %v2417 = vunpack.c.h.b16 %v2384
    %v2418 = vunpack.c.l.b16 %v2385
    %v2419 = vunpack.c.l.b16 %v2386
    %v2420 = vunpack.c.h.b16 %v2386
    %v2421 = vunpack.c.l.b16 %v2387
    %v2422 = vunpack.c.l.b16 %v2388
    %v2423 = vunpack.c.h.b16 %v2388
    %v2424 = vunpack.c.l.b16 %v2389
    %v2425 = vunpack.c.l.b16 %v2390
    %v2426 = vunpack.c.h.b16 %v2390
    %v2427 = vunpack.c.l.b16 %v2391
    %v2428 = vunpack.c.l.b16 %v2392
    %v2429 = vunpack.c.h.b16 %v2392
    %v2430 = vunpack.c.l.b16 %v2393
    %v2431 = vunpack.c.l.b16 %v2394
    %v2432 = vunpack.c.h.b16 %v2394
    %v2433 = vunpack.c.l.b16 %v2395
    %v2434 = vunpack.c.l.b16 %v2396
    %v2435 = vunpack.c.h.b16 %v2396
    %v2436 = vunpack.c.l.b16 %v2397
    %v2437 = vunpack.c.l.b16 %v2398
    %v2438 = vunpack.c.h.b16 %v2398
    %v2439 = vunpack.c.l.b16 %v2399
    %v2440 = vpack.c.b16 %v2419, %v2416
    %v2441 = vpack.c.b16 %v2420, %v2417
    %v2442 = vpack.c.b16 %v2421, %v2418
    %v2443 = vpack.c.b16 %v2425, %v2422
    %v2444 = vpack.c.b16 %v2426, %v2423
    %v2445 = vpack.c.b16 %v2427, %v2424
    %v2446 = vpack.c.b16 %v2431, %v2428
    %v2447 = vpack.c.b16 %v2432, %v2429
    %v2448 = vpack.c.b16 %v2433, %v2430
    %v2449 = vpack.c.b16 %v2437, %v2434
    %v2450 = vpack.c.b16 %v2438, %v2435
    %v2451 = vpack.c.b16 %v2439, %v2436
    %2464 = vmatprep.subr.bf16.mxu0 0
    %2465 = vmatpush1.bf16.msra.mxu0 %v1445
    %2466 = vmatprep.subr.bf16.mxu0 0
    %2467 = vmatpush1.bf16.msra.mxu0 %v1444
    %2468 = vmatprep.subr.bf16.mxu0 0
    %2469 = vmatpush1.bf16.msra.mxu0 %v1443
    %2470 = vmatprep.subr.bf16.mxu0 0
    %2471 = vmatpush1.bf16.msra.mxu0 %v1442
    %2472 = vmatprep.subr.bf16.mxu0 0
    %2473 = vmatpush1.bf16.msra.mxu0 %v1441
    %2474 = vmatprep.subr.bf16.mxu0 0
    %2475 = vmatpush1.bf16.msra.mxu0 %v1440
    %2476 = vmatprep.subr.bf16.mxu0 0
    %2477 = vmatpush1.bf16.msra.mxu0 %v1439
    %2478 = vmatprep.subr.bf16.mxu0 0
    %2479 = vmatpush1.bf16.msra.mxu0 %v1438
    %2480 = vmatprep.subr.bf16.mxu0 0
    %2481 = vmatpush2.bf16.msra.mxu0 %v1453
    %2482 = vmatprep.subr.bf16.mxu0 0
    %2483 = vmatpush2.bf16.msra.mxu0 %v1452
    %2484 = vmatprep.subr.bf16.mxu0 0
    %2485 = vmatpush2.bf16.msra.mxu0 %v1451
    %2486 = vmatprep.subr.bf16.mxu0 0
    %2487 = vmatpush2.bf16.msra.mxu0 %v1450
    %2488 = vmatprep.subr.bf16.mxu0 0
    %2489 = vmatpush2.bf16.msra.mxu0 %v1449
    %2490 = vmatprep.subr.bf16.mxu0 0
    %2491 = vmatpush2.bf16.msra.mxu0 %v1448
    %2492 = vmatprep.subr.bf16.mxu0 0
    %2493 = vmatpush2.bf16.msra.mxu0 %v1447
    %2494 = vmatprep.subr.bf16.mxu0 0
    %2495 = vmatpush2.bf16.msra.mxu0 %v1446
    %2496 = vmatprep.mubr.bf16.mxu0 %v2441
    %2497 = vmatmul.mubr.bf16.gmra.mxu0 %v2440
    %v2498 = vpop.f32.mrf.mxu0
    %v2499 = vadd.f32 0.0, %v2498
    %v2500 = vpop.f32.mrf.mxu0
    %v2501 = vpop.f32.mrf.mxu0
    %v2502 = vadd.f32 0.0, %v2501
    %v2503 = vpop.f32.mrf.mxu0
    %2504 = vmatprep.mubr.bf16.mxu0 %v2444
    %2505 = vmatmul.mubr.bf16.gmra.mxu0 %v2443
    %v2506 = vpop.f32.mrf.mxu0
    %v2507 = vadd.f32 0.0, %v2506
    %v2508 = vpop.f32.mrf.mxu0
    %v2509 = vpop.f32.mrf.mxu0
    %v2510 = vadd.f32 0.0, %v2509
    %v2511 = vpop.f32.mrf.mxu0
    %2512 = vmatprep.mubr.bf16.mxu0 %v2447
    %2513 = vmatmul.mubr.bf16.gmra.mxu0 %v2446
    %v2514 = vpop.f32.mrf.mxu0
    %v2515 = vadd.f32 0.0, %v2514
    %v2516 = vpop.f32.mrf.mxu0
    %v2517 = vpop.f32.mrf.mxu0
    %v2518 = vadd.f32 0.0, %v2517
    %v2519 = vpop.f32.mrf.mxu0
    %2520 = vmatprep.mubr.bf16.mxu0 %v2450
    %2521 = vmatmul.mubr.bf16.gmra.mxu0 %v2449
    %v2522 = vpop.f32.mrf.mxu0
    %v2523 = vadd.f32 0.0, %v2522
    %v2524 = vpop.f32.mrf.mxu0
    %v2525 = vpop.f32.mrf.mxu0
    %v2526 = vadd.f32 0.0, %v2525
    %v2527 = vpop.f32.mrf.mxu0
    %2528 = vdwg.mxu0
    %2529 = vmatprep.subr.bf16.mxu0 0
    %2530 = vmatpush1.bf16.msra.mxu0 %v1461
    %2531 = vmatprep.subr.bf16.mxu0 0
    %2532 = vmatpush1.bf16.msra.mxu0 %v1460
    %2533 = vmatprep.subr.bf16.mxu0 0
    %2534 = vmatpush1.bf16.msra.mxu0 %v1459
    %2535 = vmatprep.subr.bf16.mxu0 0
    %2536 = vmatpush1.bf16.msra.mxu0 %v1458
    %2537 = vmatprep.subr.bf16.mxu0 0
    %2538 = vmatpush1.bf16.msra.mxu0 %v1457
    %2539 = vmatprep.subr.bf16.mxu0 0
    %2540 = vmatpush1.bf16.msra.mxu0 %v1456
    %2541 = vmatprep.subr.bf16.mxu0 0
    %2542 = vmatpush1.bf16.msra.mxu0 %v1455
    %2543 = vmatprep.subr.bf16.mxu0 0
    %2544 = vmatpush1.bf16.msra.mxu0 %v1454
    %2545 = vmatprep.subr.bf16.mxu0 0
    %2546 = vmatpush2.bf16.msra.mxu0 0
    %2547 = vmatprep.subr.bf16.mxu0 0
    %2548 = vmatpush2.bf16.msra.mxu0 0
    %2549 = vmatprep.subr.bf16.mxu0 0
    %2550 = vmatpush2.bf16.msra.mxu0 0
    %2551 = vmatprep.subr.bf16.mxu0 0
    %2552 = vmatpush2.bf16.msra.mxu0 0
    %2553 = vmatprep.subr.bf16.mxu0 0
    %2554 = vmatpush2.bf16.msra.mxu0 0
    %2555 = vmatprep.subr.bf16.mxu0 0
    %2556 = vmatpush2.bf16.msra.mxu0 0
    %2557 = vmatprep.subr.bf16.mxu0 0
    %2558 = vmatpush2.bf16.msra.mxu0 0
    %2559 = vmatprep.subr.bf16.mxu0 0
    %2560 = vmatpush2.bf16.msra.mxu0 0
    %2561 = vmatprep.mubr.bf16.mxu0 0
    %2562 = vmatmul.mubr.bf16.gmra.mxu0 %v2442
    %v2563 = vpop.f32.mrf.mxu0
    %v2564 = vadd.f32 %v2499, %v2563
    %v2565 = vpop.f32.mrf.mxu0
    %v2566 = vpop.f32.mrf.mxu0
    %v2567 = vadd.f32 %v2502, %v2566
    %v2568 = vpop.f32.mrf.mxu0
    %2569 = vmatprep.mubr.bf16.mxu0 0
    %2570 = vmatmul.mubr.bf16.gmra.mxu0 %v2445
    %v2571 = vpop.f32.mrf.mxu0
    %v2572 = vadd.f32 %v2507, %v2571
    %v2573 = vpop.f32.mrf.mxu0
    %v2574 = vpop.f32.mrf.mxu0
    %v2575 = vadd.f32 %v2510, %v2574
    %v2576 = vpop.f32.mrf.mxu0
    %2577 = vmatprep.mubr.bf16.mxu0 0
    %2578 = vmatmul.mubr.bf16.gmra.mxu0 %v2448
    %v2579 = vpop.f32.mrf.mxu0
    %v2580 = vadd.f32 %v2515, %v2579
    %v2581 = vpop.f32.mrf.mxu0
    %v2582 = vpop.f32.mrf.mxu0
    %v2583 = vadd.f32 %v2518, %v2582
    %v2584 = vpop.f32.mrf.mxu0
    %2585 = vmatprep.mubr.bf16.mxu0 0
    %2586 = vmatmul.mubr.bf16.gmra.mxu0 %v2451
    %v2587 = vpop.f32.mrf.mxu0
    %v2588 = vadd.f32 %v2523, %v2587
    %v2589 = vpop.f32.mrf.mxu0
    %v2590 = vpop.f32.mrf.mxu0
    %v2591 = vadd.f32 %v2526, %v2590
    %v2592 = vpop.f32.mrf.mxu0
    %2593 = vdwg.mxu0
    %v2610 = vunpack.c.l.b16 %v2367
    %v2611 = vunpack.c.h.b16 %v2367
    %v2612 = vunpack.c.l.b16 %v2368
    %v2613 = vunpack.c.l.b16 %v2369
    %v2614 = vunpack.c.h.b16 %v2369
    %v2615 = vunpack.c.l.b16 %v2370
    %v2616 = vunpack.c.l.b16 %v2371
    %v2617 = vunpack.c.h.b16 %v2371
    %v2618 = vunpack.c.l.b16 %v2372
    %v2619 = vunpack.c.l.b16 %v2373
    %v2620 = vunpack.c.h.b16 %v2373
    %v2621 = vunpack.c.l.b16 %v2374
    %v2622 = vunpack.c.l.b16 %v2375
    %v2623 = vunpack.c.h.b16 %v2375
    %v2624 = vunpack.c.l.b16 %v2376
    %v2625 = vunpack.c.l.b16 %v2377
    %v2626 = vunpack.c.h.b16 %v2377
    %v2627 = vunpack.c.l.b16 %v2378
    %v2628 = vunpack.c.l.b16 %v2379
    %v2629 = vunpack.c.h.b16 %v2379
    %v2630 = vunpack.c.l.b16 %v2380
    %v2631 = vunpack.c.l.b16 %v2381
    %v2632 = vunpack.c.h.b16 %v2381
    %v2633 = vunpack.c.l.b16 %v2382
    %v2634 = vpack.c.b16 %v2613, %v2610
    %v2635 = vpack.c.b16 %v2614, %v2611
    %v2636 = vpack.c.b16 %v2615, %v2612
    %v2637 = vpack.c.b16 %v2619, %v2616
    %v2638 = vpack.c.b16 %v2620, %v2617
    %v2639 = vpack.c.b16 %v2621, %v2618
    %v2640 = vpack.c.b16 %v2625, %v2622
    %v2641 = vpack.c.b16 %v2626, %v2623
    %v2642 = vpack.c.b16 %v2627, %v2624
    %v2643 = vpack.c.b16 %v2631, %v2628
    %v2644 = vpack.c.b16 %v2632, %v2629
    %v2645 = vpack.c.b16 %v2633, %v2630
    %2658 = vmatprep.subr.bf16.mxu0 0
    %2659 = vmatpush1.bf16.msra.mxu0 %v1783
    %2660 = vmatprep.subr.bf16.mxu0 0
    %2661 = vmatpush1.bf16.msra.mxu0 %v1782
    %2662 = vmatprep.subr.bf16.mxu0 0
    %2663 = vmatpush1.bf16.msra.mxu0 %v1781
    %2664 = vmatprep.subr.bf16.mxu0 0
    %2665 = vmatpush1.bf16.msra.mxu0 %v1780
    %2666 = vmatprep.subr.bf16.mxu0 0
    %2667 = vmatpush1.bf16.msra.mxu0 %v1779
    %2668 = vmatprep.subr.bf16.mxu0 0
    %2669 = vmatpush1.bf16.msra.mxu0 %v1778
    %2670 = vmatprep.subr.bf16.mxu0 0
    %2671 = vmatpush1.bf16.msra.mxu0 %v1777
    %2672 = vmatprep.subr.bf16.mxu0 0
    %2673 = vmatpush1.bf16.msra.mxu0 %v1776
    %2674 = vmatprep.subr.bf16.mxu0 0
    %2675 = vmatpush2.bf16.msra.mxu0 %v1791
    %2676 = vmatprep.subr.bf16.mxu0 0
    %2677 = vmatpush2.bf16.msra.mxu0 %v1790
    %2678 = vmatprep.subr.bf16.mxu0 0
    %2679 = vmatpush2.bf16.msra.mxu0 %v1789
    %2680 = vmatprep.subr.bf16.mxu0 0
    %2681 = vmatpush2.bf16.msra.mxu0 %v1788
    %2682 = vmatprep.subr.bf16.mxu0 0
    %2683 = vmatpush2.bf16.msra.mxu0 %v1787
    %2684 = vmatprep.subr.bf16.mxu0 0
    %2685 = vmatpush2.bf16.msra.mxu0 %v1786
    %2686 = vmatprep.subr.bf16.mxu0 0
    %2687 = vmatpush2.bf16.msra.mxu0 %v1785
    %2688 = vmatprep.subr.bf16.mxu0 0
    %2689 = vmatpush2.bf16.msra.mxu0 %v1784
    %2690 = vmatprep.mubr.bf16.mxu0 %v2635
    %2691 = vmatmul.mubr.bf16.gmra.mxu0 %v2634
    %v2692 = vpop.f32.mrf.mxu0
    %v2693 = vadd.f32 %v2564, %v2692
    %v2694 = vpop.f32.mrf.mxu0
    %v2695 = vpop.f32.mrf.mxu0
    %v2696 = vadd.f32 %v2567, %v2695
    %v2697 = vpop.f32.mrf.mxu0
    %2698 = vmatprep.mubr.bf16.mxu0 %v2638
    %2699 = vmatmul.mubr.bf16.gmra.mxu0 %v2637
    %v2700 = vpop.f32.mrf.mxu0
    %v2701 = vadd.f32 %v2572, %v2700
    %v2702 = vpop.f32.mrf.mxu0
    %v2703 = vpop.f32.mrf.mxu0
    %v2704 = vadd.f32 %v2575, %v2703
    %v2705 = vpop.f32.mrf.mxu0
    %2706 = vmatprep.mubr.bf16.mxu0 %v2641
    %2707 = vmatmul.mubr.bf16.gmra.mxu0 %v2640
    %v2708 = vpop.f32.mrf.mxu0
    %v2709 = vadd.f32 %v2580, %v2708
    %v2710 = vpop.f32.mrf.mxu0
    %v2711 = vpop.f32.mrf.mxu0
    %v2712 = vadd.f32 %v2583, %v2711
    %v2713 = vpop.f32.mrf.mxu0
    %2714 = vmatprep.mubr.bf16.mxu0 %v2644
    %2715 = vmatmul.mubr.bf16.gmra.mxu0 %v2643
    %v2716 = vpop.f32.mrf.mxu0
    %v2717 = vadd.f32 %v2588, %v2716
    %v2718 = vpop.f32.mrf.mxu0
    %v2719 = vpop.f32.mrf.mxu0
    %v2720 = vadd.f32 %v2591, %v2719
    %v2721 = vpop.f32.mrf.mxu0
    %2722 = vdwg.mxu0
    %2723 = vmatprep.subr.bf16.mxu0 0
    %2724 = vmatpush1.bf16.msra.mxu0 %v1799
    %2725 = vmatprep.subr.bf16.mxu0 0
    %2726 = vmatpush1.bf16.msra.mxu0 %v1798
    %2727 = vmatprep.subr.bf16.mxu0 0
    %2728 = vmatpush1.bf16.msra.mxu0 %v1797
    %2729 = vmatprep.subr.bf16.mxu0 0
    %2730 = vmatpush1.bf16.msra.mxu0 %v1796
    %2731 = vmatprep.subr.bf16.mxu0 0
    %2732 = vmatpush1.bf16.msra.mxu0 %v1795
    %2733 = vmatprep.subr.bf16.mxu0 0
    %2734 = vmatpush1.bf16.msra.mxu0 %v1794
    %2735 = vmatprep.subr.bf16.mxu0 0
    %2736 = vmatpush1.bf16.msra.mxu0 %v1793
    %2737 = vmatprep.subr.bf16.mxu0 0
    %2738 = vmatpush1.bf16.msra.mxu0 %v1792
    %2739 = vmatprep.subr.bf16.mxu0 0
    %2740 = vmatpush2.bf16.msra.mxu0 0
    %2741 = vmatprep.subr.bf16.mxu0 0
    %2742 = vmatpush2.bf16.msra.mxu0 0
    %2743 = vmatprep.subr.bf16.mxu0 0
    %2744 = vmatpush2.bf16.msra.mxu0 0
    %2745 = vmatprep.subr.bf16.mxu0 0
    %2746 = vmatpush2.bf16.msra.mxu0 0
    %2747 = vmatprep.subr.bf16.mxu0 0
    %2748 = vmatpush2.bf16.msra.mxu0 0
    %2749 = vmatprep.subr.bf16.mxu0 0
    %2750 = vmatpush2.bf16.msra.mxu0 0
    %2751 = vmatprep.subr.bf16.mxu0 0
    %2752 = vmatpush2.bf16.msra.mxu0 0
    %2753 = vmatprep.subr.bf16.mxu0 0
    %2754 = vmatpush2.bf16.msra.mxu0 0
    %2755 = vmatprep.mubr.bf16.mxu0 0
    %2756 = vmatmul.mubr.bf16.gmra.mxu0 %v2636
    %v2757 = vpop.f32.mrf.mxu0
    %v2758 = vadd.f32 %v2693, %v2757
    %v2759 = vpop.f32.mrf.mxu0
    %v2760 = vpop.f32.mrf.mxu0
    %v2761 = vadd.f32 %v2696, %v2760
    %v2762 = vpop.f32.mrf.mxu0
    %2763 = vmatprep.mubr.bf16.mxu0 0
    %2764 = vmatmul.mubr.bf16.gmra.mxu0 %v2639
    %v2765 = vpop.f32.mrf.mxu0
    %v2766 = vadd.f32 %v2701, %v2765
    %v2767 = vpop.f32.mrf.mxu0
    %v2768 = vpop.f32.mrf.mxu0
    %v2769 = vadd.f32 %v2704, %v2768
    %v2770 = vpop.f32.mrf.mxu0
    %2771 = vmatprep.mubr.bf16.mxu0 0
    %2772 = vmatmul.mubr.bf16.gmra.mxu0 %v2642
    %v2773 = vpop.f32.mrf.mxu0
    %v2774 = vadd.f32 %v2709, %v2773
    %v2775 = vpop.f32.mrf.mxu0
    %v2776 = vpop.f32.mrf.mxu0
    %v2777 = vadd.f32 %v2712, %v2776
    %v2778 = vpop.f32.mrf.mxu0
    %2779 = vmatprep.mubr.bf16.mxu0 0
    %2780 = vmatmul.mubr.bf16.gmra.mxu0 %v2645
    %v2781 = vpop.f32.mrf.mxu0
    %v2782 = vadd.f32 %v2717, %v2781
    %v2783 = vpop.f32.mrf.mxu0
    %v2784 = vpop.f32.mrf.mxu0
    %v2785 = vadd.f32 %v2720, %v2784
    %v2786 = vpop.f32.mrf.mxu0
    %2787 = vdwg.mxu0
    %s2788 = scalar_lea.vmem [#allocation3], 144
    %v2789 = vld [vmem:[%s2788] sm:$0xff]
    %v2790 = vld [vmem:[%s2788 + $0x8] sm:$0xf]
    %v2791 = vld [vmem:[%s2788 + $0xc] sm:$0xff]
    %v2792 = vld [vmem:[%s2788 + $0x14] sm:$0xf]
    %v2793 = vld [vmem:[%s2788 + $0x18] sm:$0xff]
    %v2794 = vld [vmem:[%s2788 + $0x20] sm:$0xf]
    %v2795 = vld [vmem:[%s2788 + $0x24] sm:$0xff]
    %v2796 = vld [vmem:[%s2788 + $0x2c] sm:$0xf]
    %v2797 = vld [vmem:[%s2788 + $0x30] sm:$0xff]
    %v2798 = vld [vmem:[%s2788 + $0x38] sm:$0xf]
    %v2799 = vld [vmem:[%s2788 + $0x3c] sm:$0xff]
    %v2800 = vld [vmem:[%s2788 + $0x44] sm:$0xf]
    %v2801 = vld [vmem:[%s2788 + $0x48] sm:$0xff]
    %v2802 = vld [vmem:[%s2788 + $0x50] sm:$0xf]
    %v2803 = vld [vmem:[%s2788 + $0x54] sm:$0xff]
    %v2804 = vld [vmem:[%s2788 + $0x5c] sm:$0xf]
    %v2821 = vunpack.c.l.b16 %v2789
    %v2822 = vunpack.c.h.b16 %v2789
    %v2823 = vunpack.c.l.b16 %v2790
    %v2824 = vunpack.c.l.b16 %v2791
    %v2825 = vunpack.c.h.b16 %v2791
    %v2826 = vunpack.c.l.b16 %v2792
    %v2827 = vunpack.c.l.b16 %v2793
    %v2828 = vunpack.c.h.b16 %v2793
    %v2829 = vunpack.c.l.b16 %v2794
    %v2830 = vunpack.c.l.b16 %v2795
    %v2831 = vunpack.c.h.b16 %v2795
    %v2832 = vunpack.c.l.b16 %v2796
    %v2833 = vunpack.c.l.b16 %v2797
    %v2834 = vunpack.c.h.b16 %v2797
    %v2835 = vunpack.c.l.b16 %v2798
    %v2836 = vunpack.c.l.b16 %v2799
    %v2837 = vunpack.c.h.b16 %v2799
    %v2838 = vunpack.c.l.b16 %v2800
    %v2839 = vunpack.c.l.b16 %v2801
    %v2840 = vunpack.c.h.b16 %v2801
    %v2841 = vunpack.c.l.b16 %v2802
    %v2842 = vunpack.c.l.b16 %v2803
    %v2843 = vunpack.c.h.b16 %v2803
    %v2844 = vunpack.c.l.b16 %v2804
    %v2845 = vpack.c.b16 %v2824, %v2821
    %v2846 = vpack.c.b16 %v2825, %v2822
    %v2847 = vpack.c.b16 %v2826, %v2823
    %v2848 = vpack.c.b16 %v2830, %v2827
    %v2849 = vpack.c.b16 %v2831, %v2828
    %v2850 = vpack.c.b16 %v2832, %v2829
    %v2851 = vpack.c.b16 %v2836, %v2833
    %v2852 = vpack.c.b16 %v2837, %v2834
    %v2853 = vpack.c.b16 %v2838, %v2835
    %v2854 = vpack.c.b16 %v2842, %v2839
    %v2855 = vpack.c.b16 %v2843, %v2840
    %v2856 = vpack.c.b16 %v2844, %v2841
    %2869 = vmatprep.subr.bf16.mxu0 0
    %2870 = vmatpush1.bf16.msra.mxu0 %v2187
    %2871 = vmatprep.subr.bf16.mxu0 0
    %2872 = vmatpush1.bf16.msra.mxu0 %v2186
    %2873 = vmatprep.subr.bf16.mxu0 0
    %2874 = vmatpush1.bf16.msra.mxu0 %v2185
    %2875 = vmatprep.subr.bf16.mxu0 0
    %2876 = vmatpush1.bf16.msra.mxu0 %v2184
    %2877 = vmatprep.subr.bf16.mxu0 0
    %2878 = vmatpush1.bf16.msra.mxu0 %v2183
    %2879 = vmatprep.subr.bf16.mxu0 0
    %2880 = vmatpush1.bf16.msra.mxu0 %v2182
    %2881 = vmatprep.subr.bf16.mxu0 0
    %2882 = vmatpush1.bf16.msra.mxu0 %v2181
    %2883 = vmatprep.subr.bf16.mxu0 0
    %2884 = vmatpush1.bf16.msra.mxu0 %v2180
    %2885 = vmatprep.subr.bf16.mxu0 0
    %2886 = vmatpush2.bf16.msra.mxu0 %v2195
    %2887 = vmatprep.subr.bf16.mxu0 0
    %2888 = vmatpush2.bf16.msra.mxu0 %v2194
    %2889 = vmatprep.subr.bf16.mxu0 0
    %2890 = vmatpush2.bf16.msra.mxu0 %v2193
    %2891 = vmatprep.subr.bf16.mxu0 0
    %2892 = vmatpush2.bf16.msra.mxu0 %v2192
    %2893 = vmatprep.subr.bf16.mxu0 0
    %2894 = vmatpush2.bf16.msra.mxu0 %v2191
    %2895 = vmatprep.subr.bf16.mxu0 0
    %2896 = vmatpush2.bf16.msra.mxu0 %v2190
    %2897 = vmatprep.subr.bf16.mxu0 0
    %2898 = vmatpush2.bf16.msra.mxu0 %v2189
    %2899 = vmatprep.subr.bf16.mxu0 0
    %2900 = vmatpush2.bf16.msra.mxu0 %v2188
    %2901 = vmatprep.mubr.bf16.mxu0 %v2846
    %2902 = vmatmul.mubr.bf16.gmra.mxu0 %v2845
    %v2903 = vpop.f32.mrf.mxu0
    %v2904 = vadd.f32 0.0, %v2903
    %v2905 = vpop.f32.mrf.mxu0
    %v2906 = vpop.f32.mrf.mxu0
    %v2907 = vadd.f32 0.0, %v2906
    %v2908 = vpop.f32.mrf.mxu0
    %2909 = vmatprep.mubr.bf16.mxu0 %v2849
    %2910 = vmatmul.mubr.bf16.gmra.mxu0 %v2848
    %v2911 = vpop.f32.mrf.mxu0
    %v2912 = vadd.f32 0.0, %v2911
    %v2913 = vpop.f32.mrf.mxu0
    %v2914 = vpop.f32.mrf.mxu0
    %v2915 = vadd.f32 0.0, %v2914
    %v2916 = vpop.f32.mrf.mxu0
    %2917 = vmatprep.mubr.bf16.mxu0 %v2852
    %2918 = vmatmul.mubr.bf16.gmra.mxu0 %v2851
    %v2919 = vpop.f32.mrf.mxu0
    %v2920 = vadd.f32 0.0, %v2919
    %v2921 = vpop.f32.mrf.mxu0
    %v2922 = vpop.f32.mrf.mxu0
    %v2923 = vadd.f32 0.0, %v2922
    %v2924 = vpop.f32.mrf.mxu0
    %2925 = vmatprep.mubr.bf16.mxu0 %v2855
    %2926 = vmatmul.mubr.bf16.gmra.mxu0 %v2854
    %v2927 = vpop.f32.mrf.mxu0
    %v2928 = vadd.f32 0.0, %v2927
    %v2929 = vpop.f32.mrf.mxu0
    %v2930 = vpop.f32.mrf.mxu0
    %v2931 = vadd.f32 0.0, %v2930
    %v2932 = vpop.f32.mrf.mxu0
    %2933 = vdwg.mxu0
    %2934 = vmatprep.subr.bf16.mxu0 0
    %2935 = vmatpush1.bf16.msra.mxu0 %v2203
    %2936 = vmatprep.subr.bf16.mxu0 0
    %2937 = vmatpush1.bf16.msra.mxu0 %v2202
    %2938 = vmatprep.subr.bf16.mxu0 0
    %2939 = vmatpush1.bf16.msra.mxu0 %v2201
    %2940 = vmatprep.subr.bf16.mxu0 0
    %2941 = vmatpush1.bf16.msra.mxu0 %v2200
    %2942 = vmatprep.subr.bf16.mxu0 0
    %2943 = vmatpush1.bf16.msra.mxu0 %v2199
    %2944 = vmatprep.subr.bf16.mxu0 0
    %2945 = vmatpush1.bf16.msra.mxu0 %v2198
    %2946 = vmatprep.subr.bf16.mxu0 0
    %2947 = vmatpush1.bf16.msra.mxu0 %v2197
    %2948 = vmatprep.subr.bf16.mxu0 0
    %2949 = vmatpush1.bf16.msra.mxu0 %v2196
    %2950 = vmatprep.subr.bf16.mxu0 0
    %2951 = vmatpush2.bf16.msra.mxu0 0
    %2952 = vmatprep.subr.bf16.mxu0 0
    %2953 = vmatpush2.bf16.msra.mxu0 0
    %2954 = vmatprep.subr.bf16.mxu0 0
    %2955 = vmatpush2.bf16.msra.mxu0 0
    %2956 = vmatprep.subr.bf16.mxu0 0
    %2957 = vmatpush2.bf16.msra.mxu0 0
    %2958 = vmatprep.subr.bf16.mxu0 0
    %2959 = vmatpush2.bf16.msra.mxu0 0
    %2960 = vmatprep.subr.bf16.mxu0 0
    %2961 = vmatpush2.bf16.msra.mxu0 0
    %2962 = vmatprep.subr.bf16.mxu0 0
    %2963 = vmatpush2.bf16.msra.mxu0 0
    %2964 = vmatprep.subr.bf16.mxu0 0
    %2965 = vmatpush2.bf16.msra.mxu0 0
    %2966 = vmatprep.mubr.bf16.mxu0 0
    %2967 = vmatmul.mubr.bf16.gmra.mxu0 %v2847
    %v2968 = vpop.f32.mrf.mxu0
    %v2969 = vadd.f32 %v2904, %v2968
    %v2970 = vpop.f32.mrf.mxu0
    %v2971 = vpop.f32.mrf.mxu0
    %v2972 = vadd.f32 %v2907, %v2971
    %v2973 = vpop.f32.mrf.mxu0
    %2974 = vmatprep.mubr.bf16.mxu0 0
    %2975 = vmatmul.mubr.bf16.gmra.mxu0 %v2850
    %v2976 = vpop.f32.mrf.mxu0
    %v2977 = vadd.f32 %v2912, %v2976
    %v2978 = vpop.f32.mrf.mxu0
    %v2979 = vpop.f32.mrf.mxu0
    %v2980 = vadd.f32 %v2915, %v2979
    %v2981 = vpop.f32.mrf.mxu0
    %2982 = vmatprep.mubr.bf16.mxu0 0
    %2983 = vmatmul.mubr.bf16.gmra.mxu0 %v2853
    %v2984 = vpop.f32.mrf.mxu0
    %v2985 = vadd.f32 %v2920, %v2984
    %v2986 = vpop.f32.mrf.mxu0
    %v2987 = vpop.f32.mrf.mxu0
    %v2988 = vadd.f32 %v2923, %v2987
    %v2989 = vpop.f32.mrf.mxu0
    %2990 = vmatprep.mubr.bf16.mxu0 0
    %2991 = vmatmul.mubr.bf16.gmra.mxu0 %v2856
    %v2992 = vpop.f32.mrf.mxu0
    %v2993 = vadd.f32 %v2928, %v2992
    %v2994 = vpop.f32.mrf.mxu0
    %v2995 = vpop.f32.mrf.mxu0
    %v2996 = vadd.f32 %v2931, %v2995
    %v2997 = vpop.f32.mrf.mxu0
    %2998 = vdwg.mxu0
    %v2999 = vadd.f32 %v2758, %v2969
    %v3000 = vadd.f32 %v2761, %v2972
    %v3001 = vadd.f32 %v2766, %v2977
    %v3002 = vadd.f32 %v2769, %v2980
    %v3003 = vadd.f32 %v2774, %v2985
    %v3004 = vadd.f32 %v2777, %v2988
    %v3005 = vadd.f32 %v2782, %v2993
    %v3006 = vadd.f32 %v2785, %v2996
    %v3007 = vadd.f32 %v2358, %v2359
    %v3008 = vadd.f32 %v3007, %v2360
    %v3009 = vadd.f32 %v3008, %v2361
    %v3010 = vadd.f32 %v3009, %v2362
    %v3011 = vadd.f32 %v3010, %v2363
    %v3012 = vadd.f32 %v3011, %v2364
    %v3013 = vadd.f32 %v3012, %v2365
    %v3014 = vadd.f32 %v3013, %v2999
    %v3015 = vadd.f32 %v3014, %v3000
    %v3016 = vadd.f32 %v3015, %v3001
    %v3017 = vadd.f32 %v3016, %v3002
    %v3018 = vadd.f32 %v3017, %v3003
    %v3019 = vadd.f32 %v3018, %v3004
    %v3020 = vadd.f32 %v3019, %v3005
    %v3021 = vadd.f32 %v3020, %v3006
    %v3022 = vrot.slane %v3021, 4
    %v3023 = vadd.f32 %v3021, %v3022
    %v3024 = vrot.slane %v3023, 2
    %v3025 = vadd.f32 %v3023, %v3024
    %v3026 = vrot.slane %v3025, 1
    %v3027 = vadd.f32 %v3025, %v3026
    %v3028 = vmul.f32 %v3027, 0.0078125
    %v3029 = vsub.f32 %v2358, %v3028
    %v3030 = vsub.f32 %v2359, %v3028
    %v3031 = vsub.f32 %v2360, %v3028
    %v3032 = vsub.f32 %v2361, %v3028
    %v3033 = vsub.f32 %v2362, %v3028
    %v3034 = vsub.f32 %v2363, %v3028
    %v3035 = vsub.f32 %v2364, %v3028
    %v3036 = vsub.f32 %v2365, %v3028
    %v3037 = vsub.f32 %v2999, %v3028
    %v3038 = vsub.f32 %v3000, %v3028
    %v3039 = vsub.f32 %v3001, %v3028
    %v3040 = vsub.f32 %v3002, %v3028
    %v3041 = vsub.f32 %v3003, %v3028
    %v3042 = vsub.f32 %v3004, %v3028
    %v3043 = vsub.f32 %v3005, %v3028
    %v3044 = vsub.f32 %v3006, %v3028
    %v3045 = vmul.f32 %v3029, %v3029
    %v3046 = vmul.f32 %v3030, %v3030
    %v3047 = vmul.f32 %v3031, %v3031
    %v3048 = vmul.f32 %v3032, %v3032
    %v3049 = vmul.f32 %v3033, %v3033
    %v3050 = vmul.f32 %v3034, %v3034
    %v3051 = vmul.f32 %v3035, %v3035
    %v3052 = vmul.f32 %v3036, %v3036
    %v3053 = vmul.f32 %v3037, %v3037
    %v3054 = vmul.f32 %v3038, %v3038
    %v3055 = vmul.f32 %v3039, %v3039
    %v3056 = vmul.f32 %v3040, %v3040
    %v3057 = vmul.f32 %v3041, %v3041
    %v3058 = vmul.f32 %v3042, %v3042
    %v3059 = vmul.f32 %v3043, %v3043
    %v3060 = vmul.f32 %v3044, %v3044
    %v3061 = vadd.f32 %v3045, %v3046
    %v3062 = vadd.f32 %v3061, %v3047
    %v3063 = vadd.f32 %v3062, %v3048
    %v3064 = vadd.f32 %v3063, %v3049
    %v3065 = vadd.f32 %v3064, %v3050
    %v3066 = vadd.f32 %v3065, %v3051
    %v3067 = vadd.f32 %v3066, %v3052
    %v3068 = vadd.f32 %v3067, %v3053
    %v3069 = vadd.f32 %v3068, %v3054
    %v3070 = vadd.f32 %v3069, %v3055
    %v3071 = vadd.f32 %v3070, %v3056
    %v3072 = vadd.f32 %v3071, %v3057
    %v3073 = vadd.f32 %v3072, %v3058
    %v3074 = vadd.f32 %v3073, %v3059
    %v3075 = vadd.f32 %v3074, %v3060
    %v3076 = vrot.slane %v3075, 4
    %v3077 = vadd.f32 %v3075, %v3076
    %v3078 = vrot.slane %v3077, 2
    %v3079 = vadd.f32 %v3077, %v3078
    %v3080 = vrot.slane %v3079, 1
    %v3081 = vadd.f32 %v3079, %v3080
    %v3082 = vmul.f32 %v3081, 0.0078125
    %v3083 = vld [vmem:[%s3] sm:$0x1]
    %v3084 = vadd.f32 %v3082, 1e-05
    %v3085 = vrsqrt.pop %v3084
    %v3086 = vmul.f32 %v3083, %v3085
    %v3088 = vlaneseq
    %v3089 = vshrl.u32 %v3088, 7
    %v3090 = vsub.s32 0, %v3089
    %v3091 = vrot.slane %v3086, %v3090
    %v3093 = vmul.f32 %v3029, %v3091
    %v3094 = vmul.f32 %v3030, %v3091
    %v3095 = vmul.f32 %v3031, %v3091
    %v3096 = vmul.f32 %v3032, %v3091
    %v3097 = vmul.f32 %v3033, %v3091
    %v3098 = vmul.f32 %v3034, %v3091
    %v3099 = vmul.f32 %v3035, %v3091
    %v3100 = vmul.f32 %v3036, %v3091
    %v3101 = vmul.f32 %v3037, %v3091
    %v3102 = vmul.f32 %v3038, %v3091
    %v3103 = vmul.f32 %v3039, %v3091
    %v3104 = vmul.f32 %v3040, %v3091
    %v3105 = vmul.f32 %v3041, %v3091
    %v3106 = vmul.f32 %v3042, %v3091
    %v3107 = vmul.f32 %v3043, %v3091
    %v3108 = vmul.f32 %v3044, %v3091
    %v3109 = vld [vmem:[%s4] sm:$0x1]
    %v3111 = vlaneseq
    %v3112 = vshrl.u32 %v3111, 7
    %v3113 = vsub.s32 0, %v3112
    %v3114 = vrot.slane %v3109, %v3113
    %v3116 = vadd.f32 %v3093, %v3114
    %v3117 = vadd.f32 %v3094, %v3114
    %v3118 = vadd.f32 %v3095, %v3114
    %v3119 = vadd.f32 %v3096, %v3114
    %v3120 = vadd.f32 %v3097, %v3114
    %v3121 = vadd.f32 %v3098, %v3114
    %v3122 = vadd.f32 %v3099, %v3114
    %v3123 = vadd.f32 %v3100, %v3114
    %v3124 = vadd.f32 %v3101, %v3114
    %v3125 = vadd.f32 %v3102, %v3114
    %v3126 = vadd.f32 %v3103, %v3114
    %v3127 = vadd.f32 %v3104, %v3114
    %v3128 = vadd.f32 %v3105, %v3114
    %v3129 = vadd.f32 %v3106, %v3114
    %v3130 = vadd.f32 %v3107, %v3114
    %v3131 = vadd.f32 %v3108, %v3114
    %v3132 = vmax.f32 %v3116, 0.0
    %v3133 = vmax.f32 %v3117, 0.0
    %v3134 = vmax.f32 %v3118, 0.0
    %v3135 = vmax.f32 %v3119, 0.0
    %v3136 = vmax.f32 %v3120, 0.0
    %v3137 = vmax.f32 %v3121, 0.0
    %v3138 = vmax.f32 %v3122, 0.0
    %v3139 = vmax.f32 %v3123, 0.0
    %v3140 = vmax.f32 %v3124, 0.0
    %v3141 = vmax.f32 %v3125, 0.0
    %v3142 = vmax.f32 %v3126, 0.0
    %v3143 = vmax.f32 %v3127, 0.0
    %v3144 = vmax.f32 %v3128, 0.0
    %v3145 = vmax.f32 %v3129, 0.0
    %v3146 = vmax.f32 %v3130, 0.0
    %v3147 = vmax.f32 %v3131, 0.0
    %v3148 = vpack.c.bf16 %v3132, %v3132
    %v3149 = vpack.c.bf16 %v3133, %v3133
    %v3150 = vpack.c.bf16 %v3134, %v3134
    %v3151 = vpack.c.bf16 %v3135, %v3135
    %v3152 = vpack.c.bf16 %v3136, %v3136
    %v3153 = vpack.c.bf16 %v3137, %v3137
    %v3154 = vpack.c.bf16 %v3138, %v3138
    %v3155 = vpack.c.bf16 %v3139, %v3139
    %v3156 = vpack.c.bf16 %v3140, %v3140
    %v3157 = vpack.c.bf16 %v3141, %v3141
    %v3158 = vpack.c.bf16 %v3142, %v3142
    %v3159 = vpack.c.bf16 %v3143, %v3143
    %v3160 = vpack.c.bf16 %v3144, %v3144
    %v3161 = vpack.c.bf16 %v3145, %v3145
    %v3162 = vpack.c.bf16 %v3146, %v3146
    %v3163 = vpack.c.bf16 %v3147, %v3147
    %v3180 = vunpack.c.l.b16 %v3148
    %v3181 = vunpack.c.l.b16 %v3149
    %v3182 = vunpack.c.l.b16 %v3150
    %v3183 = vunpack.c.l.b16 %v3151
    %v3184 = vunpack.c.l.b16 %v3152
    %v3185 = vunpack.c.l.b16 %v3153
    %v3186 = vunpack.c.l.b16 %v3154
    %v3187 = vunpack.c.l.b16 %v3155
    %v3188 = vunpack.c.l.b16 %v3156
    %v3189 = vunpack.c.l.b16 %v3157
    %v3190 = vunpack.c.l.b16 %v3158
    %v3191 = vunpack.c.l.b16 %v3159
    %v3192 = vunpack.c.l.b16 %v3160
    %v3193 = vunpack.c.l.b16 %v3161
    %v3194 = vunpack.c.l.b16 %v3162
    %v3195 = vunpack.c.l.b16 %v3163
    %v3196 = vpack.c.b16 %v3180, %v3180
    %v3197 = vpack.c.b16 %v3181, %v3181
    %v3198 = vpack.c.b16 %v3182, %v3182
    %v3199 = vpack.c.b16 %v3183, %v3183
    %v3200 = vpack.c.b16 %v3184, %v3184
    %v3201 = vpack.c.b16 %v3185, %v3185
    %v3202 = vpack.c.b16 %v3186, %v3186
    %v3203 = vpack.c.b16 %v3187, %v3187
    %v3204 = vpack.c.b16 %v3188, %v3188
    %v3205 = vpack.c.b16 %v3189, %v3189
    %v3206 = vpack.c.b16 %v3190, %v3190
    %v3207 = vpack.c.b16 %v3191, %v3191
    %v3208 = vpack.c.b16 %v3192, %v3192
    %v3209 = vpack.c.b16 %v3193, %v3193
    %v3210 = vpack.c.b16 %v3194, %v3194
    %v3211 = vpack.c.b16 %v3195, %v3195
    %v3213 = vshrl.u32 %v3196, 16
    %v3215 = vrot.slane %v3213, 7
    %v3216 = vshll.u32 %v3196, 16
    %v3218 = vor.u32 %v3215, %v3216
    %v3219 = vrot.slane %v3215, 4
    %v3221 = vshrl.u32 %v3197, 16
    %v3223 = vrot.slane %v3221, 7
    %v3224 = vshll.u32 %v3197, 16
    %v3226 = vor.u32 %v3223, %v3224
    %v3227 = vrot.slane %v3223, 4
    %v3229 = vshrl.u32 %v3198, 16
    %v3231 = vrot.slane %v3229, 7
    %v3232 = vshll.u32 %v3198, 16
    %v3234 = vor.u32 %v3231, %v3232
    %v3235 = vrot.slane %v3231, 4
    %v3237 = vshrl.u32 %v3199, 16
    %v3239 = vrot.slane %v3237, 7
    %v3240 = vshll.u32 %v3199, 16
    %v3242 = vor.u32 %v3239, %v3240
    %v3243 = vrot.slane %v3239, 4
    %v3245 = vshrl.u32 %v3200, 16
    %v3247 = vrot.slane %v3245, 7
    %v3248 = vshll.u32 %v3200, 16
    %v3250 = vor.u32 %v3247, %v3248
    %v3251 = vrot.slane %v3247, 4
    %v3253 = vshrl.u32 %v3201, 16
    %v3255 = vrot.slane %v3253, 7
    %v3256 = vshll.u32 %v3201, 16
    %v3258 = vor.u32 %v3255, %v3256
    %v3259 = vrot.slane %v3255, 4
    %v3261 = vshrl.u32 %v3202, 16
    %v3263 = vrot.slane %v3261, 7
    %v3264 = vshll.u32 %v3202, 16
    %v3266 = vor.u32 %v3263, %v3264
    %v3267 = vrot.slane %v3263, 4
    %v3269 = vshrl.u32 %v3203, 16
    %v3271 = vrot.slane %v3269, 7
    %v3272 = vshll.u32 %v3203, 16
    %v3274 = vor.u32 %v3271, %v3272
    %v3275 = vrot.slane %v3271, 4
    %v3277 = vshrl.u32 %v3204, 16
    %v3279 = vrot.slane %v3277, 7
    %v3280 = vshll.u32 %v3204, 16
    %v3282 = vor.u32 %v3279, %v3280
    %v3283 = vrot.slane %v3279, 4
    %v3285 = vshrl.u32 %v3205, 16
    %v3287 = vrot.slane %v3285, 7
    %v3288 = vshll.u32 %v3205, 16
    %v3290 = vor.u32 %v3287, %v3288
    %v3291 = vrot.slane %v3287, 4
    %v3293 = vshrl.u32 %v3206, 16
    %v3295 = vrot.slane %v3293, 7
    %v3296 = vshll.u32 %v3206, 16
    %v3298 = vor.u32 %v3295, %v3296
    %v3299 = vrot.slane %v3295, 4
    %v3301 = vshrl.u32 %v3207, 16
    %v3303 = vrot.slane %v3301, 7
    %v3304 = vshll.u32 %v3207, 16
    %v3306 = vor.u32 %v3303, %v3304
    %v3307 = vrot.slane %v3303, 4
    %v3309 = vshrl.u32 %v3208, 16
    %v3311 = vrot.slane %v3309, 7
    %v3312 = vshll.u32 %v3208, 16
    %v3314 = vor.u32 %v3311, %v3312
    %v3315 = vrot.slane %v3311, 4
    %v3317 = vshrl.u32 %v3209, 16
    %v3319 = vrot.slane %v3317, 7
    %v3320 = vshll.u32 %v3209, 16
    %v3322 = vor.u32 %v3319, %v3320
    %v3323 = vrot.slane %v3319, 4
    %v3325 = vshrl.u32 %v3210, 16
    %v3327 = vrot.slane %v3325, 7
    %v3328 = vshll.u32 %v3210, 16
    %v3330 = vor.u32 %v3327, %v3328
    %v3331 = vrot.slane %v3327, 4
    %v3333 = vshrl.u32 %v3211, 16
    %v3335 = vrot.slane %v3333, 7
    %v3336 = vshll.u32 %v3211, 16
    %v3338 = vor.u32 %v3335, %v3336
    %v3339 = vrot.slane %v3335, 4
    %v3372 = vld [vmem:[%s309] sm:$0xf]
    %v3373 = vsel %vm312, %v3218, %v3372
    %3374 = vst [vmem:[%s309] sm:$0xf] %v3373
    %v3375 = vld [vmem:[%s309 + $0x4] sm:$0x1]
    %v3376 = vsel %vm318, %v3219, %v3375
    %3377 = vst [vmem:[%s309 + $0x4] sm:$0x1] %v3376
    %v3378 = vld [vmem:[%s309 + $0x8] sm:$0xf]
    %v3379 = vsel %vm312, %v3226, %v3378
    %3380 = vst [vmem:[%s309 + $0x8] sm:$0xf] %v3379
    %v3381 = vld [vmem:[%s309 + $0xc] sm:$0x1]
    %v3382 = vsel %vm318, %v3227, %v3381
    %3383 = vst [vmem:[%s309 + $0xc] sm:$0x1] %v3382
    %v3384 = vld [vmem:[%s309 + $0x10] sm:$0xf]
    %v3385 = vsel %vm312, %v3234, %v3384
    %3386 = vst [vmem:[%s309 + $0x10] sm:$0xf] %v3385
    %v3387 = vld [vmem:[%s309 + $0x14] sm:$0x1]
    %v3388 = vsel %vm318, %v3235, %v3387
    %3389 = vst [vmem:[%s309 + $0x14] sm:$0x1] %v3388
    %v3390 = vld [vmem:[%s309 + $0x18] sm:$0xf]
    %v3391 = vsel %vm312, %v3242, %v3390
    %3392 = vst [vmem:[%s309 + $0x18] sm:$0xf] %v3391
    %v3393 = vld [vmem:[%s309 + $0x1c] sm:$0x1]
    %v3394 = vsel %vm318, %v3243, %v3393
    %3395 = vst [vmem:[%s309 + $0x1c] sm:$0x1] %v3394
    %v3396 = vld [vmem:[%s309 + $0x20] sm:$0xf]
    %v3397 = vsel %vm312, %v3250, %v3396
    %3398 = vst [vmem:[%s309 + $0x20] sm:$0xf] %v3397
    %v3399 = vld [vmem:[%s309 + $0x24] sm:$0x1]
    %v3400 = vsel %vm318, %v3251, %v3399
    %3401 = vst [vmem:[%s309 + $0x24] sm:$0x1] %v3400
    %v3402 = vld [vmem:[%s309 + $0x28] sm:$0xf]
    %v3403 = vsel %vm312, %v3258, %v3402
    %3404 = vst [vmem:[%s309 + $0x28] sm:$0xf] %v3403
    %v3405 = vld [vmem:[%s309 + $0x2c] sm:$0x1]
    %v3406 = vsel %vm318, %v3259, %v3405
    %3407 = vst [vmem:[%s309 + $0x2c] sm:$0x1] %v3406
    %v3408 = vld [vmem:[%s309 + $0x30] sm:$0xf]
    %v3409 = vsel %vm312, %v3266, %v3408
    %3410 = vst [vmem:[%s309 + $0x30] sm:$0xf] %v3409
    %v3411 = vld [vmem:[%s309 + $0x34] sm:$0x1]
    %v3412 = vsel %vm318, %v3267, %v3411
    %3413 = vst [vmem:[%s309 + $0x34] sm:$0x1] %v3412
    %v3414 = vld [vmem:[%s309 + $0x38] sm:$0xf]
    %v3415 = vsel %vm312, %v3274, %v3414
    %3416 = vst [vmem:[%s309 + $0x38] sm:$0xf] %v3415
    %v3417 = vld [vmem:[%s309 + $0x3c] sm:$0x1]
    %v3418 = vsel %vm318, %v3275, %v3417
    %3419 = vst [vmem:[%s309 + $0x3c] sm:$0x1] %v3418
    %v3420 = vld [vmem:[%s309 + $0x50] sm:$0xf]
    %v3421 = vsel %vm312, %v3282, %v3420
    %3422 = vst [vmem:[%s309 + $0x50] sm:$0xf] %v3421
    %v3423 = vld [vmem:[%s309 + $0x54] sm:$0x1]
    %v3424 = vsel %vm318, %v3283, %v3423
    %3425 = vst [vmem:[%s309 + $0x54] sm:$0x1] %v3424
    %v3426 = vld [vmem:[%s309 + $0x58] sm:$0xf]
    %v3427 = vsel %vm312, %v3290, %v3426
    %3428 = vst [vmem:[%s309 + $0x58] sm:$0xf] %v3427
    %v3429 = vld [vmem:[%s309 + $0x5c] sm:$0x1]
    %v3430 = vsel %vm318, %v3291, %v3429
    %3431 = vst [vmem:[%s309 + $0x5c] sm:$0x1] %v3430
    %v3432 = vld [vmem:[%s309 + $0x60] sm:$0xf]
    %v3433 = vsel %vm312, %v3298, %v3432
    %3434 = vst [vmem:[%s309 + $0x60] sm:$0xf] %v3433
    %v3435 = vld [vmem:[%s309 + $0x64] sm:$0x1]
    %v3436 = vsel %vm318, %v3299, %v3435
    %3437 = vst [vmem:[%s309 + $0x64] sm:$0x1] %v3436
    %v3438 = vld [vmem:[%s309 + $0x68] sm:$0xf]
    %v3439 = vsel %vm312, %v3306, %v3438
    %3440 = vst [vmem:[%s309 + $0x68] sm:$0xf] %v3439
    %v3441 = vld [vmem:[%s309 + $0x6c] sm:$0x1]
    %v3442 = vsel %vm318, %v3307, %v3441
    %3443 = vst [vmem:[%s309 + $0x6c] sm:$0x1] %v3442
    %v3444 = vld [vmem:[%s309 + $0x70] sm:$0xf]
    %v3445 = vsel %vm312, %v3314, %v3444
    %3446 = vst [vmem:[%s309 + $0x70] sm:$0xf] %v3445
    %v3447 = vld [vmem:[%s309 + $0x74] sm:$0x1]
    %v3448 = vsel %vm318, %v3315, %v3447
    %3449 = vst [vmem:[%s309 + $0x74] sm:$0x1] %v3448
    %v3450 = vld [vmem:[%s309 + $0x78] sm:$0xf]
    %v3451 = vsel %vm312, %v3322, %v3450
    %3452 = vst [vmem:[%s309 + $0x78] sm:$0xf] %v3451
    %v3453 = vld [vmem:[%s309 + $0x7c] sm:$0x1]
    %v3454 = vsel %vm318, %v3323, %v3453
    %3455 = vst [vmem:[%s309 + $0x7c] sm:$0x1] %v3454
    %v3456 = vld [vmem:[%s309 + $0x80] sm:$0xf]
    %v3457 = vsel %vm312, %v3330, %v3456
    %3458 = vst [vmem:[%s309 + $0x80] sm:$0xf] %v3457
    %v3459 = vld [vmem:[%s309 + $0x84] sm:$0x1]
    %v3460 = vsel %vm318, %v3331, %v3459
    %3461 = vst [vmem:[%s309 + $0x84] sm:$0x1] %v3460
    %v3462 = vld [vmem:[%s309 + $0x88] sm:$0xf]
    %v3463 = vsel %vm312, %v3338, %v3462
    %3464 = vst [vmem:[%s309 + $0x88] sm:$0xf] %v3463
    %v3465 = vld [vmem:[%s309 + $0x8c] sm:$0x1]
    %v3466 = vsel %vm318, %v3339, %v3465
    %3467 = vst [vmem:[%s309 + $0x8c] sm:$0x1] %v3466
    %v3468 = vld [vmem:[#allocation2] sm:$0xf]
    %v3469 = vld [vmem:[#allocation2 + $0x8] sm:$0xf]
    %v3470 = vld [vmem:[#allocation2 + $0x10] sm:$0xf]
    %v3471 = vld [vmem:[#allocation2 + $0x18] sm:$0xf]
    %v3472 = vld [vmem:[#allocation2 + $0x20] sm:$0xf]
    %v3473 = vld [vmem:[#allocation2 + $0x28] sm:$0xf]
    %v3474 = vld [vmem:[#allocation2 + $0x30] sm:$0xf]
    %v3475 = vld [vmem:[#allocation2 + $0x38] sm:$0xf]
    %v3476 = vld [vmem:[#allocation2 + $0x40] sm:$0xf]
    %v3477 = vld [vmem:[#allocation2 + $0x48] sm:$0xf]
    %v3478 = vld [vmem:[#allocation2 + $0x50] sm:$0xf]
    %v3479 = vld [vmem:[#allocation2 + $0x58] sm:$0xf]
    %v3480 = vld [vmem:[#allocation2 + $0x60] sm:$0xf]
    %v3481 = vld [vmem:[#allocation2 + $0x68] sm:$0xf]
    %v3482 = vld [vmem:[#allocation2 + $0x70] sm:$0xf]
    %v3483 = vld [vmem:[#allocation2 + $0x78] sm:$0xf]
    %v3484 = vld [vmem:[#allocation2 + $0x80] sm:$0xf]
    %v3485 = vld [vmem:[#allocation2 + $0x88] sm:$0xf]
    %v3486 = vld [vmem:[#allocation2 + $0x90] sm:$0xf]
    %v3487 = vld [vmem:[#allocation2 + $0x98] sm:$0xf]
    %3488 = vst [vmem:[#allocation3] sm:$0xf] %v3468
    %3489 = vst [vmem:[#allocation3 + $0xc] sm:$0xf] %v3469
    %3490 = vst [vmem:[#allocation3 + $0x18] sm:$0xf] %v3470
    %3491 = vst [vmem:[#allocation3 + $0x24] sm:$0xf] %v3471
    %3492 = vst [vmem:[#allocation3 + $0x30] sm:$0xf] %v3472
    %3493 = vst [vmem:[#allocation3 + $0x3c] sm:$0xf] %v3473
    %3494 = vst [vmem:[#allocation3 + $0x48] sm:$0xf] %v3474
    %3495 = vst [vmem:[#allocation3 + $0x54] sm:$0xf] %v3475
    %3496 = vst [vmem:[#allocation3 + $0x60] sm:$0xf] %v3476
    %3497 = vst [vmem:[#allocation3 + $0x6c] sm:$0xf] %v3477
    %3498 = vst [vmem:[#allocation3 + $0x78] sm:$0xf] %v3478
    %3499 = vst [vmem:[#allocation3 + $0x84] sm:$0xf] %v3479
    %3500 = vst [vmem:[#allocation3 + $0x90] sm:$0xf] %v3480
    %3501 = vst [vmem:[#allocation3 + $0x9c] sm:$0xf] %v3481
    %3502 = vst [vmem:[#allocation3 + $0xa8] sm:$0xf] %v3482
    %3503 = vst [vmem:[#allocation3 + $0xb4] sm:$0xf] %v3483
    %3504 = vst [vmem:[#allocation3 + $0xc0] sm:$0xf] %v3484
    %3505 = vst [vmem:[#allocation3 + $0xcc] sm:$0xf] %v3485
    %3506 = vst [vmem:[#allocation3 + $0xd8] sm:$0xf] %v3486
    %3507 = vst [vmem:[#allocation3 + $0xe4] sm:$0xf] %v3487
    %v3508 = vld [vmem:[#allocation2] sm:$0xf]
    %v3509 = vld [vmem:[#allocation2 + $0x4] sm:$0x1]
    %v3510 = vld [vmem:[#allocation2 + $0x8] sm:$0xf]
    %v3511 = vld [vmem:[#allocation2 + $0xc] sm:$0x1]
    %v3512 = vld [vmem:[#allocation2 + $0x10] sm:$0xf]
    %v3513 = vld [vmem:[#allocation2 + $0x14] sm:$0x1]
    %v3514 = vld [vmem:[#allocation2 + $0x18] sm:$0xf]
    %v3515 = vld [vmem:[#allocation2 + $0x1c] sm:$0x1]
    %v3516 = vld [vmem:[#allocation2 + $0x20] sm:$0xf]
    %v3517 = vld [vmem:[#allocation2 + $0x24] sm:$0x1]
    %v3518 = vld [vmem:[#allocation2 + $0x28] sm:$0xf]
    %v3519 = vld [vmem:[#allocation2 + $0x2c] sm:$0x1]
    %v3520 = vld [vmem:[#allocation2 + $0x30] sm:$0xf]
    %v3521 = vld [vmem:[#allocation2 + $0x34] sm:$0x1]
    %v3522 = vld [vmem:[#allocation2 + $0x38] sm:$0xf]
    %v3523 = vld [vmem:[#allocation2 + $0x3c] sm:$0x1]
    %v3524 = vld [vmem:[#allocation2 + $0x40] sm:$0xf]
    %v3525 = vld [vmem:[#allocation2 + $0x44] sm:$0x1]
    %v3526 = vld [vmem:[#allocation2 + $0x48] sm:$0xf]
    %v3527 = vld [vmem:[#allocation2 + $0x4c] sm:$0x1]
    %v3528 = vld [vmem:[#allocation2 + $0x50] sm:$0xf]
    %v3529 = vld [vmem:[#allocation2 + $0x54] sm:$0x1]
    %v3530 = vld [vmem:[#allocation2 + $0x58] sm:$0xf]
    %v3531 = vld [vmem:[#allocation2 + $0x5c] sm:$0x1]
    %v3532 = vld [vmem:[#allocation2 + $0x60] sm:$0xf]
    %v3533 = vld [vmem:[#allocation2 + $0x64] sm:$0x1]
    %v3534 = vld [vmem:[#allocation2 + $0x68] sm:$0xf]
    %v3535 = vld [vmem:[#allocation2 + $0x6c] sm:$0x1]
    %v3536 = vld [vmem:[#allocation2 + $0x70] sm:$0xf]
    %v3537 = vld [vmem:[#allocation2 + $0x74] sm:$0x1]
    %v3538 = vld [vmem:[#allocation2 + $0x78] sm:$0xf]
    %v3539 = vld [vmem:[#allocation2 + $0x7c] sm:$0x1]
    %v3540 = vld [vmem:[#allocation2 + $0x80] sm:$0xf]
    %v3541 = vld [vmem:[#allocation2 + $0x84] sm:$0x1]
    %v3542 = vld [vmem:[#allocation2 + $0x88] sm:$0xf]
    %v3543 = vld [vmem:[#allocation2 + $0x8c] sm:$0x1]
    %v3544 = vld [vmem:[#allocation2 + $0x90] sm:$0xf]
    %v3545 = vld [vmem:[#allocation2 + $0x94] sm:$0x1]
    %v3546 = vld [vmem:[#allocation2 + $0x98] sm:$0xf]
    %v3547 = vld [vmem:[#allocation2 + $0x9c] sm:$0x1]
    %v3549 = vshrl.u32 %v3508, 16
    %v3551 = vrot.slane %v3549, 4
    %v3552 = vshll.u32 %v3508, 16
    %v3554 = vrot.slane %v3552, 5
    %v3555 = vor.u32 %v3551, %v3554
    %v3556 = vrot.slane %v3555, 4
    %v3558 = vshll.u32 %v3509, 16
    %v3560 = vrot.slane %v3558, 5
    %v3561 = vsel %vm624, %v3556, %v3560
    %v3563 = vshrl.u32 %v3510, 16
    %v3565 = vrot.slane %v3563, 4
    %v3566 = vshll.u32 %v3510, 16
    %v3568 = vrot.slane %v3566, 5
    %v3569 = vor.u32 %v3565, %v3568
    %v3570 = vrot.slane %v3569, 4
    %v3572 = vshll.u32 %v3511, 16
    %v3574 = vrot.slane %v3572, 5
    %v3575 = vsel %vm624, %v3570, %v3574
    %v3577 = vshrl.u32 %v3512, 16
    %v3579 = vrot.slane %v3577, 4
    %v3580 = vshll.u32 %v3512, 16
    %v3582 = vrot.slane %v3580, 5
    %v3583 = vor.u32 %v3579, %v3582
    %v3584 = vrot.slane %v3583, 4
    %v3586 = vshll.u32 %v3513, 16
    %v3588 = vrot.slane %v3586, 5
    %v3589 = vsel %vm624, %v3584, %v3588
    %v3591 = vshrl.u32 %v3514, 16
    %v3593 = vrot.slane %v3591, 4
    %v3594 = vshll.u32 %v3514, 16
    %v3596 = vrot.slane %v3594, 5
    %v3597 = vor.u32 %v3593, %v3596
    %v3598 = vrot.slane %v3597, 4
    %v3600 = vshll.u32 %v3515, 16
    %v3602 = vrot.slane %v3600, 5
    %v3603 = vsel %vm624, %v3598, %v3602
    %v3605 = vshrl.u32 %v3516, 16
    %v3607 = vrot.slane %v3605, 4
    %v3608 = vshll.u32 %v3516, 16
    %v3610 = vrot.slane %v3608, 5
    %v3611 = vor.u32 %v3607, %v3610
    %v3612 = vrot.slane %v3611, 4
    %v3614 = vshll.u32 %v3517, 16
    %v3616 = vrot.slane %v3614, 5
    %v3617 = vsel %vm624, %v3612, %v3616
    %v3619 = vshrl.u32 %v3518, 16
    %v3621 = vrot.slane %v3619, 4
    %v3622 = vshll.u32 %v3518, 16
    %v3624 = vrot.slane %v3622, 5
    %v3625 = vor.u32 %v3621, %v3624
    %v3626 = vrot.slane %v3625, 4
    %v3628 = vshll.u32 %v3519, 16
    %v3630 = vrot.slane %v3628, 5
    %v3631 = vsel %vm624, %v3626, %v3630
    %v3633 = vshrl.u32 %v3520, 16
    %v3635 = vrot.slane %v3633, 4
    %v3636 = vshll.u32 %v3520, 16
    %v3638 = vrot.slane %v3636, 5
    %v3639 = vor.u32 %v3635, %v3638
    %v3640 = vrot.slane %v3639, 4
    %v3642 = vshll.u32 %v3521, 16
    %v3644 = vrot.slane %v3642, 5
    %v3645 = vsel %vm624, %v3640, %v3644
    %v3647 = vshrl.u32 %v3522, 16
    %v3649 = vrot.slane %v3647, 4
    %v3650 = vshll.u32 %v3522, 16
    %v3652 = vrot.slane %v3650, 5
    %v3653 = vor.u32 %v3649, %v3652
    %v3654 = vrot.slane %v3653, 4
    %v3656 = vshll.u32 %v3523, 16
    %v3658 = vrot.slane %v3656, 5
    %v3659 = vsel %vm624, %v3654, %v3658
    %v3661 = vshrl.u32 %v3524, 16
    %v3663 = vrot.slane %v3661, 4
    %v3664 = vshll.u32 %v3524, 16
    %v3666 = vrot.slane %v3664, 5
    %v3667 = vor.u32 %v3663, %v3666
    %v3668 = vrot.slane %v3667, 4
    %v3670 = vshll.u32 %v3525, 16
    %v3672 = vrot.slane %v3670, 5
    %v3673 = vsel %vm624, %v3668, %v3672
    %v3675 = vshrl.u32 %v3526, 16
    %v3677 = vrot.slane %v3675, 4
    %v3678 = vshll.u32 %v3526, 16
    %v3680 = vrot.slane %v3678, 5
    %v3681 = vor.u32 %v3677, %v3680
    %v3682 = vrot.slane %v3681, 4
    %v3684 = vshll.u32 %v3527, 16
    %v3686 = vrot.slane %v3684, 5
    %v3687 = vsel %vm624, %v3682, %v3686
    %v3689 = vshrl.u32 %v3528, 16
    %v3691 = vrot.slane %v3689, 4
    %v3692 = vshll.u32 %v3528, 16
    %v3694 = vrot.slane %v3692, 5
    %v3695 = vor.u32 %v3691, %v3694
    %v3696 = vrot.slane %v3695, 4
    %v3698 = vshll.u32 %v3529, 16
    %v3700 = vrot.slane %v3698, 5
    %v3701 = vsel %vm624, %v3696, %v3700
    %v3703 = vshrl.u32 %v3530, 16
    %v3705 = vrot.slane %v3703, 4
    %v3706 = vshll.u32 %v3530, 16
    %v3708 = vrot.slane %v3706, 5
    %v3709 = vor.u32 %v3705, %v3708
    %v3710 = vrot.slane %v3709, 4
    %v3712 = vshll.u32 %v3531, 16
    %v3714 = vrot.slane %v3712, 5
    %v3715 = vsel %vm624, %v3710, %v3714
    %v3717 = vshrl.u32 %v3532, 16
    %v3719 = vrot.slane %v3717, 4
    %v3720 = vshll.u32 %v3532, 16
    %v3722 = vrot.slane %v3720, 5
    %v3723 = vor.u32 %v3719, %v3722
    %v3724 = vrot.slane %v3723, 4
    %v3726 = vshll.u32 %v3533, 16
    %v3728 = vrot.slane %v3726, 5
    %v3729 = vsel %vm624, %v3724, %v3728
    %v3731 = vshrl.u32 %v3534, 16
    %v3733 = vrot.slane %v3731, 4
    %v3734 = vshll.u32 %v3534, 16
    %v3736 = vrot.slane %v3734, 5
    %v3737 = vor.u32 %v3733, %v3736
    %v3738 = vrot.slane %v3737, 4
    %v3740 = vshll.u32 %v3535, 16
    %v3742 = vrot.slane %v3740, 5
    %v3743 = vsel %vm624, %v3738, %v3742
    %v3745 = vshrl.u32 %v3536, 16
    %v3747 = vrot.slane %v3745, 4
    %v3748 = vshll.u32 %v3536, 16
    %v3750 = vrot.slane %v3748, 5
    %v3751 = vor.u32 %v3747, %v3750
    %v3752 = vrot.slane %v3751, 4
    %v3754 = vshll.u32 %v3537, 16
    %v3756 = vrot.slane %v3754, 5
    %v3757 = vsel %vm624, %v3752, %v3756
    %v3759 = vshrl.u32 %v3538, 16
    %v3761 = vrot.slane %v3759, 4
    %v3762 = vshll.u32 %v3538, 16
    %v3764 = vrot.slane %v3762, 5
    %v3765 = vor.u32 %v3761, %v3764
    %v3766 = vrot.slane %v3765, 4
    %v3768 = vshll.u32 %v3539, 16
    %v3770 = vrot.slane %v3768, 5
    %v3771 = vsel %vm624, %v3766, %v3770
    %v3773 = vshrl.u32 %v3540, 16
    %v3775 = vrot.slane %v3773, 4
    %v3776 = vshll.u32 %v3540, 16
    %v3778 = vrot.slane %v3776, 5
    %v3779 = vor.u32 %v3775, %v3778
    %v3780 = vrot.slane %v3779, 4
    %v3782 = vshll.u32 %v3541, 16
    %v3784 = vrot.slane %v3782, 5
    %v3785 = vsel %vm624, %v3780, %v3784
    %v3787 = vshrl.u32 %v3542, 16
    %v3789 = vrot.slane %v3787, 4
    %v3790 = vshll.u32 %v3542, 16
    %v3792 = vrot.slane %v3790, 5
    %v3793 = vor.u32 %v3789, %v3792
    %v3794 = vrot.slane %v3793, 4
    %v3796 = vshll.u32 %v3543, 16
    %v3798 = vrot.slane %v3796, 5
    %v3799 = vsel %vm624, %v3794, %v3798
    %v3801 = vshrl.u32 %v3544, 16
    %v3803 = vrot.slane %v3801, 4
    %v3804 = vshll.u32 %v3544, 16
    %v3806 = vrot.slane %v3804, 5
    %v3807 = vor.u32 %v3803, %v3806
    %v3808 = vrot.slane %v3807, 4
    %v3810 = vshll.u32 %v3545, 16
    %v3812 = vrot.slane %v3810, 5
    %v3813 = vsel %vm624, %v3808, %v3812
    %v3815 = vshrl.u32 %v3546, 16
    %v3817 = vrot.slane %v3815, 4
    %v3818 = vshll.u32 %v3546, 16
    %v3820 = vrot.slane %v3818, 5
    %v3821 = vor.u32 %v3817, %v3820
    %v3822 = vrot.slane %v3821, 4
    %v3824 = vshll.u32 %v3547, 16
    %v3826 = vrot.slane %v3824, 5
    %v3827 = vsel %vm624, %v3822, %v3826
    %3848 = vst [vmem:[#allocation3 + $0x4] sm:$0xf] %v3561
    %3849 = vst [vmem:[#allocation3 + $0x10] sm:$0xf] %v3575
    %3850 = vst [vmem:[#allocation3 + $0x1c] sm:$0xf] %v3589
    %3851 = vst [vmem:[#allocation3 + $0x28] sm:$0xf] %v3603
    %3852 = vst [vmem:[#allocation3 + $0x34] sm:$0xf] %v3617
    %3853 = vst [vmem:[#allocation3 + $0x40] sm:$0xf] %v3631
    %3854 = vst [vmem:[#allocation3 + $0x4c] sm:$0xf] %v3645
    %3855 = vst [vmem:[#allocation3 + $0x58] sm:$0xf] %v3659
    %3856 = vst [vmem:[#allocation3 + $0x64] sm:$0xf] %v3673
    %3857 = vst [vmem:[#allocation3 + $0x70] sm:$0xf] %v3687
    %3858 = vst [vmem:[#allocation3 + $0x7c] sm:$0xf] %v3701
    %3859 = vst [vmem:[#allocation3 + $0x88] sm:$0xf] %v3715
    %3860 = vst [vmem:[#allocation3 + $0x94] sm:$0xf] %v3729
    %3861 = vst [vmem:[#allocation3 + $0xa0] sm:$0xf] %v3743
    %3862 = vst [vmem:[#allocation3 + $0xac] sm:$0xf] %v3757
    %3863 = vst [vmem:[#allocation3 + $0xb8] sm:$0xf] %v3771
    %3864 = vst [vmem:[#allocation3 + $0xc4] sm:$0xf] %v3785
    %3865 = vst [vmem:[#allocation3 + $0xd0] sm:$0xf] %v3799
    %3866 = vst [vmem:[#allocation3 + $0xdc] sm:$0xf] %v3813
    %3867 = vst [vmem:[#allocation3 + $0xe8] sm:$0xf] %v3827
    %v3868 = vld [vmem:[#allocation2] sm:$0xe]
    %v3869 = vld [vmem:[#allocation2 + $0x4] sm:$0x1]
    %v3870 = vld [vmem:[#allocation2 + $0x8] sm:$0xe]
    %v3871 = vld [vmem:[#allocation2 + $0xc] sm:$0x1]
    %v3872 = vld [vmem:[#allocation2 + $0x10] sm:$0xe]
    %v3873 = vld [vmem:[#allocation2 + $0x14] sm:$0x1]
    %v3874 = vld [vmem:[#allocation2 + $0x18] sm:$0xe]
    %v3875 = vld [vmem:[#allocation2 + $0x1c] sm:$0x1]
    %v3876 = vld [vmem:[#allocation2 + $0x20] sm:$0xe]
    %v3877 = vld [vmem:[#allocation2 + $0x24] sm:$0x1]
    %v3878 = vld [vmem:[#allocation2 + $0x28] sm:$0xe]
    %v3879 = vld [vmem:[#allocation2 + $0x2c] sm:$0x1]
    %v3880 = vld [vmem:[#allocation2 + $0x30] sm:$0xe]
    %v3881 = vld [vmem:[#allocation2 + $0x34] sm:$0x1]
    %v3882 = vld [vmem:[#allocation2 + $0x38] sm:$0xe]
    %v3883 = vld [vmem:[#allocation2 + $0x3c] sm:$0x1]
    %v3884 = vld [vmem:[#allocation2 + $0x40] sm:$0xe]
    %v3885 = vld [vmem:[#allocation2 + $0x44] sm:$0x1]
    %v3886 = vld [vmem:[#allocation2 + $0x48] sm:$0xe]
    %v3887 = vld [vmem:[#allocation2 + $0x4c] sm:$0x1]
    %v3888 = vld [vmem:[#allocation2 + $0x50] sm:$0xe]
    %v3889 = vld [vmem:[#allocation2 + $0x54] sm:$0x1]
    %v3890 = vld [vmem:[#allocation2 + $0x58] sm:$0xe]
    %v3891 = vld [vmem:[#allocation2 + $0x5c] sm:$0x1]
    %v3892 = vld [vmem:[#allocation2 + $0x60] sm:$0xe]
    %v3893 = vld [vmem:[#allocation2 + $0x64] sm:$0x1]
    %v3894 = vld [vmem:[#allocation2 + $0x68] sm:$0xe]
    %v3895 = vld [vmem:[#allocation2 + $0x6c] sm:$0x1]
    %v3896 = vld [vmem:[#allocation2 + $0x70] sm:$0xe]
    %v3897 = vld [vmem:[#allocation2 + $0x74] sm:$0x1]
    %v3898 = vld [vmem:[#allocation2 + $0x78] sm:$0xe]
    %v3899 = vld [vmem:[#allocation2 + $0x7c] sm:$0x1]
    %v3900 = vld [vmem:[#allocation2 + $0x80] sm:$0xe]
    %v3901 = vld [vmem:[#allocation2 + $0x84] sm:$0x1]
    %v3902 = vld [vmem:[#allocation2 + $0x88] sm:$0xe]
    %v3903 = vld [vmem:[#allocation2 + $0x8c] sm:$0x1]
    %v3904 = vld [vmem:[#allocation2 + $0x90] sm:$0xe]
    %v3905 = vld [vmem:[#allocation2 + $0x94] sm:$0x1]
    %v3906 = vld [vmem:[#allocation2 + $0x98] sm:$0xe]
    %v3907 = vld [vmem:[#allocation2 + $0x9c] sm:$0x1]
    %v3948 = vrot.slane %v3868, 5
    %v3949 = vrot.slane %v3948, 4
    %v3950 = vrot.slane %v3869, 5
    %v3951 = vsel %vm1027, %v3949, %v3950
    %v3952 = vrot.slane %v3870, 5
    %v3953 = vrot.slane %v3952, 4
    %v3954 = vrot.slane %v3871, 5
    %v3955 = vsel %vm1027, %v3953, %v3954
    %v3956 = vrot.slane %v3872, 5
    %v3957 = vrot.slane %v3956, 4
    %v3958 = vrot.slane %v3873, 5
    %v3959 = vsel %vm1027, %v3957, %v3958
    %v3960 = vrot.slane %v3874, 5
    %v3961 = vrot.slane %v3960, 4
    %v3962 = vrot.slane %v3875, 5
    %v3963 = vsel %vm1027, %v3961, %v3962
    %v3964 = vrot.slane %v3876, 5
    %v3965 = vrot.slane %v3964, 4
    %v3966 = vrot.slane %v3877, 5
    %v3967 = vsel %vm1027, %v3965, %v3966
    %v3968 = vrot.slane %v3878, 5
    %v3969 = vrot.slane %v3968, 4
    %v3970 = vrot.slane %v3879, 5
    %v3971 = vsel %vm1027, %v3969, %v3970
    %v3972 = vrot.slane %v3880, 5
    %v3973 = vrot.slane %v3972, 4
    %v3974 = vrot.slane %v3881, 5
    %v3975 = vsel %vm1027, %v3973, %v3974
    %v3976 = vrot.slane %v3882, 5
    %v3977 = vrot.slane %v3976, 4
    %v3978 = vrot.slane %v3883, 5
    %v3979 = vsel %vm1027, %v3977, %v3978
    %v3980 = vrot.slane %v3884, 5
    %v3981 = vrot.slane %v3980, 4
    %v3982 = vrot.slane %v3885, 5
    %v3983 = vsel %vm1027, %v3981, %v3982
    %v3984 = vrot.slane %v3886, 5
    %v3985 = vrot.slane %v3984, 4
    %v3986 = vrot.slane %v3887, 5
    %v3987 = vsel %vm1027, %v3985, %v3986
    %v3988 = vrot.slane %v3888, 5
    %v3989 = vrot.slane %v3988, 4
    %v3990 = vrot.slane %v3889, 5
    %v3991 = vsel %vm1027, %v3989, %v3990
    %v3992 = vrot.slane %v3890, 5
    %v3993 = vrot.slane %v3992, 4
    %v3994 = vrot.slane %v3891, 5
    %v3995 = vsel %vm1027, %v3993, %v3994
    %v3996 = vrot.slane %v3892, 5
    %v3997 = vrot.slane %v3996, 4
    %v3998 = vrot.slane %v3893, 5
    %v3999 = vsel %vm1027, %v3997, %v3998
    %v4000 = vrot.slane %v3894, 5
    %v4001 = vrot.slane %v4000, 4
    %v4002 = vrot.slane %v3895, 5
    %v4003 = vsel %vm1027, %v4001, %v4002
    %v4004 = vrot.slane %v3896, 5
    %v4005 = vrot.slane %v4004, 4
    %v4006 = vrot.slane %v3897, 5
    %v4007 = vsel %vm1027, %v4005, %v4006
    %v4008 = vrot.slane %v3898, 5
    %v4009 = vrot.slane %v4008, 4
    %v4010 = vrot.slane %v3899, 5
    %v4011 = vsel %vm1027, %v4009, %v4010
    %v4012 = vrot.slane %v3900, 5
    %v4013 = vrot.slane %v4012, 4
    %v4014 = vrot.slane %v3901, 5
    %v4015 = vsel %vm1027, %v4013, %v4014
    %v4016 = vrot.slane %v3902, 5
    %v4017 = vrot.slane %v4016, 4
    %v4018 = vrot.slane %v3903, 5
    %v4019 = vsel %vm1027, %v4017, %v4018
    %v4020 = vrot.slane %v3904, 5
    %v4021 = vrot.slane %v4020, 4
    %v4022 = vrot.slane %v3905, 5
    %v4023 = vsel %vm1027, %v4021, %v4022
    %v4024 = vrot.slane %v3906, 5
    %v4025 = vrot.slane %v4024, 4
    %v4026 = vrot.slane %v3907, 5
    %v4027 = vsel %vm1027, %v4025, %v4026
    %4048 = vst [vmem:[#allocation3 + $0x8] sm:$0xf] %v3951
    %4049 = vst [vmem:[#allocation3 + $0x14] sm:$0xf] %v3955
    %4050 = vst [vmem:[#allocation3 + $0x20] sm:$0xf] %v3959
    %4051 = vst [vmem:[#allocation3 + $0x2c] sm:$0xf] %v3963
    %4052 = vst [vmem:[#allocation3 + $0x38] sm:$0xf] %v3967
    %4053 = vst [vmem:[#allocation3 + $0x44] sm:$0xf] %v3971
    %4054 = vst [vmem:[#allocation3 + $0x50] sm:$0xf] %v3975
    %4055 = vst [vmem:[#allocation3 + $0x5c] sm:$0xf] %v3979
    %4056 = vst [vmem:[#allocation3 + $0x68] sm:$0xf] %v3983
    %4057 = vst [vmem:[#allocation3 + $0x74] sm:$0xf] %v3987
    %4058 = vst [vmem:[#allocation3 + $0x80] sm:$0xf] %v3991
    %4059 = vst [vmem:[#allocation3 + $0x8c] sm:$0xf] %v3995
    %4060 = vst [vmem:[#allocation3 + $0x98] sm:$0xf] %v3999
    %4061 = vst [vmem:[#allocation3 + $0xa4] sm:$0xf] %v4003
    %4062 = vst [vmem:[#allocation3 + $0xb0] sm:$0xf] %v4007
    %4063 = vst [vmem:[#allocation3 + $0xbc] sm:$0xf] %v4011
    %4064 = vst [vmem:[#allocation3 + $0xc8] sm:$0xf] %v4015
    %4065 = vst [vmem:[#allocation3 + $0xd4] sm:$0xf] %v4019
    %4066 = vst [vmem:[#allocation3 + $0xe0] sm:$0xf] %v4023
    %4067 = vst [vmem:[#allocation3 + $0xec] sm:$0xf] %v4027
    %v4068 = vld [vmem:[#allocation3] sm:$0xff]
    %v4069 = vld [vmem:[#allocation3 + $0x8] sm:$0xf]
    %v4070 = vld [vmem:[#allocation3 + $0xc] sm:$0xff]
    %v4071 = vld [vmem:[#allocation3 + $0x14] sm:$0xf]
    %v4072 = vld [vmem:[#allocation3 + $0x18] sm:$0xff]
    %v4073 = vld [vmem:[#allocation3 + $0x20] sm:$0xf]
    %v4074 = vld [vmem:[#allocation3 + $0x24] sm:$0xff]
    %v4075 = vld [vmem:[#allocation3 + $0x2c] sm:$0xf]
    %v4076 = vld [vmem:[#allocation3 + $0x30] sm:$0xff]
    %v4077 = vld [vmem:[#allocation3 + $0x38] sm:$0xf]
    %v4078 = vld [vmem:[#allocation3 + $0x3c] sm:$0xff]
    %v4079 = vld [vmem:[#allocation3 + $0x44] sm:$0xf]
    %v4080 = vld [vmem:[#allocation3 + $0x48] sm:$0xff]
    %v4081 = vld [vmem:[#allocation3 + $0x50] sm:$0xf]
    %v4082 = vld [vmem:[#allocation3 + $0x54] sm:$0xff]
    %v4083 = vld [vmem:[#allocation3 + $0x5c] sm:$0xf]
    %v4084 = vld [vmem:[#allocation9] sm:$0xf]
    %v4085 = vld [vmem:[#allocation9 + $0x4] sm:$0xf]
    %v4086 = vld [vmem:[#allocation9 + $0x8] sm:$0xf]
    %v4087 = vld [vmem:[#allocation9 + $0xc] sm:$0xf]
    %v4088 = vld [vmem:[#allocation9 + $0x10] sm:$0xf]
    %v4089 = vld [vmem:[#allocation9 + $0x14] sm:$0xf]
    %v4090 = vld [vmem:[#allocation9 + $0x18] sm:$0xf]
    %v4091 = vld [vmem:[#allocation9 + $0x1c] sm:$0xf]
    %v4092 = vld [vmem:[#allocation9 + $0x20] sm:$0xf]
    %v4093 = vld [vmem:[#allocation9 + $0x24] sm:$0xf]
    %v4094 = vld [vmem:[#allocation9 + $0x28] sm:$0xf]
    %v4095 = vld [vmem:[#allocation9 + $0x2c] sm:$0xf]
    %v4096 = vld [vmem:[#allocation9 + $0x30] sm:$0xf]
    %v4097 = vld [vmem:[#allocation9 + $0x34] sm:$0xf]
    %v4098 = vld [vmem:[#allocation9 + $0x38] sm:$0xf]
    %v4099 = vld [vmem:[#allocation9 + $0x3c] sm:$0xf]
    %v4100 = vld [vmem:[#allocation9 + $0x40] sm:$0xf]
    %v4101 = vld [vmem:[#allocation9 + $0x44] sm:$0xf]
    %v4102 = vld [vmem:[#allocation9 + $0x48] sm:$0xf]
    %v4103 = vld [vmem:[#allocation9 + $0x4c] sm:$0xf]
    %v4104 = vld [vmem:[#allocation9 + $0x50] sm:$0xf]
    %v4105 = vld [vmem:[#allocation9 + $0x54] sm:$0xf]
    %v4106 = vld [vmem:[#allocation9 + $0x58] sm:$0xf]
    %v4107 = vld [vmem:[#allocation9 + $0x5c] sm:$0xf]
    %v4108 = vld [vmem:[#allocation9 + $0x60] sm:$0xf]
    %v4109 = vld [vmem:[#allocation9 + $0x64] sm:$0xf]
    %v4110 = vld [vmem:[#allocation9 + $0x68] sm:$0xf]
    %v4111 = vld [vmem:[#allocation9 + $0x6c] sm:$0xf]
    %v4112 = vld [vmem:[#allocation9 + $0x70] sm:$0xf]
    %v4113 = vld [vmem:[#allocation9 + $0x74] sm:$0xf]
    %v4114 = vld [vmem:[#allocation9 + $0x78] sm:$0xf]
    %v4115 = vld [vmem:[#allocation9 + $0x7c] sm:$0xf]
    %v4116 = vld [vmem:[#allocation9 + $0x80] sm:$0xf]
    %v4117 = vld [vmem:[#allocation9 + $0x84] sm:$0xf]
    %v4118 = vld [vmem:[#allocation9 + $0x88] sm:$0xf]
    %v4119 = vld [vmem:[#allocation9 + $0x8c] sm:$0xf]
    %v4120 = vld [vmem:[#allocation9 + $0x90] sm:$0xf]
    %v4121 = vld [vmem:[#allocation9 + $0x94] sm:$0xf]
    %v4122 = vld [vmem:[#allocation9 + $0x98] sm:$0xf]
    %v4123 = vld [vmem:[#allocation9 + $0x9c] sm:$0xf]
    %v4124 = vld [vmem:[#allocation9 + $0xa0] sm:$0xf]
    %v4125 = vld [vmem:[#allocation9 + $0xa4] sm:$0xf]
    %v4126 = vld [vmem:[#allocation9 + $0xa8] sm:$0xf]
    %v4127 = vld [vmem:[#allocation9 + $0xac] sm:$0xf]
    %v4128 = vld [vmem:[#allocation9 + $0xb0] sm:$0xf]
    %v4129 = vld [vmem:[#allocation9 + $0xb4] sm:$0xf]
    %v4130 = vld [vmem:[#allocation9 + $0xb8] sm:$0xf]
    %v4131 = vld [vmem:[#allocation9 + $0xbc] sm:$0xf]
    %v4132 = vld [vmem:[%s1212] sm:$0xff]
    %v4133 = vld [vmem:[%s1212 + $0x8] sm:$0xf]
    %v4134 = vld [vmem:[%s1212 + $0xc] sm:$0xff]
    %v4135 = vld [vmem:[%s1212 + $0x14] sm:$0xf]
    %v4136 = vld [vmem:[%s1212 + $0x18] sm:$0xff]
    %v4137 = vld [vmem:[%s1212 + $0x20] sm:$0xf]
    %v4138 = vld [vmem:[%s1212 + $0x24] sm:$0xff]
    %v4139 = vld [vmem:[%s1212 + $0x2c] sm:$0xf]
    %v4140 = vld [vmem:[%s1212 + $0x30] sm:$0xff]
    %v4141 = vld [vmem:[%s1212 + $0x38] sm:$0xf]
    %v4142 = vld [vmem:[%s1212 + $0x3c] sm:$0xff]
    %v4143 = vld [vmem:[%s1212 + $0x44] sm:$0xf]
    %v4144 = vld [vmem:[%s1212 + $0x48] sm:$0xff]
    %v4145 = vld [vmem:[%s1212 + $0x50] sm:$0xf]
    %v4146 = vld [vmem:[%s1212 + $0x54] sm:$0xff]
    %v4147 = vld [vmem:[%s1212 + $0x5c] sm:$0xf]
    %s4148 = scalar_lea.vmem [#allocation9], 192
    %v4149 = vld [vmem:[%s4148] sm:$0xf]
    %v4150 = vld [vmem:[%s4148 + $0x4] sm:$0xf]
    %v4151 = vld [vmem:[%s4148 + $0x8] sm:$0xf]
    %v4152 = vld [vmem:[%s4148 + $0xc] sm:$0xf]
    %v4153 = vld [vmem:[%s4148 + $0x10] sm:$0xf]
    %v4154 = vld [vmem:[%s4148 + $0x14] sm:$0xf]
    %v4155 = vld [vmem:[%s4148 + $0x18] sm:$0xf]
    %v4156 = vld [vmem:[%s4148 + $0x1c] sm:$0xf]
    %v4157 = vld [vmem:[%s4148 + $0x20] sm:$0xf]
    %v4158 = vld [vmem:[%s4148 + $0x24] sm:$0xf]
    %v4159 = vld [vmem:[%s4148 + $0x28] sm:$0xf]
    %v4160 = vld [vmem:[%s4148 + $0x2c] sm:$0xf]
    %v4161 = vld [vmem:[%s4148 + $0x30] sm:$0xf]
    %v4162 = vld [vmem:[%s4148 + $0x34] sm:$0xf]
    %v4163 = vld [vmem:[%s4148 + $0x38] sm:$0xf]
    %v4164 = vld [vmem:[%s4148 + $0x3c] sm:$0xf]
    %v4165 = vld [vmem:[%s4148 + $0x40] sm:$0xf]
    %v4166 = vld [vmem:[%s4148 + $0x44] sm:$0xf]
    %v4167 = vld [vmem:[%s4148 + $0x48] sm:$0xf]
    %v4168 = vld [vmem:[%s4148 + $0x4c] sm:$0xf]
    %v4169 = vld [vmem:[%s4148 + $0x50] sm:$0xf]
    %v4170 = vld [vmem:[%s4148 + $0x54] sm:$0xf]
    %v4171 = vld [vmem:[%s4148 + $0x58] sm:$0xf]
    %v4172 = vld [vmem:[%s4148 + $0x5c] sm:$0xf]
    %v4173 = vld [vmem:[%s4148 + $0x60] sm:$0xf]
    %v4174 = vld [vmem:[%s4148 + $0x64] sm:$0xf]
    %v4175 = vld [vmem:[%s4148 + $0x68] sm:$0xf]
    %v4176 = vld [vmem:[%s4148 + $0x6c] sm:$0xf]
    %v4177 = vld [vmem:[%s4148 + $0x70] sm:$0xf]
    %v4178 = vld [vmem:[%s4148 + $0x74] sm:$0xf]
    %v4179 = vld [vmem:[%s4148 + $0x78] sm:$0xf]
    %v4180 = vld [vmem:[%s4148 + $0x7c] sm:$0xf]
    %v4181 = vld [vmem:[%s4148 + $0x80] sm:$0xf]
    %v4182 = vld [vmem:[%s4148 + $0x84] sm:$0xf]
    %v4183 = vld [vmem:[%s4148 + $0x88] sm:$0xf]
    %v4184 = vld [vmem:[%s4148 + $0x8c] sm:$0xf]
    %v4185 = vld [vmem:[%s4148 + $0x90] sm:$0xf]
    %v4186 = vld [vmem:[%s4148 + $0x94] sm:$0xf]
    %v4187 = vld [vmem:[%s4148 + $0x98] sm:$0xf]
    %v4188 = vld [vmem:[%s4148 + $0x9c] sm:$0xf]
    %v4189 = vld [vmem:[%s4148 + $0xa0] sm:$0xf]
    %v4190 = vld [vmem:[%s4148 + $0xa4] sm:$0xf]
    %v4191 = vld [vmem:[%s4148 + $0xa8] sm:$0xf]
    %v4192 = vld [vmem:[%s4148 + $0xac] sm:$0xf]
    %v4193 = vld [vmem:[%s4148 + $0xb0] sm:$0xf]
    %v4194 = vld [vmem:[%s4148 + $0xb4] sm:$0xf]
    %v4195 = vld [vmem:[%s4148 + $0xb8] sm:$0xf]
    %v4196 = vld [vmem:[%s4148 + $0xbc] sm:$0xf]
    %v4213 = vunpack.c.l.b16 %v4132
    %v4214 = vunpack.c.h.b16 %v4132
    %v4215 = vunpack.c.l.b16 %v4133
    %v4216 = vunpack.c.l.b16 %v4134
    %v4217 = vunpack.c.h.b16 %v4134
    %v4218 = vunpack.c.l.b16 %v4135
    %v4219 = vunpack.c.l.b16 %v4136
    %v4220 = vunpack.c.h.b16 %v4136
    %v4221 = vunpack.c.l.b16 %v4137
    %v4222 = vunpack.c.l.b16 %v4138
    %v4223 = vunpack.c.h.b16 %v4138
    %v4224 = vunpack.c.l.b16 %v4139
    %v4225 = vunpack.c.l.b16 %v4140
    %v4226 = vunpack.c.h.b16 %v4140
    %v4227 = vunpack.c.l.b16 %v4141
    %v4228 = vunpack.c.l.b16 %v4142
    %v4229 = vunpack.c.h.b16 %v4142
    %v4230 = vunpack.c.l.b16 %v4143
    %v4231 = vunpack.c.l.b16 %v4144
    %v4232 = vunpack.c.h.b16 %v4144
    %v4233 = vunpack.c.l.b16 %v4145
    %v4234 = vunpack.c.l.b16 %v4146
    %v4235 = vunpack.c.h.b16 %v4146
    %v4236 = vunpack.c.l.b16 %v4147
    %v4237 = vpack.c.b16 %v4216, %v4213
    %v4238 = vpack.c.b16 %v4217, %v4214
    %v4239 = vpack.c.b16 %v4218, %v4215
    %v4240 = vpack.c.b16 %v4222, %v4219
    %v4241 = vpack.c.b16 %v4223, %v4220
    %v4242 = vpack.c.b16 %v4224, %v4221
    %v4243 = vpack.c.b16 %v4228, %v4225
    %v4244 = vpack.c.b16 %v4229, %v4226
    %v4245 = vpack.c.b16 %v4230, %v4227
    %v4246 = vpack.c.b16 %v4234, %v4231
    %v4247 = vpack.c.b16 %v4235, %v4232
    %v4248 = vpack.c.b16 %v4236, %v4233
    %v4309 = vunpack.c.l.b16 %v4149
    %v4310 = vunpack.c.l.b16 %v4150
    %v4311 = vunpack.c.l.b16 %v4151
    %v4312 = vunpack.c.l.b16 %v4152
    %v4313 = vunpack.c.l.b16 %v4153
    %v4314 = vunpack.c.l.b16 %v4154
    %v4315 = vunpack.c.l.b16 %v4155
    %v4316 = vunpack.c.l.b16 %v4156
    %v4317 = vunpack.c.l.b16 %v4157
    %v4318 = vunpack.c.l.b16 %v4158
    %v4319 = vunpack.c.l.b16 %v4159
    %v4320 = vunpack.c.l.b16 %v4160
    %v4321 = vunpack.c.l.b16 %v4161
    %v4322 = vunpack.c.l.b16 %v4162
    %v4323 = vunpack.c.l.b16 %v4163
    %v4324 = vunpack.c.l.b16 %v4164
    %v4325 = vunpack.c.l.b16 %v4165
    %v4326 = vunpack.c.l.b16 %v4166
    %v4327 = vunpack.c.l.b16 %v4167
    %v4328 = vunpack.c.l.b16 %v4168
    %v4329 = vunpack.c.l.b16 %v4169
    %v4330 = vunpack.c.l.b16 %v4170
    %v4331 = vunpack.c.l.b16 %v4171
    %v4332 = vunpack.c.l.b16 %v4172
    %v4333 = vunpack.c.l.b16 %v4173
    %v4334 = vunpack.c.l.b16 %v4174
    %v4335 = vunpack.c.l.b16 %v4175
    %v4336 = vunpack.c.l.b16 %v4176
    %v4337 = vunpack.c.l.b16 %v4177
    %v4338 = vunpack.c.l.b16 %v4178
    %v4339 = vunpack.c.l.b16 %v4179
    %v4340 = vunpack.c.l.b16 %v4180
    %v4341 = vunpack.c.l.b16 %v4181
    %v4342 = vunpack.c.l.b16 %v4182
    %v4343 = vunpack.c.l.b16 %v4183
    %v4344 = vunpack.c.l.b16 %v4184
    %v4345 = vunpack.c.l.b16 %v4185
    %v4346 = vunpack.c.l.b16 %v4186
    %v4347 = vunpack.c.l.b16 %v4187
    %v4348 = vunpack.c.l.b16 %v4188
    %v4349 = vunpack.c.l.b16 %v4189
    %v4350 = vunpack.c.l.b16 %v4190
    %v4351 = vunpack.c.l.b16 %v4191
    %v4352 = vunpack.c.l.b16 %v4192
    %v4353 = vunpack.c.l.b16 %v4193
    %v4354 = vunpack.c.l.b16 %v4194
    %v4355 = vunpack.c.l.b16 %v4195
    %v4356 = vunpack.c.l.b16 %v4196
    %v4357 = vpack.c.b16 %v4310, %v4309
    %v4358 = vpack.c.b16 %v4312, %v4311
    %v4359 = vpack.c.b16 %v4314, %v4313
    %v4360 = vpack.c.b16 %v4316, %v4315
    %v4361 = vpack.c.b16 %v4318, %v4317
    %v4362 = vpack.c.b16 %v4320, %v4319
    %v4363 = vpack.c.b16 %v4322, %v4321
    %v4364 = vpack.c.b16 %v4324, %v4323
    %v4365 = vpack.c.b16 %v4326, %v4325
    %v4366 = vpack.c.b16 %v4328, %v4327
    %v4367 = vpack.c.b16 %v4330, %v4329
    %v4368 = vpack.c.b16 %v4332, %v4331
    %v4369 = vpack.c.b16 %v4334, %v4333
    %v4370 = vpack.c.b16 %v4336, %v4335
    %v4371 = vpack.c.b16 %v4338, %v4337
    %v4372 = vpack.c.b16 %v4340, %v4339
    %v4373 = vpack.c.b16 %v4342, %v4341
    %v4374 = vpack.c.b16 %v4344, %v4343
    %v4375 = vpack.c.b16 %v4346, %v4345
    %v4376 = vpack.c.b16 %v4348, %v4347
    %v4377 = vpack.c.b16 %v4350, %v4349
    %v4378 = vpack.c.b16 %v4352, %v4351
    %v4379 = vpack.c.b16 %v4354, %v4353
    %v4380 = vpack.c.b16 %v4356, %v4355
    %4405 = vmatprep.subr.bf16.mxu0 0
    %4406 = vmatpush1.bf16.msra.mxu0 %v4364
    %4407 = vmatprep.subr.bf16.mxu0 0
    %4408 = vmatpush1.bf16.msra.mxu0 %v4363
    %4409 = vmatprep.subr.bf16.mxu0 0
    %4410 = vmatpush1.bf16.msra.mxu0 %v4362
    %4411 = vmatprep.subr.bf16.mxu0 0
    %4412 = vmatpush1.bf16.msra.mxu0 %v4361
    %4413 = vmatprep.subr.bf16.mxu0 0
    %4414 = vmatpush1.bf16.msra.mxu0 %v4360
    %4415 = vmatprep.subr.bf16.mxu0 0
    %4416 = vmatpush1.bf16.msra.mxu0 %v4359
    %4417 = vmatprep.subr.bf16.mxu0 0
    %4418 = vmatpush1.bf16.msra.mxu0 %v4358
    %4419 = vmatprep.subr.bf16.mxu0 0
    %4420 = vmatpush1.bf16.msra.mxu0 %v4357
    %4421 = vmatprep.subr.bf16.mxu0 0
    %4422 = vmatpush2.bf16.msra.mxu0 %v4372
    %4423 = vmatprep.subr.bf16.mxu0 0
    %4424 = vmatpush2.bf16.msra.mxu0 %v4371
    %4425 = vmatprep.subr.bf16.mxu0 0
    %4426 = vmatpush2.bf16.msra.mxu0 %v4370
    %4427 = vmatprep.subr.bf16.mxu0 0
    %4428 = vmatpush2.bf16.msra.mxu0 %v4369
    %4429 = vmatprep.subr.bf16.mxu0 0
    %4430 = vmatpush2.bf16.msra.mxu0 %v4368
    %4431 = vmatprep.subr.bf16.mxu0 0
    %4432 = vmatpush2.bf16.msra.mxu0 %v4367
    %4433 = vmatprep.subr.bf16.mxu0 0
    %4434 = vmatpush2.bf16.msra.mxu0 %v4366
    %4435 = vmatprep.subr.bf16.mxu0 0
    %4436 = vmatpush2.bf16.msra.mxu0 %v4365
    %4437 = vmatprep.mubr.bf16.mxu0 %v4238
    %4438 = vmatmul.mubr.bf16.gmra.mxu0 %v4237
    %v4439 = vpop.f32.mrf.mxu0
    %v4440 = vadd.f32 0.0, %v4439
    %v4441 = vpop.f32.mrf.mxu0
    %v4442 = vpop.f32.mrf.mxu0
    %v4443 = vadd.f32 0.0, %v4442
    %v4444 = vpop.f32.mrf.mxu0
    %4445 = vmatprep.mubr.bf16.mxu0 %v4241
    %4446 = vmatmul.mubr.bf16.gmra.mxu0 %v4240
    %v4447 = vpop.f32.mrf.mxu0
    %v4448 = vadd.f32 0.0, %v4447
    %v4449 = vpop.f32.mrf.mxu0
    %v4450 = vpop.f32.mrf.mxu0
    %v4451 = vadd.f32 0.0, %v4450
    %v4452 = vpop.f32.mrf.mxu0
    %4453 = vmatprep.mubr.bf16.mxu0 %v4244
    %4454 = vmatmul.mubr.bf16.gmra.mxu0 %v4243
    %v4455 = vpop.f32.mrf.mxu0
    %v4456 = vadd.f32 0.0, %v4455
    %v4457 = vpop.f32.mrf.mxu0
    %v4458 = vpop.f32.mrf.mxu0
    %v4459 = vadd.f32 0.0, %v4458
    %v4460 = vpop.f32.mrf.mxu0
    %4461 = vmatprep.mubr.bf16.mxu0 %v4247
    %4462 = vmatmul.mubr.bf16.gmra.mxu0 %v4246
    %v4463 = vpop.f32.mrf.mxu0
    %v4464 = vadd.f32 0.0, %v4463
    %v4465 = vpop.f32.mrf.mxu0
    %v4466 = vpop.f32.mrf.mxu0
    %v4467 = vadd.f32 0.0, %v4466
    %v4468 = vpop.f32.mrf.mxu0
    %4469 = vdwg.mxu0
    %4470 = vmatprep.subr.bf16.mxu0 0
    %4471 = vmatpush1.bf16.msra.mxu0 %v4380
    %4472 = vmatprep.subr.bf16.mxu0 0
    %4473 = vmatpush1.bf16.msra.mxu0 %v4379
    %4474 = vmatprep.subr.bf16.mxu0 0
    %4475 = vmatpush1.bf16.msra.mxu0 %v4378
    %4476 = vmatprep.subr.bf16.mxu0 0
    %4477 = vmatpush1.bf16.msra.mxu0 %v4377
    %4478 = vmatprep.subr.bf16.mxu0 0
    %4479 = vmatpush1.bf16.msra.mxu0 %v4376
    %4480 = vmatprep.subr.bf16.mxu0 0
    %4481 = vmatpush1.bf16.msra.mxu0 %v4375
    %4482 = vmatprep.subr.bf16.mxu0 0
    %4483 = vmatpush1.bf16.msra.mxu0 %v4374
    %4484 = vmatprep.subr.bf16.mxu0 0
    %4485 = vmatpush1.bf16.msra.mxu0 %v4373
    %4486 = vmatprep.subr.bf16.mxu0 0
    %4487 = vmatpush2.bf16.msra.mxu0 0
    %4488 = vmatprep.subr.bf16.mxu0 0
    %4489 = vmatpush2.bf16.msra.mxu0 0
    %4490 = vmatprep.subr.bf16.mxu0 0
    %4491 = vmatpush2.bf16.msra.mxu0 0
    %4492 = vmatprep.subr.bf16.mxu0 0
    %4493 = vmatpush2.bf16.msra.mxu0 0
    %4494 = vmatprep.subr.bf16.mxu0 0
    %4495 = vmatpush2.bf16.msra.mxu0 0
    %4496 = vmatprep.subr.bf16.mxu0 0
    %4497 = vmatpush2.bf16.msra.mxu0 0
    %4498 = vmatprep.subr.bf16.mxu0 0
    %4499 = vmatpush2.bf16.msra.mxu0 0
    %4500 = vmatprep.subr.bf16.mxu0 0
    %4501 = vmatpush2.bf16.msra.mxu0 0
    %4502 = vmatprep.mubr.bf16.mxu0 0
    %4503 = vmatmul.mubr.bf16.gmra.mxu0 %v4239
    %v4504 = vpop.f32.mrf.mxu0
    %v4505 = vadd.f32 %v4440, %v4504
    %v4506 = vpop.f32.mrf.mxu0
    %v4507 = vpop.f32.mrf.mxu0
    %v4508 = vadd.f32 %v4443, %v4507
    %v4509 = vpop.f32.mrf.mxu0
    %4510 = vmatprep.mubr.bf16.mxu0 0
    %4511 = vmatmul.mubr.bf16.gmra.mxu0 %v4242
    %v4512 = vpop.f32.mrf.mxu0
    %v4513 = vadd.f32 %v4448, %v4512
    %v4514 = vpop.f32.mrf.mxu0
    %v4515 = vpop.f32.mrf.mxu0
    %v4516 = vadd.f32 %v4451, %v4515
    %v4517 = vpop.f32.mrf.mxu0
    %4518 = vmatprep.mubr.bf16.mxu0 0
    %4519 = vmatmul.mubr.bf16.gmra.mxu0 %v4245
    %v4520 = vpop.f32.mrf.mxu0
    %v4521 = vadd.f32 %v4456, %v4520
    %v4522 = vpop.f32.mrf.mxu0
    %v4523 = vpop.f32.mrf.mxu0
    %v4524 = vadd.f32 %v4459, %v4523
    %v4525 = vpop.f32.mrf.mxu0
    %4526 = vmatprep.mubr.bf16.mxu0 0
    %4527 = vmatmul.mubr.bf16.gmra.mxu0 %v4248
    %v4528 = vpop.f32.mrf.mxu0
    %v4529 = vadd.f32 %v4464, %v4528
    %v4530 = vpop.f32.mrf.mxu0
    %v4531 = vpop.f32.mrf.mxu0
    %v4532 = vadd.f32 %v4467, %v4531
    %v4533 = vpop.f32.mrf.mxu0
    %4534 = vdwg.mxu0
    %v4551 = vunpack.c.l.b16 %v4068
    %v4552 = vunpack.c.h.b16 %v4068
    %v4553 = vunpack.c.l.b16 %v4069
    %v4554 = vunpack.c.l.b16 %v4070
    %v4555 = vunpack.c.h.b16 %v4070
    %v4556 = vunpack.c.l.b16 %v4071
    %v4557 = vunpack.c.l.b16 %v4072
    %v4558 = vunpack.c.h.b16 %v4072
    %v4559 = vunpack.c.l.b16 %v4073
    %v4560 = vunpack.c.l.b16 %v4074
    %v4561 = vunpack.c.h.b16 %v4074
    %v4562 = vunpack.c.l.b16 %v4075
    %v4563 = vunpack.c.l.b16 %v4076
    %v4564 = vunpack.c.h.b16 %v4076
    %v4565 = vunpack.c.l.b16 %v4077
    %v4566 = vunpack.c.l.b16 %v4078
    %v4567 = vunpack.c.h.b16 %v4078
    %v4568 = vunpack.c.l.b16 %v4079
    %v4569 = vunpack.c.l.b16 %v4080
    %v4570 = vunpack.c.h.b16 %v4080
    %v4571 = vunpack.c.l.b16 %v4081
    %v4572 = vunpack.c.l.b16 %v4082
    %v4573 = vunpack.c.h.b16 %v4082
    %v4574 = vunpack.c.l.b16 %v4083
    %v4575 = vpack.c.b16 %v4554, %v4551
    %v4576 = vpack.c.b16 %v4555, %v4552
    %v4577 = vpack.c.b16 %v4556, %v4553
    %v4578 = vpack.c.b16 %v4560, %v4557
    %v4579 = vpack.c.b16 %v4561, %v4558
    %v4580 = vpack.c.b16 %v4562, %v4559
    %v4581 = vpack.c.b16 %v4566, %v4563
    %v4582 = vpack.c.b16 %v4567, %v4564
    %v4583 = vpack.c.b16 %v4568, %v4565
    %v4584 = vpack.c.b16 %v4572, %v4569
    %v4585 = vpack.c.b16 %v4573, %v4570
    %v4586 = vpack.c.b16 %v4574, %v4571
    %v4647 = vunpack.c.l.b16 %v4084
    %v4648 = vunpack.c.l.b16 %v4085
    %v4649 = vunpack.c.l.b16 %v4086
    %v4650 = vunpack.c.l.b16 %v4087
    %v4651 = vunpack.c.l.b16 %v4088
    %v4652 = vunpack.c.l.b16 %v4089
    %v4653 = vunpack.c.l.b16 %v4090
    %v4654 = vunpack.c.l.b16 %v4091
    %v4655 = vunpack.c.l.b16 %v4092
    %v4656 = vunpack.c.l.b16 %v4093
    %v4657 = vunpack.c.l.b16 %v4094
    %v4658 = vunpack.c.l.b16 %v4095
    %v4659 = vunpack.c.l.b16 %v4096
    %v4660 = vunpack.c.l.b16 %v4097
    %v4661 = vunpack.c.l.b16 %v4098
    %v4662 = vunpack.c.l.b16 %v4099
    %v4663 = vunpack.c.l.b16 %v4100
    %v4664 = vunpack.c.l.b16 %v4101
    %v4665 = vunpack.c.l.b16 %v4102
    %v4666 = vunpack.c.l.b16 %v4103
    %v4667 = vunpack.c.l.b16 %v4104
    %v4668 = vunpack.c.l.b16 %v4105
    %v4669 = vunpack.c.l.b16 %v4106
    %v4670 = vunpack.c.l.b16 %v4107
    %v4671 = vunpack.c.l.b16 %v4108
    %v4672 = vunpack.c.l.b16 %v4109
    %v4673 = vunpack.c.l.b16 %v4110
    %v4674 = vunpack.c.l.b16 %v4111
    %v4675 = vunpack.c.l.b16 %v4112
    %v4676 = vunpack.c.l.b16 %v4113
    %v4677 = vunpack.c.l.b16 %v4114
    %v4678 = vunpack.c.l.b16 %v4115
    %v4679 = vunpack.c.l.b16 %v4116
    %v4680 = vunpack.c.l.b16 %v4117
    %v4681 = vunpack.c.l.b16 %v4118
    %v4682 = vunpack.c.l.b16 %v4119
    %v4683 = vunpack.c.l.b16 %v4120
    %v4684 = vunpack.c.l.b16 %v4121
    %v4685 = vunpack.c.l.b16 %v4122
    %v4686 = vunpack.c.l.b16 %v4123
    %v4687 = vunpack.c.l.b16 %v4124
    %v4688 = vunpack.c.l.b16 %v4125
    %v4689 = vunpack.c.l.b16 %v4126
    %v4690 = vunpack.c.l.b16 %v4127
    %v4691 = vunpack.c.l.b16 %v4128
    %v4692 = vunpack.c.l.b16 %v4129
    %v4693 = vunpack.c.l.b16 %v4130
    %v4694 = vunpack.c.l.b16 %v4131
    %v4695 = vpack.c.b16 %v4648, %v4647
    %v4696 = vpack.c.b16 %v4650, %v4649
    %v4697 = vpack.c.b16 %v4652, %v4651
    %v4698 = vpack.c.b16 %v4654, %v4653
    %v4699 = vpack.c.b16 %v4656, %v4655
    %v4700 = vpack.c.b16 %v4658, %v4657
    %v4701 = vpack.c.b16 %v4660, %v4659
    %v4702 = vpack.c.b16 %v4662, %v4661
    %v4703 = vpack.c.b16 %v4664, %v4663
    %v4704 = vpack.c.b16 %v4666, %v4665
    %v4705 = vpack.c.b16 %v4668, %v4667
    %v4706 = vpack.c.b16 %v4670, %v4669
    %v4707 = vpack.c.b16 %v4672, %v4671
    %v4708 = vpack.c.b16 %v4674, %v4673
    %v4709 = vpack.c.b16 %v4676, %v4675
    %v4710 = vpack.c.b16 %v4678, %v4677
    %v4711 = vpack.c.b16 %v4680, %v4679
    %v4712 = vpack.c.b16 %v4682, %v4681
    %v4713 = vpack.c.b16 %v4684, %v4683
    %v4714 = vpack.c.b16 %v4686, %v4685
    %v4715 = vpack.c.b16 %v4688, %v4687
    %v4716 = vpack.c.b16 %v4690, %v4689
    %v4717 = vpack.c.b16 %v4692, %v4691
    %v4718 = vpack.c.b16 %v4694, %v4693
    %4743 = vmatprep.subr.bf16.mxu0 0
    %4744 = vmatpush1.bf16.msra.mxu0 %v4702
    %4745 = vmatprep.subr.bf16.mxu0 0
    %4746 = vmatpush1.bf16.msra.mxu0 %v4701
    %4747 = vmatprep.subr.bf16.mxu0 0
    %4748 = vmatpush1.bf16.msra.mxu0 %v4700
    %4749 = vmatprep.subr.bf16.mxu0 0
    %4750 = vmatpush1.bf16.msra.mxu0 %v4699
    %4751 = vmatprep.subr.bf16.mxu0 0
    %4752 = vmatpush1.bf16.msra.mxu0 %v4698
    %4753 = vmatprep.subr.bf16.mxu0 0
    %4754 = vmatpush1.bf16.msra.mxu0 %v4697
    %4755 = vmatprep.subr.bf16.mxu0 0
    %4756 = vmatpush1.bf16.msra.mxu0 %v4696
    %4757 = vmatprep.subr.bf16.mxu0 0
    %4758 = vmatpush1.bf16.msra.mxu0 %v4695
    %4759 = vmatprep.subr.bf16.mxu0 0
    %4760 = vmatpush2.bf16.msra.mxu0 %v4710
    %4761 = vmatprep.subr.bf16.mxu0 0
    %4762 = vmatpush2.bf16.msra.mxu0 %v4709
    %4763 = vmatprep.subr.bf16.mxu0 0
    %4764 = vmatpush2.bf16.msra.mxu0 %v4708
    %4765 = vmatprep.subr.bf16.mxu0 0
    %4766 = vmatpush2.bf16.msra.mxu0 %v4707
    %4767 = vmatprep.subr.bf16.mxu0 0
    %4768 = vmatpush2.bf16.msra.mxu0 %v4706
    %4769 = vmatprep.subr.bf16.mxu0 0
    %4770 = vmatpush2.bf16.msra.mxu0 %v4705
    %4771 = vmatprep.subr.bf16.mxu0 0
    %4772 = vmatpush2.bf16.msra.mxu0 %v4704
    %4773 = vmatprep.subr.bf16.mxu0 0
    %4774 = vmatpush2.bf16.msra.mxu0 %v4703
    %4775 = vmatprep.mubr.bf16.mxu0 %v4576
    %4776 = vmatmul.mubr.bf16.gmra.mxu0 %v4575
    %v4777 = vpop.f32.mrf.mxu0
    %v4778 = vadd.f32 %v4505, %v4777
    %v4779 = vpop.f32.mrf.mxu0
    %v4780 = vpop.f32.mrf.mxu0
    %v4781 = vadd.f32 %v4508, %v4780
    %v4782 = vpop.f32.mrf.mxu0
    %4783 = vmatprep.mubr.bf16.mxu0 %v4579
    %4784 = vmatmul.mubr.bf16.gmra.mxu0 %v4578
    %v4785 = vpop.f32.mrf.mxu0
    %v4786 = vadd.f32 %v4513, %v4785
    %v4787 = vpop.f32.mrf.mxu0
    %v4788 = vpop.f32.mrf.mxu0
    %v4789 = vadd.f32 %v4516, %v4788
    %v4790 = vpop.f32.mrf.mxu0
    %4791 = vmatprep.mubr.bf16.mxu0 %v4582
    %4792 = vmatmul.mubr.bf16.gmra.mxu0 %v4581
    %v4793 = vpop.f32.mrf.mxu0
    %v4794 = vadd.f32 %v4521, %v4793
    %v4795 = vpop.f32.mrf.mxu0
    %v4796 = vpop.f32.mrf.mxu0
    %v4797 = vadd.f32 %v4524, %v4796
    %v4798 = vpop.f32.mrf.mxu0
    %4799 = vmatprep.mubr.bf16.mxu0 %v4585
    %4800 = vmatmul.mubr.bf16.gmra.mxu0 %v4584
    %v4801 = vpop.f32.mrf.mxu0
    %v4802 = vadd.f32 %v4529, %v4801
    %v4803 = vpop.f32.mrf.mxu0
    %v4804 = vpop.f32.mrf.mxu0
    %v4805 = vadd.f32 %v4532, %v4804
    %v4806 = vpop.f32.mrf.mxu0
    %4807 = vdwg.mxu0
    %4808 = vmatprep.subr.bf16.mxu0 0
    %4809 = vmatpush1.bf16.msra.mxu0 %v4718
    %4810 = vmatprep.subr.bf16.mxu0 0
    %4811 = vmatpush1.bf16.msra.mxu0 %v4717
    %4812 = vmatprep.subr.bf16.mxu0 0
    %4813 = vmatpush1.bf16.msra.mxu0 %v4716
    %4814 = vmatprep.subr.bf16.mxu0 0
    %4815 = vmatpush1.bf16.msra.mxu0 %v4715
    %4816 = vmatprep.subr.bf16.mxu0 0
    %4817 = vmatpush1.bf16.msra.mxu0 %v4714
    %4818 = vmatprep.subr.bf16.mxu0 0
    %4819 = vmatpush1.bf16.msra.mxu0 %v4713
    %4820 = vmatprep.subr.bf16.mxu0 0
    %4821 = vmatpush1.bf16.msra.mxu0 %v4712
    %4822 = vmatprep.subr.bf16.mxu0 0
    %4823 = vmatpush1.bf16.msra.mxu0 %v4711
    %4824 = vmatprep.subr.bf16.mxu0 0
    %4825 = vmatpush2.bf16.msra.mxu0 0
    %4826 = vmatprep.subr.bf16.mxu0 0
    %4827 = vmatpush2.bf16.msra.mxu0 0
    %4828 = vmatprep.subr.bf16.mxu0 0
    %4829 = vmatpush2.bf16.msra.mxu0 0
    %4830 = vmatprep.subr.bf16.mxu0 0
    %4831 = vmatpush2.bf16.msra.mxu0 0
    %4832 = vmatprep.subr.bf16.mxu0 0
    %4833 = vmatpush2.bf16.msra.mxu0 0
    %4834 = vmatprep.subr.bf16.mxu0 0
    %4835 = vmatpush2.bf16.msra.mxu0 0
    %4836 = vmatprep.subr.bf16.mxu0 0
    %4837 = vmatpush2.bf16.msra.mxu0 0
    %4838 = vmatprep.subr.bf16.mxu0 0
    %4839 = vmatpush2.bf16.msra.mxu0 0
    %4840 = vmatprep.mubr.bf16.mxu0 0
    %4841 = vmatmul.mubr.bf16.gmra.mxu0 %v4577
    %v4842 = vpop.f32.mrf.mxu0
    %v4843 = vadd.f32 %v4778, %v4842
    %v4844 = vpop.f32.mrf.mxu0
    %v4845 = vpop.f32.mrf.mxu0
    %v4846 = vadd.f32 %v4781, %v4845
    %v4847 = vpop.f32.mrf.mxu0
    %4848 = vmatprep.mubr.bf16.mxu0 0
    %4849 = vmatmul.mubr.bf16.gmra.mxu0 %v4580
    %v4850 = vpop.f32.mrf.mxu0
    %v4851 = vadd.f32 %v4786, %v4850
    %v4852 = vpop.f32.mrf.mxu0
    %v4853 = vpop.f32.mrf.mxu0
    %v4854 = vadd.f32 %v4789, %v4853
    %v4855 = vpop.f32.mrf.mxu0
    %4856 = vmatprep.mubr.bf16.mxu0 0
    %4857 = vmatmul.mubr.bf16.gmra.mxu0 %v4583
    %v4858 = vpop.f32.mrf.mxu0
    %v4859 = vadd.f32 %v4794, %v4858
    %v4860 = vpop.f32.mrf.mxu0
    %v4861 = vpop.f32.mrf.mxu0
    %v4862 = vadd.f32 %v4797, %v4861
    %v4863 = vpop.f32.mrf.mxu0
    %4864 = vmatprep.mubr.bf16.mxu0 0
    %4865 = vmatmul.mubr.bf16.gmra.mxu0 %v4586
    %v4866 = vpop.f32.mrf.mxu0
    %v4867 = vadd.f32 %v4802, %v4866
    %v4868 = vpop.f32.mrf.mxu0
    %v4869 = vpop.f32.mrf.mxu0
    %v4870 = vadd.f32 %v4805, %v4869
    %v4871 = vpop.f32.mrf.mxu0
    %4872 = vdwg.mxu0
    %v4873 = vld [vmem:[%s1954] sm:$0xff]
    %v4874 = vld [vmem:[%s1954 + $0x8] sm:$0xf]
    %v4875 = vld [vmem:[%s1954 + $0xc] sm:$0xff]
    %v4876 = vld [vmem:[%s1954 + $0x14] sm:$0xf]
    %v4877 = vld [vmem:[%s1954 + $0x18] sm:$0xff]
    %v4878 = vld [vmem:[%s1954 + $0x20] sm:$0xf]
    %v4879 = vld [vmem:[%s1954 + $0x24] sm:$0xff]
    %v4880 = vld [vmem:[%s1954 + $0x2c] sm:$0xf]
    %v4881 = vld [vmem:[%s1954 + $0x30] sm:$0xff]
    %v4882 = vld [vmem:[%s1954 + $0x38] sm:$0xf]
    %v4883 = vld [vmem:[%s1954 + $0x3c] sm:$0xff]
    %v4884 = vld [vmem:[%s1954 + $0x44] sm:$0xf]
    %v4885 = vld [vmem:[%s1954 + $0x48] sm:$0xff]
    %v4886 = vld [vmem:[%s1954 + $0x50] sm:$0xf]
    %v4887 = vld [vmem:[%s1954 + $0x54] sm:$0xff]
    %v4888 = vld [vmem:[%s1954 + $0x5c] sm:$0xf]
    %s4889 = scalar_lea.vmem [#allocation9], 384
    %v4890 = vld [vmem:[%s4889] sm:$0xf]
    %v4891 = vld [vmem:[%s4889 + $0x4] sm:$0xf]
    %v4892 = vld [vmem:[%s4889 + $0x8] sm:$0xf]
    %v4893 = vld [vmem:[%s4889 + $0xc] sm:$0xf]
    %v4894 = vld [vmem:[%s4889 + $0x10] sm:$0xf]
    %v4895 = vld [vmem:[%s4889 + $0x14] sm:$0xf]
    %v4896 = vld [vmem:[%s4889 + $0x18] sm:$0xf]
    %v4897 = vld [vmem:[%s4889 + $0x1c] sm:$0xf]
    %v4898 = vld [vmem:[%s4889 + $0x20] sm:$0xf]
    %v4899 = vld [vmem:[%s4889 + $0x24] sm:$0xf]
    %v4900 = vld [vmem:[%s4889 + $0x28] sm:$0xf]
    %v4901 = vld [vmem:[%s4889 + $0x2c] sm:$0xf]
    %v4902 = vld [vmem:[%s4889 + $0x30] sm:$0xf]
    %v4903 = vld [vmem:[%s4889 + $0x34] sm:$0xf]
    %v4904 = vld [vmem:[%s4889 + $0x38] sm:$0xf]
    %v4905 = vld [vmem:[%s4889 + $0x3c] sm:$0xf]
    %v4906 = vld [vmem:[%s4889 + $0x40] sm:$0xf]
    %v4907 = vld [vmem:[%s4889 + $0x44] sm:$0xf]
    %v4908 = vld [vmem:[%s4889 + $0x48] sm:$0xf]
    %v4909 = vld [vmem:[%s4889 + $0x4c] sm:$0xf]
    %v4910 = vld [vmem:[%s4889 + $0x50] sm:$0xf]
    %v4911 = vld [vmem:[%s4889 + $0x54] sm:$0xf]
    %v4912 = vld [vmem:[%s4889 + $0x58] sm:$0xf]
    %v4913 = vld [vmem:[%s4889 + $0x5c] sm:$0xf]
    %v4914 = vld [vmem:[%s4889 + $0x60] sm:$0xf]
    %v4915 = vld [vmem:[%s4889 + $0x64] sm:$0xf]
    %v4916 = vld [vmem:[%s4889 + $0x68] sm:$0xf]
    %v4917 = vld [vmem:[%s4889 + $0x6c] sm:$0xf]
    %v4918 = vld [vmem:[%s4889 + $0x70] sm:$0xf]
    %v4919 = vld [vmem:[%s4889 + $0x74] sm:$0xf]
    %v4920 = vld [vmem:[%s4889 + $0x78] sm:$0xf]
    %v4921 = vld [vmem:[%s4889 + $0x7c] sm:$0xf]
    %v4922 = vld [vmem:[%s4889 + $0x80] sm:$0xf]
    %v4923 = vld [vmem:[%s4889 + $0x84] sm:$0xf]
    %v4924 = vld [vmem:[%s4889 + $0x88] sm:$0xf]
    %v4925 = vld [vmem:[%s4889 + $0x8c] sm:$0xf]
    %v4926 = vld [vmem:[%s4889 + $0x90] sm:$0xf]
    %v4927 = vld [vmem:[%s4889 + $0x94] sm:$0xf]
    %v4928 = vld [vmem:[%s4889 + $0x98] sm:$0xf]
    %v4929 = vld [vmem:[%s4889 + $0x9c] sm:$0xf]
    %v4930 = vld [vmem:[%s4889 + $0xa0] sm:$0xf]
    %v4931 = vld [vmem:[%s4889 + $0xa4] sm:$0xf]
    %v4932 = vld [vmem:[%s4889 + $0xa8] sm:$0xf]
    %v4933 = vld [vmem:[%s4889 + $0xac] sm:$0xf]
    %v4934 = vld [vmem:[%s4889 + $0xb0] sm:$0xf]
    %v4935 = vld [vmem:[%s4889 + $0xb4] sm:$0xf]
    %v4936 = vld [vmem:[%s4889 + $0xb8] sm:$0xf]
    %v4937 = vld [vmem:[%s4889 + $0xbc] sm:$0xf]
    %v4954 = vunpack.c.l.b16 %v4873
    %v4955 = vunpack.c.h.b16 %v4873
    %v4956 = vunpack.c.l.b16 %v4874
    %v4957 = vunpack.c.l.b16 %v4875
    %v4958 = vunpack.c.h.b16 %v4875
    %v4959 = vunpack.c.l.b16 %v4876
    %v4960 = vunpack.c.l.b16 %v4877
    %v4961 = vunpack.c.h.b16 %v4877
    %v4962 = vunpack.c.l.b16 %v4878
    %v4963 = vunpack.c.l.b16 %v4879
    %v4964 = vunpack.c.h.b16 %v4879
    %v4965 = vunpack.c.l.b16 %v4880
    %v4966 = vunpack.c.l.b16 %v4881
    %v4967 = vunpack.c.h.b16 %v4881
    %v4968 = vunpack.c.l.b16 %v4882
    %v4969 = vunpack.c.l.b16 %v4883
    %v4970 = vunpack.c.h.b16 %v4883
    %v4971 = vunpack.c.l.b16 %v4884
    %v4972 = vunpack.c.l.b16 %v4885
    %v4973 = vunpack.c.h.b16 %v4885
    %v4974 = vunpack.c.l.b16 %v4886
    %v4975 = vunpack.c.l.b16 %v4887
    %v4976 = vunpack.c.h.b16 %v4887
    %v4977 = vunpack.c.l.b16 %v4888
    %v4978 = vpack.c.b16 %v4957, %v4954
    %v4979 = vpack.c.b16 %v4958, %v4955
    %v4980 = vpack.c.b16 %v4959, %v4956
    %v4981 = vpack.c.b16 %v4963, %v4960
    %v4982 = vpack.c.b16 %v4964, %v4961
    %v4983 = vpack.c.b16 %v4965, %v4962
    %v4984 = vpack.c.b16 %v4969, %v4966
    %v4985 = vpack.c.b16 %v4970, %v4967
    %v4986 = vpack.c.b16 %v4971, %v4968
    %v4987 = vpack.c.b16 %v4975, %v4972
    %v4988 = vpack.c.b16 %v4976, %v4973
    %v4989 = vpack.c.b16 %v4977, %v4974
    %v5050 = vunpack.c.l.b16 %v4890
    %v5051 = vunpack.c.l.b16 %v4891
    %v5052 = vunpack.c.l.b16 %v4892
    %v5053 = vunpack.c.l.b16 %v4893
    %v5054 = vunpack.c.l.b16 %v4894
    %v5055 = vunpack.c.l.b16 %v4895
    %v5056 = vunpack.c.l.b16 %v4896
    %v5057 = vunpack.c.l.b16 %v4897
    %v5058 = vunpack.c.l.b16 %v4898
    %v5059 = vunpack.c.l.b16 %v4899
    %v5060 = vunpack.c.l.b16 %v4900
    %v5061 = vunpack.c.l.b16 %v4901
    %v5062 = vunpack.c.l.b16 %v4902
    %v5063 = vunpack.c.l.b16 %v4903
    %v5064 = vunpack.c.l.b16 %v4904
    %v5065 = vunpack.c.l.b16 %v4905
    %v5066 = vunpack.c.l.b16 %v4906
    %v5067 = vunpack.c.l.b16 %v4907
    %v5068 = vunpack.c.l.b16 %v4908
    %v5069 = vunpack.c.l.b16 %v4909
    %v5070 = vunpack.c.l.b16 %v4910
    %v5071 = vunpack.c.l.b16 %v4911
    %v5072 = vunpack.c.l.b16 %v4912
    %v5073 = vunpack.c.l.b16 %v4913
    %v5074 = vunpack.c.l.b16 %v4914
    %v5075 = vunpack.c.l.b16 %v4915
    %v5076 = vunpack.c.l.b16 %v4916
    %v5077 = vunpack.c.l.b16 %v4917
    %v5078 = vunpack.c.l.b16 %v4918
    %v5079 = vunpack.c.l.b16 %v4919
    %v5080 = vunpack.c.l.b16 %v4920
    %v5081 = vunpack.c.l.b16 %v4921
    %v5082 = vunpack.c.l.b16 %v4922
    %v5083 = vunpack.c.l.b16 %v4923
    %v5084 = vunpack.c.l.b16 %v4924
    %v5085 = vunpack.c.l.b16 %v4925
    %v5086 = vunpack.c.l.b16 %v4926
    %v5087 = vunpack.c.l.b16 %v4927
    %v5088 = vunpack.c.l.b16 %v4928
    %v5089 = vunpack.c.l.b16 %v4929
    %v5090 = vunpack.c.l.b16 %v4930
    %v5091 = vunpack.c.l.b16 %v4931
    %v5092 = vunpack.c.l.b16 %v4932
    %v5093 = vunpack.c.l.b16 %v4933
    %v5094 = vunpack.c.l.b16 %v4934
    %v5095 = vunpack.c.l.b16 %v4935
    %v5096 = vunpack.c.l.b16 %v4936
    %v5097 = vunpack.c.l.b16 %v4937
    %v5098 = vpack.c.b16 %v5051, %v5050
    %v5099 = vpack.c.b16 %v5053, %v5052
    %v5100 = vpack.c.b16 %v5055, %v5054
    %v5101 = vpack.c.b16 %v5057, %v5056
    %v5102 = vpack.c.b16 %v5059, %v5058
    %v5103 = vpack.c.b16 %v5061, %v5060
    %v5104 = vpack.c.b16 %v5063, %v5062
    %v5105 = vpack.c.b16 %v5065, %v5064
    %v5106 = vpack.c.b16 %v5067, %v5066
    %v5107 = vpack.c.b16 %v5069, %v5068
    %v5108 = vpack.c.b16 %v5071, %v5070
    %v5109 = vpack.c.b16 %v5073, %v5072
    %v5110 = vpack.c.b16 %v5075, %v5074
    %v5111 = vpack.c.b16 %v5077, %v5076
    %v5112 = vpack.c.b16 %v5079, %v5078
    %v5113 = vpack.c.b16 %v5081, %v5080
    %v5114 = vpack.c.b16 %v5083, %v5082
    %v5115 = vpack.c.b16 %v5085, %v5084
    %v5116 = vpack.c.b16 %v5087, %v5086
    %v5117 = vpack.c.b16 %v5089, %v5088
    %v5118 = vpack.c.b16 %v5091, %v5090
    %v5119 = vpack.c.b16 %v5093, %v5092
    %v5120 = vpack.c.b16 %v5095, %v5094
    %v5121 = vpack.c.b16 %v5097, %v5096
    %5146 = vmatprep.subr.bf16.mxu0 0
    %5147 = vmatpush1.bf16.msra.mxu0 %v5105
    %5148 = vmatprep.subr.bf16.mxu0 0
    %5149 = vmatpush1.bf16.msra.mxu0 %v5104
    %5150 = vmatprep.subr.bf16.mxu0 0
    %5151 = vmatpush1.bf16.msra.mxu0 %v5103
    %5152 = vmatprep.subr.bf16.mxu0 0
    %5153 = vmatpush1.bf16.msra.mxu0 %v5102
    %5154 = vmatprep.subr.bf16.mxu0 0
    %5155 = vmatpush1.bf16.msra.mxu0 %v5101
    %5156 = vmatprep.subr.bf16.mxu0 0
    %5157 = vmatpush1.bf16.msra.mxu0 %v5100
    %5158 = vmatprep.subr.bf16.mxu0 0
    %5159 = vmatpush1.bf16.msra.mxu0 %v5099
    %5160 = vmatprep.subr.bf16.mxu0 0
    %5161 = vmatpush1.bf16.msra.mxu0 %v5098
    %5162 = vmatprep.subr.bf16.mxu0 0
    %5163 = vmatpush2.bf16.msra.mxu0 %v5113
    %5164 = vmatprep.subr.bf16.mxu0 0
    %5165 = vmatpush2.bf16.msra.mxu0 %v5112
    %5166 = vmatprep.subr.bf16.mxu0 0
    %5167 = vmatpush2.bf16.msra.mxu0 %v5111
    %5168 = vmatprep.subr.bf16.mxu0 0
    %5169 = vmatpush2.bf16.msra.mxu0 %v5110
    %5170 = vmatprep.subr.bf16.mxu0 0
    %5171 = vmatpush2.bf16.msra.mxu0 %v5109
    %5172 = vmatprep.subr.bf16.mxu0 0
    %5173 = vmatpush2.bf16.msra.mxu0 %v5108
    %5174 = vmatprep.subr.bf16.mxu0 0
    %5175 = vmatpush2.bf16.msra.mxu0 %v5107
    %5176 = vmatprep.subr.bf16.mxu0 0
    %5177 = vmatpush2.bf16.msra.mxu0 %v5106
    %5178 = vmatprep.mubr.bf16.mxu0 %v4979
    %5179 = vmatmul.mubr.bf16.gmra.mxu0 %v4978
    %v5180 = vpop.f32.mrf.mxu0
    %v5181 = vadd.f32 0.0, %v5180
    %v5182 = vpop.f32.mrf.mxu0
    %v5183 = vpop.f32.mrf.mxu0
    %v5184 = vadd.f32 0.0, %v5183
    %v5185 = vpop.f32.mrf.mxu0
    %5186 = vmatprep.mubr.bf16.mxu0 %v4982
    %5187 = vmatmul.mubr.bf16.gmra.mxu0 %v4981
    %v5188 = vpop.f32.mrf.mxu0
    %v5189 = vadd.f32 0.0, %v5188
    %v5190 = vpop.f32.mrf.mxu0
    %v5191 = vpop.f32.mrf.mxu0
    %v5192 = vadd.f32 0.0, %v5191
    %v5193 = vpop.f32.mrf.mxu0
    %5194 = vmatprep.mubr.bf16.mxu0 %v4985
    %5195 = vmatmul.mubr.bf16.gmra.mxu0 %v4984
    %v5196 = vpop.f32.mrf.mxu0
    %v5197 = vadd.f32 0.0, %v5196
    %v5198 = vpop.f32.mrf.mxu0
    %v5199 = vpop.f32.mrf.mxu0
    %v5200 = vadd.f32 0.0, %v5199
    %v5201 = vpop.f32.mrf.mxu0
    %5202 = vmatprep.mubr.bf16.mxu0 %v4988
    %5203 = vmatmul.mubr.bf16.gmra.mxu0 %v4987
    %v5204 = vpop.f32.mrf.mxu0
    %v5205 = vadd.f32 0.0, %v5204
    %v5206 = vpop.f32.mrf.mxu0
    %v5207 = vpop.f32.mrf.mxu0
    %v5208 = vadd.f32 0.0, %v5207
    %v5209 = vpop.f32.mrf.mxu0
    %5210 = vdwg.mxu0
    %5211 = vmatprep.subr.bf16.mxu0 0
    %5212 = vmatpush1.bf16.msra.mxu0 %v5121
    %5213 = vmatprep.subr.bf16.mxu0 0
    %5214 = vmatpush1.bf16.msra.mxu0 %v5120
    %5215 = vmatprep.subr.bf16.mxu0 0
    %5216 = vmatpush1.bf16.msra.mxu0 %v5119
    %5217 = vmatprep.subr.bf16.mxu0 0
    %5218 = vmatpush1.bf16.msra.mxu0 %v5118
    %5219 = vmatprep.subr.bf16.mxu0 0
    %5220 = vmatpush1.bf16.msra.mxu0 %v5117
    %5221 = vmatprep.subr.bf16.mxu0 0
    %5222 = vmatpush1.bf16.msra.mxu0 %v5116
    %5223 = vmatprep.subr.bf16.mxu0 0
    %5224 = vmatpush1.bf16.msra.mxu0 %v5115
    %5225 = vmatprep.subr.bf16.mxu0 0
    %5226 = vmatpush1.bf16.msra.mxu0 %v5114
    %5227 = vmatprep.subr.bf16.mxu0 0
    %5228 = vmatpush2.bf16.msra.mxu0 0
    %5229 = vmatprep.subr.bf16.mxu0 0
    %5230 = vmatpush2.bf16.msra.mxu0 0
    %5231 = vmatprep.subr.bf16.mxu0 0
    %5232 = vmatpush2.bf16.msra.mxu0 0
    %5233 = vmatprep.subr.bf16.mxu0 0
    %5234 = vmatpush2.bf16.msra.mxu0 0
    %5235 = vmatprep.subr.bf16.mxu0 0
    %5236 = vmatpush2.bf16.msra.mxu0 0
    %5237 = vmatprep.subr.bf16.mxu0 0
    %5238 = vmatpush2.bf16.msra.mxu0 0
    %5239 = vmatprep.subr.bf16.mxu0 0
    %5240 = vmatpush2.bf16.msra.mxu0 0
    %5241 = vmatprep.subr.bf16.mxu0 0
    %5242 = vmatpush2.bf16.msra.mxu0 0
    %5243 = vmatprep.mubr.bf16.mxu0 0
    %5244 = vmatmul.mubr.bf16.gmra.mxu0 %v4980
    %v5245 = vpop.f32.mrf.mxu0
    %v5246 = vadd.f32 %v5181, %v5245
    %v5247 = vpop.f32.mrf.mxu0
    %v5248 = vpop.f32.mrf.mxu0
    %v5249 = vadd.f32 %v5184, %v5248
    %v5250 = vpop.f32.mrf.mxu0
    %5251 = vmatprep.mubr.bf16.mxu0 0
    %5252 = vmatmul.mubr.bf16.gmra.mxu0 %v4983
    %v5253 = vpop.f32.mrf.mxu0
    %v5254 = vadd.f32 %v5189, %v5253
    %v5255 = vpop.f32.mrf.mxu0
    %v5256 = vpop.f32.mrf.mxu0
    %v5257 = vadd.f32 %v5192, %v5256
    %v5258 = vpop.f32.mrf.mxu0
    %5259 = vmatprep.mubr.bf16.mxu0 0
    %5260 = vmatmul.mubr.bf16.gmra.mxu0 %v4986
    %v5261 = vpop.f32.mrf.mxu0
    %v5262 = vadd.f32 %v5197, %v5261
    %v5263 = vpop.f32.mrf.mxu0
    %v5264 = vpop.f32.mrf.mxu0
    %v5265 = vadd.f32 %v5200, %v5264
    %v5266 = vpop.f32.mrf.mxu0
    %5267 = vmatprep.mubr.bf16.mxu0 0
    %5268 = vmatmul.mubr.bf16.gmra.mxu0 %v4989
    %v5269 = vpop.f32.mrf.mxu0
    %v5270 = vadd.f32 %v5205, %v5269
    %v5271 = vpop.f32.mrf.mxu0
    %v5272 = vpop.f32.mrf.mxu0
    %v5273 = vadd.f32 %v5208, %v5272
    %v5274 = vpop.f32.mrf.mxu0
    %5275 = vdwg.mxu0
    %v5276 = vadd.f32 %v4843, %v5246
    %v5277 = vadd.f32 %v4846, %v5249
    %v5278 = vadd.f32 %v4851, %v5254
    %v5279 = vadd.f32 %v4854, %v5257
    %v5280 = vadd.f32 %v4859, %v5262
    %v5281 = vadd.f32 %v4862, %v5265
    %v5282 = vadd.f32 %v4867, %v5270
    %v5283 = vadd.f32 %v4870, %v5273
    %v5284 = vld [vmem:[%s2366] sm:$0xff]
    %v5285 = vld [vmem:[%s2366 + $0x8] sm:$0xf]
    %v5286 = vld [vmem:[%s2366 + $0xc] sm:$0xff]
    %v5287 = vld [vmem:[%s2366 + $0x14] sm:$0xf]
    %v5288 = vld [vmem:[%s2366 + $0x18] sm:$0xff]
    %v5289 = vld [vmem:[%s2366 + $0x20] sm:$0xf]
    %v5290 = vld [vmem:[%s2366 + $0x24] sm:$0xff]
    %v5291 = vld [vmem:[%s2366 + $0x2c] sm:$0xf]
    %v5292 = vld [vmem:[%s2366 + $0x30] sm:$0xff]
    %v5293 = vld [vmem:[%s2366 + $0x38] sm:$0xf]
    %v5294 = vld [vmem:[%s2366 + $0x3c] sm:$0xff]
    %v5295 = vld [vmem:[%s2366 + $0x44] sm:$0xf]
    %v5296 = vld [vmem:[%s2366 + $0x48] sm:$0xff]
    %v5297 = vld [vmem:[%s2366 + $0x50] sm:$0xf]
    %v5298 = vld [vmem:[%s2366 + $0x54] sm:$0xff]
    %v5299 = vld [vmem:[%s2366 + $0x5c] sm:$0xf]
    %v5300 = vld [vmem:[%s2383] sm:$0xff]
    %v5301 = vld [vmem:[%s2383 + $0x8] sm:$0xf]
    %v5302 = vld [vmem:[%s2383 + $0xc] sm:$0xff]
    %v5303 = vld [vmem:[%s2383 + $0x14] sm:$0xf]
    %v5304 = vld [vmem:[%s2383 + $0x18] sm:$0xff]
    %v5305 = vld [vmem:[%s2383 + $0x20] sm:$0xf]
    %v5306 = vld [vmem:[%s2383 + $0x24] sm:$0xff]
    %v5307 = vld [vmem:[%s2383 + $0x2c] sm:$0xf]
    %v5308 = vld [vmem:[%s2383 + $0x30] sm:$0xff]
    %v5309 = vld [vmem:[%s2383 + $0x38] sm:$0xf]
    %v5310 = vld [vmem:[%s2383 + $0x3c] sm:$0xff]
    %v5311 = vld [vmem:[%s2383 + $0x44] sm:$0xf]
    %v5312 = vld [vmem:[%s2383 + $0x48] sm:$0xff]
    %v5313 = vld [vmem:[%s2383 + $0x50] sm:$0xf]
    %v5314 = vld [vmem:[%s2383 + $0x54] sm:$0xff]
    %v5315 = vld [vmem:[%s2383 + $0x5c] sm:$0xf]
    %v5332 = vunpack.c.l.b16 %v5300
    %v5333 = vunpack.c.h.b16 %v5300
    %v5334 = vunpack.c.l.b16 %v5301
    %v5335 = vunpack.c.l.b16 %v5302
    %v5336 = vunpack.c.h.b16 %v5302
    %v5337 = vunpack.c.l.b16 %v5303
    %v5338 = vunpack.c.l.b16 %v5304
    %v5339 = vunpack.c.h.b16 %v5304
    %v5340 = vunpack.c.l.b16 %v5305
    %v5341 = vunpack.c.l.b16 %v5306
    %v5342 = vunpack.c.h.b16 %v5306
    %v5343 = vunpack.c.l.b16 %v5307
    %v5344 = vunpack.c.l.b16 %v5308
    %v5345 = vunpack.c.h.b16 %v5308
    %v5346 = vunpack.c.l.b16 %v5309
    %v5347 = vunpack.c.l.b16 %v5310
    %v5348 = vunpack.c.h.b16 %v5310
    %v5349 = vunpack.c.l.b16 %v5311
    %v5350 = vunpack.c.l.b16 %v5312
    %v5351 = vunpack.c.h.b16 %v5312
    %v5352 = vunpack.c.l.b16 %v5313
    %v5353 = vunpack.c.l.b16 %v5314
    %v5354 = vunpack.c.h.b16 %v5314
    %v5355 = vunpack.c.l.b16 %v5315
    %v5356 = vpack.c.b16 %v5335, %v5332
    %v5357 = vpack.c.b16 %v5336, %v5333
    %v5358 = vpack.c.b16 %v5337, %v5334
    %v5359 = vpack.c.b16 %v5341, %v5338
    %v5360 = vpack.c.b16 %v5342, %v5339
    %v5361 = vpack.c.b16 %v5343, %v5340
    %v5362 = vpack.c.b16 %v5347, %v5344
    %v5363 = vpack.c.b16 %v5348, %v5345
    %v5364 = vpack.c.b16 %v5349, %v5346
    %v5365 = vpack.c.b16 %v5353, %v5350
    %v5366 = vpack.c.b16 %v5354, %v5351
    %v5367 = vpack.c.b16 %v5355, %v5352
    %5380 = vmatprep.subr.bf16.mxu0 0
    %5381 = vmatpush1.bf16.msra.mxu0 %v4364
    %5382 = vmatprep.subr.bf16.mxu0 0
    %5383 = vmatpush1.bf16.msra.mxu0 %v4363
    %5384 = vmatprep.subr.bf16.mxu0 0
    %5385 = vmatpush1.bf16.msra.mxu0 %v4362
    %5386 = vmatprep.subr.bf16.mxu0 0
    %5387 = vmatpush1.bf16.msra.mxu0 %v4361
    %5388 = vmatprep.subr.bf16.mxu0 0
    %5389 = vmatpush1.bf16.msra.mxu0 %v4360
    %5390 = vmatprep.subr.bf16.mxu0 0
    %5391 = vmatpush1.bf16.msra.mxu0 %v4359
    %5392 = vmatprep.subr.bf16.mxu0 0
    %5393 = vmatpush1.bf16.msra.mxu0 %v4358
    %5394 = vmatprep.subr.bf16.mxu0 0
    %5395 = vmatpush1.bf16.msra.mxu0 %v4357
    %5396 = vmatprep.subr.bf16.mxu0 0
    %5397 = vmatpush2.bf16.msra.mxu0 %v4372
    %5398 = vmatprep.subr.bf16.mxu0 0
    %5399 = vmatpush2.bf16.msra.mxu0 %v4371
    %5400 = vmatprep.subr.bf16.mxu0 0
    %5401 = vmatpush2.bf16.msra.mxu0 %v4370
    %5402 = vmatprep.subr.bf16.mxu0 0
    %5403 = vmatpush2.bf16.msra.mxu0 %v4369
    %5404 = vmatprep.subr.bf16.mxu0 0
    %5405 = vmatpush2.bf16.msra.mxu0 %v4368
    %5406 = vmatprep.subr.bf16.mxu0 0
    %5407 = vmatpush2.bf16.msra.mxu0 %v4367
    %5408 = vmatprep.subr.bf16.mxu0 0
    %5409 = vmatpush2.bf16.msra.mxu0 %v4366
    %5410 = vmatprep.subr.bf16.mxu0 0
    %5411 = vmatpush2.bf16.msra.mxu0 %v4365
    %5412 = vmatprep.mubr.bf16.mxu0 %v5357
    %5413 = vmatmul.mubr.bf16.gmra.mxu0 %v5356
    %v5414 = vpop.f32.mrf.mxu0
    %v5415 = vadd.f32 0.0, %v5414
    %v5416 = vpop.f32.mrf.mxu0
    %v5417 = vpop.f32.mrf.mxu0
    %v5418 = vadd.f32 0.0, %v5417
    %v5419 = vpop.f32.mrf.mxu0
    %5420 = vmatprep.mubr.bf16.mxu0 %v5360
    %5421 = vmatmul.mubr.bf16.gmra.mxu0 %v5359
    %v5422 = vpop.f32.mrf.mxu0
    %v5423 = vadd.f32 0.0, %v5422
    %v5424 = vpop.f32.mrf.mxu0
    %v5425 = vpop.f32.mrf.mxu0
    %v5426 = vadd.f32 0.0, %v5425
    %v5427 = vpop.f32.mrf.mxu0
    %5428 = vmatprep.mubr.bf16.mxu0 %v5363
    %5429 = vmatmul.mubr.bf16.gmra.mxu0 %v5362
    %v5430 = vpop.f32.mrf.mxu0
    %v5431 = vadd.f32 0.0, %v5430
    %v5432 = vpop.f32.mrf.mxu0
    %v5433 = vpop.f32.mrf.mxu0
    %v5434 = vadd.f32 0.0, %v5433
    %v5435 = vpop.f32.mrf.mxu0
    %5436 = vmatprep.mubr.bf16.mxu0 %v5366
    %5437 = vmatmul.mubr.bf16.gmra.mxu0 %v5365
    %v5438 = vpop.f32.mrf.mxu0
    %v5439 = vadd.f32 0.0, %v5438
    %v5440 = vpop.f32.mrf.mxu0
    %v5441 = vpop.f32.mrf.mxu0
    %v5442 = vadd.f32 0.0, %v5441
    %v5443 = vpop.f32.mrf.mxu0
    %5444 = vdwg.mxu0
    %5445 = vmatprep.subr.bf16.mxu0 0
    %5446 = vmatpush1.bf16.msra.mxu0 %v4380
    %5447 = vmatprep.subr.bf16.mxu0 0
    %5448 = vmatpush1.bf16.msra.mxu0 %v4379
    %5449 = vmatprep.subr.bf16.mxu0 0
    %5450 = vmatpush1.bf16.msra.mxu0 %v4378
    %5451 = vmatprep.subr.bf16.mxu0 0
    %5452 = vmatpush1.bf16.msra.mxu0 %v4377
    %5453 = vmatprep.subr.bf16.mxu0 0
    %5454 = vmatpush1.bf16.msra.mxu0 %v4376
    %5455 = vmatprep.subr.bf16.mxu0 0
    %5456 = vmatpush1.bf16.msra.mxu0 %v4375
    %5457 = vmatprep.subr.bf16.mxu0 0
    %5458 = vmatpush1.bf16.msra.mxu0 %v4374
    %5459 = vmatprep.subr.bf16.mxu0 0
    %5460 = vmatpush1.bf16.msra.mxu0 %v4373
    %5461 = vmatprep.subr.bf16.mxu0 0
    %5462 = vmatpush2.bf16.msra.mxu0 0
    %5463 = vmatprep.subr.bf16.mxu0 0
    %5464 = vmatpush2.bf16.msra.mxu0 0
    %5465 = vmatprep.subr.bf16.mxu0 0
    %5466 = vmatpush2.bf16.msra.mxu0 0
    %5467 = vmatprep.subr.bf16.mxu0 0
    %5468 = vmatpush2.bf16.msra.mxu0 0
    %5469 = vmatprep.subr.bf16.mxu0 0
    %5470 = vmatpush2.bf16.msra.mxu0 0
    %5471 = vmatprep.subr.bf16.mxu0 0
    %5472 = vmatpush2.bf16.msra.mxu0 0
    %5473 = vmatprep.subr.bf16.mxu0 0
    %5474 = vmatpush2.bf16.msra.mxu0 0
    %5475 = vmatprep.subr.bf16.mxu0 0
    %5476 = vmatpush2.bf16.msra.mxu0 0
    %5477 = vmatprep.mubr.bf16.mxu0 0
    %5478 = vmatmul.mubr.bf16.gmra.mxu0 %v5358
    %v5479 = vpop.f32.mrf.mxu0
    %v5480 = vadd.f32 %v5415, %v5479
    %v5481 = vpop.f32.mrf.mxu0
    %v5482 = vpop.f32.mrf.mxu0
    %v5483 = vadd.f32 %v5418, %v5482
    %v5484 = vpop.f32.mrf.mxu0
    %5485 = vmatprep.mubr.bf16.mxu0 0
    %5486 = vmatmul.mubr.bf16.gmra.mxu0 %v5361
    %v5487 = vpop.f32.mrf.mxu0
    %v5488 = vadd.f32 %v5423, %v5487
    %v5489 = vpop.f32.mrf.mxu0
    %v5490 = vpop.f32.mrf.mxu0
    %v5491 = vadd.f32 %v5426, %v5490
    %v5492 = vpop.f32.mrf.mxu0
    %5493 = vmatprep.mubr.bf16.mxu0 0
    %5494 = vmatmul.mubr.bf16.gmra.mxu0 %v5364
    %v5495 = vpop.f32.mrf.mxu0
    %v5496 = vadd.f32 %v5431, %v5495
    %v5497 = vpop.f32.mrf.mxu0
    %v5498 = vpop.f32.mrf.mxu0
    %v5499 = vadd.f32 %v5434, %v5498
    %v5500 = vpop.f32.mrf.mxu0
    %5501 = vmatprep.mubr.bf16.mxu0 0
    %5502 = vmatmul.mubr.bf16.gmra.mxu0 %v5367
    %v5503 = vpop.f32.mrf.mxu0
    %v5504 = vadd.f32 %v5439, %v5503
    %v5505 = vpop.f32.mrf.mxu0
    %v5506 = vpop.f32.mrf.mxu0
    %v5507 = vadd.f32 %v5442, %v5506
    %v5508 = vpop.f32.mrf.mxu0
    %5509 = vdwg.mxu0
    %v5526 = vunpack.c.l.b16 %v5284
    %v5527 = vunpack.c.h.b16 %v5284
    %v5528 = vunpack.c.l.b16 %v5285
    %v5529 = vunpack.c.l.b16 %v5286
    %v5530 = vunpack.c.h.b16 %v5286
    %v5531 = vunpack.c.l.b16 %v5287
    %v5532 = vunpack.c.l.b16 %v5288
    %v5533 = vunpack.c.h.b16 %v5288
    %v5534 = vunpack.c.l.b16 %v5289
    %v5535 = vunpack.c.l.b16 %v5290
    %v5536 = vunpack.c.h.b16 %v5290
    %v5537 = vunpack.c.l.b16 %v5291
    %v5538 = vunpack.c.l.b16 %v5292
    %v5539 = vunpack.c.h.b16 %v5292
    %v5540 = vunpack.c.l.b16 %v5293
    %v5541 = vunpack.c.l.b16 %v5294
    %v5542 = vunpack.c.h.b16 %v5294
    %v5543 = vunpack.c.l.b16 %v5295
    %v5544 = vunpack.c.l.b16 %v5296
    %v5545 = vunpack.c.h.b16 %v5296
    %v5546 = vunpack.c.l.b16 %v5297
    %v5547 = vunpack.c.l.b16 %v5298
    %v5548 = vunpack.c.h.b16 %v5298
    %v5549 = vunpack.c.l.b16 %v5299
    %v5550 = vpack.c.b16 %v5529, %v5526
    %v5551 = vpack.c.b16 %v5530, %v5527
    %v5552 = vpack.c.b16 %v5531, %v5528
    %v5553 = vpack.c.b16 %v5535, %v5532
    %v5554 = vpack.c.b16 %v5536, %v5533
    %v5555 = vpack.c.b16 %v5537, %v5534
    %v5556 = vpack.c.b16 %v5541, %v5538
    %v5557 = vpack.c.b16 %v5542, %v5539
    %v5558 = vpack.c.b16 %v5543, %v5540
    %v5559 = vpack.c.b16 %v5547, %v5544
    %v5560 = vpack.c.b16 %v5548, %v5545
    %v5561 = vpack.c.b16 %v5549, %v5546
    %5574 = vmatprep.subr.bf16.mxu0 0
    %5575 = vmatpush1.bf16.msra.mxu0 %v4702
    %5576 = vmatprep.subr.bf16.mxu0 0
    %5577 = vmatpush1.bf16.msra.mxu0 %v4701
    %5578 = vmatprep.subr.bf16.mxu0 0
    %5579 = vmatpush1.bf16.msra.mxu0 %v4700
    %5580 = vmatprep.subr.bf16.mxu0 0
    %5581 = vmatpush1.bf16.msra.mxu0 %v4699
    %5582 = vmatprep.subr.bf16.mxu0 0
    %5583 = vmatpush1.bf16.msra.mxu0 %v4698
    %5584 = vmatprep.subr.bf16.mxu0 0
    %5585 = vmatpush1.bf16.msra.mxu0 %v4697
    %5586 = vmatprep.subr.bf16.mxu0 0
    %5587 = vmatpush1.bf16.msra.mxu0 %v4696
    %5588 = vmatprep.subr.bf16.mxu0 0
    %5589 = vmatpush1.bf16.msra.mxu0 %v4695
    %5590 = vmatprep.subr.bf16.mxu0 0
    %5591 = vmatpush2.bf16.msra.mxu0 %v4710
    %5592 = vmatprep.subr.bf16.mxu0 0
    %5593 = vmatpush2.bf16.msra.mxu0 %v4709
    %5594 = vmatprep.subr.bf16.mxu0 0
    %5595 = vmatpush2.bf16.msra.mxu0 %v4708
    %5596 = vmatprep.subr.bf16.mxu0 0
    %5597 = vmatpush2.bf16.msra.mxu0 %v4707
    %5598 = vmatprep.subr.bf16.mxu0 0
    %5599 = vmatpush2.bf16.msra.mxu0 %v4706
    %5600 = vmatprep.subr.bf16.mxu0 0
    %5601 = vmatpush2.bf16.msra.mxu0 %v4705
    %5602 = vmatprep.subr.bf16.mxu0 0
    %5603 = vmatpush2.bf16.msra.mxu0 %v4704
    %5604 = vmatprep.subr.bf16.mxu0 0
    %5605 = vmatpush2.bf16.msra.mxu0 %v4703
    %5606 = vmatprep.mubr.bf16.mxu0 %v5551
    %5607 = vmatmul.mubr.bf16.gmra.mxu0 %v5550
    %v5608 = vpop.f32.mrf.mxu0
    %v5609 = vadd.f32 %v5480, %v5608
    %v5610 = vpop.f32.mrf.mxu0
    %v5611 = vpop.f32.mrf.mxu0
    %v5612 = vadd.f32 %v5483, %v5611
    %v5613 = vpop.f32.mrf.mxu0
    %5614 = vmatprep.mubr.bf16.mxu0 %v5554
    %5615 = vmatmul.mubr.bf16.gmra.mxu0 %v5553
    %v5616 = vpop.f32.mrf.mxu0
    %v5617 = vadd.f32 %v5488, %v5616
    %v5618 = vpop.f32.mrf.mxu0
    %v5619 = vpop.f32.mrf.mxu0
    %v5620 = vadd.f32 %v5491, %v5619
    %v5621 = vpop.f32.mrf.mxu0
    %5622 = vmatprep.mubr.bf16.mxu0 %v5557
    %5623 = vmatmul.mubr.bf16.gmra.mxu0 %v5556
    %v5624 = vpop.f32.mrf.mxu0
    %v5625 = vadd.f32 %v5496, %v5624
    %v5626 = vpop.f32.mrf.mxu0
    %v5627 = vpop.f32.mrf.mxu0
    %v5628 = vadd.f32 %v5499, %v5627
    %v5629 = vpop.f32.mrf.mxu0
    %5630 = vmatprep.mubr.bf16.mxu0 %v5560
    %5631 = vmatmul.mubr.bf16.gmra.mxu0 %v5559
    %v5632 = vpop.f32.mrf.mxu0
    %v5633 = vadd.f32 %v5504, %v5632
    %v5634 = vpop.f32.mrf.mxu0
    %v5635 = vpop.f32.mrf.mxu0
    %v5636 = vadd.f32 %v5507, %v5635
    %v5637 = vpop.f32.mrf.mxu0
    %5638 = vdwg.mxu0
    %5639 = vmatprep.subr.bf16.mxu0 0
    %5640 = vmatpush1.bf16.msra.mxu0 %v4718
    %5641 = vmatprep.subr.bf16.mxu0 0
    %5642 = vmatpush1.bf16.msra.mxu0 %v4717
    %5643 = vmatprep.subr.bf16.mxu0 0
    %5644 = vmatpush1.bf16.msra.mxu0 %v4716
    %5645 = vmatprep.subr.bf16.mxu0 0
    %5646 = vmatpush1.bf16.msra.mxu0 %v4715
    %5647 = vmatprep.subr.bf16.mxu0 0
    %5648 = vmatpush1.bf16.msra.mxu0 %v4714
    %5649 = vmatprep.subr.bf16.mxu0 0
    %5650 = vmatpush1.bf16.msra.mxu0 %v4713
    %5651 = vmatprep.subr.bf16.mxu0 0
    %5652 = vmatpush1.bf16.msra.mxu0 %v4712
    %5653 = vmatprep.subr.bf16.mxu0 0
    %5654 = vmatpush1.bf16.msra.mxu0 %v4711
    %5655 = vmatprep.subr.bf16.mxu0 0
    %5656 = vmatpush2.bf16.msra.mxu0 0
    %5657 = vmatprep.subr.bf16.mxu0 0
    %5658 = vmatpush2.bf16.msra.mxu0 0
    %5659 = vmatprep.subr.bf16.mxu0 0
    %5660 = vmatpush2.bf16.msra.mxu0 0
    %5661 = vmatprep.subr.bf16.mxu0 0
    %5662 = vmatpush2.bf16.msra.mxu0 0
    %5663 = vmatprep.subr.bf16.mxu0 0
    %5664 = vmatpush2.bf16.msra.mxu0 0
    %5665 = vmatprep.subr.bf16.mxu0 0
    %5666 = vmatpush2.bf16.msra.mxu0 0
    %5667 = vmatprep.subr.bf16.mxu0 0
    %5668 = vmatpush2.bf16.msra.mxu0 0
    %5669 = vmatprep.subr.bf16.mxu0 0
    %5670 = vmatpush2.bf16.msra.mxu0 0
    %5671 = vmatprep.mubr.bf16.mxu0 0
    %5672 = vmatmul.mubr.bf16.gmra.mxu0 %v5552
    %v5673 = vpop.f32.mrf.mxu0
    %v5674 = vadd.f32 %v5609, %v5673
    %v5675 = vpop.f32.mrf.mxu0
    %v5676 = vpop.f32.mrf.mxu0
    %v5677 = vadd.f32 %v5612, %v5676
    %v5678 = vpop.f32.mrf.mxu0
    %5679 = vmatprep.mubr.bf16.mxu0 0
    %5680 = vmatmul.mubr.bf16.gmra.mxu0 %v5555
    %v5681 = vpop.f32.mrf.mxu0
    %v5682 = vadd.f32 %v5617, %v5681
    %v5683 = vpop.f32.mrf.mxu0
    %v5684 = vpop.f32.mrf.mxu0
    %v5685 = vadd.f32 %v5620, %v5684
    %v5686 = vpop.f32.mrf.mxu0
    %5687 = vmatprep.mubr.bf16.mxu0 0
    %5688 = vmatmul.mubr.bf16.gmra.mxu0 %v5558
    %v5689 = vpop.f32.mrf.mxu0
    %v5690 = vadd.f32 %v5625, %v5689
    %v5691 = vpop.f32.mrf.mxu0
    %v5692 = vpop.f32.mrf.mxu0
    %v5693 = vadd.f32 %v5628, %v5692
    %v5694 = vpop.f32.mrf.mxu0
    %5695 = vmatprep.mubr.bf16.mxu0 0
    %5696 = vmatmul.mubr.bf16.gmra.mxu0 %v5561
    %v5697 = vpop.f32.mrf.mxu0
    %v5698 = vadd.f32 %v5633, %v5697
    %v5699 = vpop.f32.mrf.mxu0
    %v5700 = vpop.f32.mrf.mxu0
    %v5701 = vadd.f32 %v5636, %v5700
    %v5702 = vpop.f32.mrf.mxu0
    %5703 = vdwg.mxu0
    %v5704 = vld [vmem:[%s2788] sm:$0xff]
    %v5705 = vld [vmem:[%s2788 + $0x8] sm:$0xf]
    %v5706 = vld [vmem:[%s2788 + $0xc] sm:$0xff]
    %v5707 = vld [vmem:[%s2788 + $0x14] sm:$0xf]
    %v5708 = vld [vmem:[%s2788 + $0x18] sm:$0xff]
    %v5709 = vld [vmem:[%s2788 + $0x20] sm:$0xf]
    %v5710 = vld [vmem:[%s2788 + $0x24] sm:$0xff]
    %v5711 = vld [vmem:[%s2788 + $0x2c] sm:$0xf]
    %v5712 = vld [vmem:[%s2788 + $0x30] sm:$0xff]
    %v5713 = vld [vmem:[%s2788 + $0x38] sm:$0xf]
    %v5714 = vld [vmem:[%s2788 + $0x3c] sm:$0xff]
    %v5715 = vld [vmem:[%s2788 + $0x44] sm:$0xf]
    %v5716 = vld [vmem:[%s2788 + $0x48] sm:$0xff]
    %v5717 = vld [vmem:[%s2788 + $0x50] sm:$0xf]
    %v5718 = vld [vmem:[%s2788 + $0x54] sm:$0xff]
    %v5719 = vld [vmem:[%s2788 + $0x5c] sm:$0xf]
    %v5736 = vunpack.c.l.b16 %v5704
    %v5737 = vunpack.c.h.b16 %v5704
    %v5738 = vunpack.c.l.b16 %v5705
    %v5739 = vunpack.c.l.b16 %v5706
    %v5740 = vunpack.c.h.b16 %v5706
    %v5741 = vunpack.c.l.b16 %v5707
    %v5742 = vunpack.c.l.b16 %v5708
    %v5743 = vunpack.c.h.b16 %v5708
    %v5744 = vunpack.c.l.b16 %v5709
    %v5745 = vunpack.c.l.b16 %v5710
    %v5746 = vunpack.c.h.b16 %v5710
    %v5747 = vunpack.c.l.b16 %v5711
    %v5748 = vunpack.c.l.b16 %v5712
    %v5749 = vunpack.c.h.b16 %v5712
    %v5750 = vunpack.c.l.b16 %v5713
    %v5751 = vunpack.c.l.b16 %v5714
    %v5752 = vunpack.c.h.b16 %v5714
    %v5753 = vunpack.c.l.b16 %v5715
    %v5754 = vunpack.c.l.b16 %v5716
    %v5755 = vunpack.c.h.b16 %v5716
    %v5756 = vunpack.c.l.b16 %v5717
    %v5757 = vunpack.c.l.b16 %v5718
    %v5758 = vunpack.c.h.b16 %v5718
    %v5759 = vunpack.c.l.b16 %v5719
    %v5760 = vpack.c.b16 %v5739, %v5736
    %v5761 = vpack.c.b16 %v5740, %v5737
    %v5762 = vpack.c.b16 %v5741, %v5738
    %v5763 = vpack.c.b16 %v5745, %v5742
    %v5764 = vpack.c.b16 %v5746, %v5743
    %v5765 = vpack.c.b16 %v5747, %v5744
    %v5766 = vpack.c.b16 %v5751, %v5748
    %v5767 = vpack.c.b16 %v5752, %v5749
    %v5768 = vpack.c.b16 %v5753, %v5750
    %v5769 = vpack.c.b16 %v5757, %v5754
    %v5770 = vpack.c.b16 %v5758, %v5755
    %v5771 = vpack.c.b16 %v5759, %v5756
    %5784 = vmatprep.subr.bf16.mxu0 0
    %5785 = vmatpush1.bf16.msra.mxu0 %v5105
    %5786 = vmatprep.subr.bf16.mxu0 0
    %5787 = vmatpush1.bf16.msra.mxu0 %v5104
    %5788 = vmatprep.subr.bf16.mxu0 0
    %5789 = vmatpush1.bf16.msra.mxu0 %v5103
    %5790 = vmatprep.subr.bf16.mxu0 0
    %5791 = vmatpush1.bf16.msra.mxu0 %v5102
    %5792 = vmatprep.subr.bf16.mxu0 0
    %5793 = vmatpush1.bf16.msra.mxu0 %v5101
    %5794 = vmatprep.subr.bf16.mxu0 0
    %5795 = vmatpush1.bf16.msra.mxu0 %v5100
    %5796 = vmatprep.subr.bf16.mxu0 0
    %5797 = vmatpush1.bf16.msra.mxu0 %v5099
    %5798 = vmatprep.subr.bf16.mxu0 0
    %5799 = vmatpush1.bf16.msra.mxu0 %v5098
    %5800 = vmatprep.subr.bf16.mxu0 0
    %5801 = vmatpush2.bf16.msra.mxu0 %v5113
    %5802 = vmatprep.subr.bf16.mxu0 0
    %5803 = vmatpush2.bf16.msra.mxu0 %v5112
    %5804 = vmatprep.subr.bf16.mxu0 0
    %5805 = vmatpush2.bf16.msra.mxu0 %v5111
    %5806 = vmatprep.subr.bf16.mxu0 0
    %5807 = vmatpush2.bf16.msra.mxu0 %v5110
    %5808 = vmatprep.subr.bf16.mxu0 0
    %5809 = vmatpush2.bf16.msra.mxu0 %v5109
    %5810 = vmatprep.subr.bf16.mxu0 0
    %5811 = vmatpush2.bf16.msra.mxu0 %v5108
    %5812 = vmatprep.subr.bf16.mxu0 0
    %5813 = vmatpush2.bf16.msra.mxu0 %v5107
    %5814 = vmatprep.subr.bf16.mxu0 0
    %5815 = vmatpush2.bf16.msra.mxu0 %v5106
    %5816 = vmatprep.mubr.bf16.mxu0 %v5761
    %5817 = vmatmul.mubr.bf16.gmra.mxu0 %v5760
    %v5818 = vpop.f32.mrf.mxu0
    %v5819 = vadd.f32 0.0, %v5818
    %v5820 = vpop.f32.mrf.mxu0
    %v5821 = vpop.f32.mrf.mxu0
    %v5822 = vadd.f32 0.0, %v5821
    %v5823 = vpop.f32.mrf.mxu0
    %5824 = vmatprep.mubr.bf16.mxu0 %v5764
    %5825 = vmatmul.mubr.bf16.gmra.mxu0 %v5763
    %v5826 = vpop.f32.mrf.mxu0
    %v5827 = vadd.f32 0.0, %v5826
    %v5828 = vpop.f32.mrf.mxu0
    %v5829 = vpop.f32.mrf.mxu0
    %v5830 = vadd.f32 0.0, %v5829
    %v5831 = vpop.f32.mrf.mxu0
    %5832 = vmatprep.mubr.bf16.mxu0 %v5767
    %5833 = vmatmul.mubr.bf16.gmra.mxu0 %v5766
    %v5834 = vpop.f32.mrf.mxu0
    %v5835 = vadd.f32 0.0, %v5834
    %v5836 = vpop.f32.mrf.mxu0
    %v5837 = vpop.f32.mrf.mxu0
    %v5838 = vadd.f32 0.0, %v5837
    %v5839 = vpop.f32.mrf.mxu0
    %5840 = vmatprep.mubr.bf16.mxu0 %v5770
    %5841 = vmatmul.mubr.bf16.gmra.mxu0 %v5769
    %v5842 = vpop.f32.mrf.mxu0
    %v5843 = vadd.f32 0.0, %v5842
    %v5844 = vpop.f32.mrf.mxu0
    %v5845 = vpop.f32.mrf.mxu0
    %v5846 = vadd.f32 0.0, %v5845
    %v5847 = vpop.f32.mrf.mxu0
    %5848 = vdwg.mxu0
    %5849 = vmatprep.subr.bf16.mxu0 0
    %5850 = vmatpush1.bf16.msra.mxu0 %v5121
    %5851 = vmatprep.subr.bf16.mxu0 0
    %5852 = vmatpush1.bf16.msra.mxu0 %v5120
    %5853 = vmatprep.subr.bf16.mxu0 0
    %5854 = vmatpush1.bf16.msra.mxu0 %v5119
    %5855 = vmatprep.subr.bf16.mxu0 0
    %5856 = vmatpush1.bf16.msra.mxu0 %v5118
    %5857 = vmatprep.subr.bf16.mxu0 0
    %5858 = vmatpush1.bf16.msra.mxu0 %v5117
    %5859 = vmatprep.subr.bf16.mxu0 0
    %5860 = vmatpush1.bf16.msra.mxu0 %v5116
    %5861 = vmatprep.subr.bf16.mxu0 0
    %5862 = vmatpush1.bf16.msra.mxu0 %v5115
    %5863 = vmatprep.subr.bf16.mxu0 0
    %5864 = vmatpush1.bf16.msra.mxu0 %v5114
    %5865 = vmatprep.subr.bf16.mxu0 0
    %5866 = vmatpush2.bf16.msra.mxu0 0
    %5867 = vmatprep.subr.bf16.mxu0 0
    %5868 = vmatpush2.bf16.msra.mxu0 0
    %5869 = vmatprep.subr.bf16.mxu0 0
    %5870 = vmatpush2.bf16.msra.mxu0 0
    %5871 = vmatprep.subr.bf16.mxu0 0
    %5872 = vmatpush2.bf16.msra.mxu0 0
    %5873 = vmatprep.subr.bf16.mxu0 0
    %5874 = vmatpush2.bf16.msra.mxu0 0
    %5875 = vmatprep.subr.bf16.mxu0 0
    %5876 = vmatpush2.bf16.msra.mxu0 0
    %5877 = vmatprep.subr.bf16.mxu0 0
    %5878 = vmatpush2.bf16.msra.mxu0 0
    %5879 = vmatprep.subr.bf16.mxu0 0
    %5880 = vmatpush2.bf16.msra.mxu0 0
    %5881 = vmatprep.mubr.bf16.mxu0 0
    %5882 = vmatmul.mubr.bf16.gmra.mxu0 %v5762
    %v5883 = vpop.f32.mrf.mxu0
    %v5884 = vadd.f32 %v5819, %v5883
    %v5885 = vpop.f32.mrf.mxu0
    %v5886 = vpop.f32.mrf.mxu0
    %v5887 = vadd.f32 %v5822, %v5886
    %v5888 = vpop.f32.mrf.mxu0
    %5889 = vmatprep.mubr.bf16.mxu0 0
    %5890 = vmatmul.mubr.bf16.gmra.mxu0 %v5765
    %v5891 = vpop.f32.mrf.mxu0
    %v5892 = vadd.f32 %v5827, %v5891
    %v5893 = vpop.f32.mrf.mxu0
    %v5894 = vpop.f32.mrf.mxu0
    %v5895 = vadd.f32 %v5830, %v5894
    %v5896 = vpop.f32.mrf.mxu0
    %5897 = vmatprep.mubr.bf16.mxu0 0
    %5898 = vmatmul.mubr.bf16.gmra.mxu0 %v5768
    %v5899 = vpop.f32.mrf.mxu0
    %v5900 = vadd.f32 %v5835, %v5899
    %v5901 = vpop.f32.mrf.mxu0
    %v5902 = vpop.f32.mrf.mxu0
    %v5903 = vadd.f32 %v5838, %v5902
    %v5904 = vpop.f32.mrf.mxu0
    %5905 = vmatprep.mubr.bf16.mxu0 0
    %5906 = vmatmul.mubr.bf16.gmra.mxu0 %v5771
    %v5907 = vpop.f32.mrf.mxu0
    %v5908 = vadd.f32 %v5843, %v5907
    %v5909 = vpop.f32.mrf.mxu0
    %v5910 = vpop.f32.mrf.mxu0
    %v5911 = vadd.f32 %v5846, %v5910
    %v5912 = vpop.f32.mrf.mxu0
    %5913 = vdwg.mxu0
    %v5914 = vadd.f32 %v5674, %v5884
    %v5915 = vadd.f32 %v5677, %v5887
    %v5916 = vadd.f32 %v5682, %v5892
    %v5917 = vadd.f32 %v5685, %v5895
    %v5918 = vadd.f32 %v5690, %v5900
    %v5919 = vadd.f32 %v5693, %v5903
    %v5920 = vadd.f32 %v5698, %v5908
    %v5921 = vadd.f32 %v5701, %v5911
    %v5922 = vadd.f32 %v5276, %v5277
    %v5923 = vadd.f32 %v5922, %v5278
    %v5924 = vadd.f32 %v5923, %v5279
    %v5925 = vadd.f32 %v5924, %v5280
    %v5926 = vadd.f32 %v5925, %v5281
    %v5927 = vadd.f32 %v5926, %v5282
    %v5928 = vadd.f32 %v5927, %v5283
    %v5929 = vadd.f32 %v5928, %v5914
    %v5930 = vadd.f32 %v5929, %v5915
    %v5931 = vadd.f32 %v5930, %v5916
    %v5932 = vadd.f32 %v5931, %v5917
    %v5933 = vadd.f32 %v5932, %v5918
    %v5934 = vadd.f32 %v5933, %v5919
    %v5935 = vadd.f32 %v5934, %v5920
    %v5936 = vadd.f32 %v5935, %v5921
    %v5937 = vrot.slane %v5936, 4
    %v5938 = vadd.f32 %v5936, %v5937
    %v5939 = vrot.slane %v5938, 2
    %v5940 = vadd.f32 %v5938, %v5939
    %v5941 = vrot.slane %v5940, 1
    %v5942 = vadd.f32 %v5940, %v5941
    %v5943 = vmul.f32 %v5942, 0.0078125
    %v5944 = vsub.f32 %v5276, %v5943
    %v5945 = vsub.f32 %v5277, %v5943
    %v5946 = vsub.f32 %v5278, %v5943
    %v5947 = vsub.f32 %v5279, %v5943
    %v5948 = vsub.f32 %v5280, %v5943
    %v5949 = vsub.f32 %v5281, %v5943
    %v5950 = vsub.f32 %v5282, %v5943
    %v5951 = vsub.f32 %v5283, %v5943
    %v5952 = vsub.f32 %v5914, %v5943
    %v5953 = vsub.f32 %v5915, %v5943
    %v5954 = vsub.f32 %v5916, %v5943
    %v5955 = vsub.f32 %v5917, %v5943
    %v5956 = vsub.f32 %v5918, %v5943
    %v5957 = vsub.f32 %v5919, %v5943
    %v5958 = vsub.f32 %v5920, %v5943
    %v5959 = vsub.f32 %v5921, %v5943
    %v5960 = vmul.f32 %v5944, %v5944
    %v5961 = vmul.f32 %v5945, %v5945
    %v5962 = vmul.f32 %v5946, %v5946
    %v5963 = vmul.f32 %v5947, %v5947
    %v5964 = vmul.f32 %v5948, %v5948
    %v5965 = vmul.f32 %v5949, %v5949
    %v5966 = vmul.f32 %v5950, %v5950
    %v5967 = vmul.f32 %v5951, %v5951
    %v5968 = vmul.f32 %v5952, %v5952
    %v5969 = vmul.f32 %v5953, %v5953
    %v5970 = vmul.f32 %v5954, %v5954
    %v5971 = vmul.f32 %v5955, %v5955
    %v5972 = vmul.f32 %v5956, %v5956
    %v5973 = vmul.f32 %v5957, %v5957
    %v5974 = vmul.f32 %v5958, %v5958
    %v5975 = vmul.f32 %v5959, %v5959
    %v5976 = vadd.f32 %v5960, %v5961
    %v5977 = vadd.f32 %v5976, %v5962
    %v5978 = vadd.f32 %v5977, %v5963
    %v5979 = vadd.f32 %v5978, %v5964
    %v5980 = vadd.f32 %v5979, %v5965
    %v5981 = vadd.f32 %v5980, %v5966
    %v5982 = vadd.f32 %v5981, %v5967
    %v5983 = vadd.f32 %v5982, %v5968
    %v5984 = vadd.f32 %v5983, %v5969
    %v5985 = vadd.f32 %v5984, %v5970
    %v5986 = vadd.f32 %v5985, %v5971
    %v5987 = vadd.f32 %v5986, %v5972
    %v5988 = vadd.f32 %v5987, %v5973
    %v5989 = vadd.f32 %v5988, %v5974
    %v5990 = vadd.f32 %v5989, %v5975
    %v5991 = vrot.slane %v5990, 4
    %v5992 = vadd.f32 %v5990, %v5991
    %v5993 = vrot.slane %v5992, 2
    %v5994 = vadd.f32 %v5992, %v5993
    %v5995 = vrot.slane %v5994, 1
    %v5996 = vadd.f32 %v5994, %v5995
    %v5997 = vmul.f32 %v5996, 0.0078125
    %v5998 = vld [vmem:[%s5] sm:$0x1]
    %v5999 = vadd.f32 %v5997, 1e-05
    %v6000 = vrsqrt.pop %v5999
    %v6001 = vmul.f32 %v5998, %v6000
    %v6003 = vlaneseq
    %v6004 = vshrl.u32 %v6003, 7
    %v6005 = vsub.s32 0, %v6004
    %v6006 = vrot.slane %v6001, %v6005
    %v6008 = vmul.f32 %v5944, %v6006
    %v6009 = vmul.f32 %v5945, %v6006
    %v6010 = vmul.f32 %v5946, %v6006
    %v6011 = vmul.f32 %v5947, %v6006
    %v6012 = vmul.f32 %v5948, %v6006
    %v6013 = vmul.f32 %v5949, %v6006
    %v6014 = vmul.f32 %v5950, %v6006
    %v6015 = vmul.f32 %v5951, %v6006
    %v6016 = vmul.f32 %v5952, %v6006
    %v6017 = vmul.f32 %v5953, %v6006
    %v6018 = vmul.f32 %v5954, %v6006
    %v6019 = vmul.f32 %v5955, %v6006
    %v6020 = vmul.f32 %v5956, %v6006
    %v6021 = vmul.f32 %v5957, %v6006
    %v6022 = vmul.f32 %v5958, %v6006
    %v6023 = vmul.f32 %v5959, %v6006
    %v6024 = vld [vmem:[%s6] sm:$0x1]
    %v6026 = vlaneseq
    %v6027 = vshrl.u32 %v6026, 7
    %v6028 = vsub.s32 0, %v6027
    %v6029 = vrot.slane %v6024, %v6028
    %v6031 = vadd.f32 %v6008, %v6029
    %v6032 = vadd.f32 %v6009, %v6029
    %v6033 = vadd.f32 %v6010, %v6029
    %v6034 = vadd.f32 %v6011, %v6029
    %v6035 = vadd.f32 %v6012, %v6029
    %v6036 = vadd.f32 %v6013, %v6029
    %v6037 = vadd.f32 %v6014, %v6029
    %v6038 = vadd.f32 %v6015, %v6029
    %v6039 = vadd.f32 %v6016, %v6029
    %v6040 = vadd.f32 %v6017, %v6029
    %v6041 = vadd.f32 %v6018, %v6029
    %v6042 = vadd.f32 %v6019, %v6029
    %v6043 = vadd.f32 %v6020, %v6029
    %v6044 = vadd.f32 %v6021, %v6029
    %v6045 = vadd.f32 %v6022, %v6029
    %v6046 = vadd.f32 %v6023, %v6029
    %v6047 = vld [vmem:[#allocation4] sm:$0xff]
    %v6048 = vld [vmem:[#allocation4 + $0x8] sm:$0xff]
    %v6049 = vld [vmem:[#allocation4 + $0x10] sm:$0xff]
    %v6050 = vld [vmem:[#allocation4 + $0x18] sm:$0xff]
    %v6051 = vld [vmem:[#allocation4 + $0x20] sm:$0xff]
    %v6052 = vld [vmem:[#allocation4 + $0x28] sm:$0xff]
    %v6053 = vld [vmem:[#allocation4 + $0x30] sm:$0xff]
    %v6054 = vld [vmem:[#allocation4 + $0x38] sm:$0xff]
    %v6055 = vld [vmem:[#allocation4 + $0x40] sm:$0xff]
    %v6056 = vld [vmem:[#allocation4 + $0x48] sm:$0xff]
    %v6057 = vld [vmem:[#allocation4 + $0x50] sm:$0xff]
    %v6058 = vld [vmem:[#allocation4 + $0x58] sm:$0xff]
    %v6059 = vld [vmem:[#allocation4 + $0x60] sm:$0xff]
    %v6060 = vld [vmem:[#allocation4 + $0x68] sm:$0xff]
    %v6061 = vld [vmem:[#allocation4 + $0x70] sm:$0xff]
    %v6062 = vld [vmem:[#allocation4 + $0x78] sm:$0xff]
    %v6063 = vadd.f32 %v6031, %v6047
    %v6064 = vadd.f32 %v6032, %v6048
    %v6065 = vadd.f32 %v6033, %v6049
    %v6066 = vadd.f32 %v6034, %v6050
    %v6067 = vadd.f32 %v6035, %v6051
    %v6068 = vadd.f32 %v6036, %v6052
    %v6069 = vadd.f32 %v6037, %v6053
    %v6070 = vadd.f32 %v6038, %v6054
    %v6071 = vadd.f32 %v6039, %v6055
    %v6072 = vadd.f32 %v6040, %v6056
    %v6073 = vadd.f32 %v6041, %v6057
    %v6074 = vadd.f32 %v6042, %v6058
    %v6075 = vadd.f32 %v6043, %v6059
    %v6076 = vadd.f32 %v6044, %v6060
    %v6077 = vadd.f32 %v6045, %v6061
    %v6078 = vadd.f32 %v6046, %v6062
    %v6079 = vmax.f32 %v6063, 0.0
    %v6080 = vmax.f32 %v6064, 0.0
    %v6081 = vmax.f32 %v6065, 0.0
    %v6082 = vmax.f32 %v6066, 0.0
    %v6083 = vmax.f32 %v6067, 0.0
    %v6084 = vmax.f32 %v6068, 0.0
    %v6085 = vmax.f32 %v6069, 0.0
    %v6086 = vmax.f32 %v6070, 0.0
    %v6087 = vmax.f32 %v6071, 0.0
    %v6088 = vmax.f32 %v6072, 0.0
    %v6089 = vmax.f32 %v6073, 0.0
    %v6090 = vmax.f32 %v6074, 0.0
    %v6091 = vmax.f32 %v6075, 0.0
    %v6092 = vmax.f32 %v6076, 0.0
    %v6093 = vmax.f32 %v6077, 0.0
    %v6094 = vmax.f32 %v6078, 0.0
    %6095 = vst [vmem:[#allocation10] sm:$0xff] %v6079
    %6096 = vst [vmem:[#allocation10 + $0x8] sm:$0xff] %v6080
    %6097 = vst [vmem:[#allocation10 + $0x10] sm:$0xff] %v6081
    %6098 = vst [vmem:[#allocation10 + $0x18] sm:$0xff] %v6082
    %6099 = vst [vmem:[#allocation10 + $0x20] sm:$0xff] %v6083
    %6100 = vst [vmem:[#allocation10 + $0x28] sm:$0xff] %v6084
    %6101 = vst [vmem:[#allocation10 + $0x30] sm:$0xff] %v6085
    %6102 = vst [vmem:[#allocation10 + $0x38] sm:$0xff] %v6086
    %6103 = vst [vmem:[#allocation10 + $0x40] sm:$0xff] %v6087
    %6104 = vst [vmem:[#allocation10 + $0x48] sm:$0xff] %v6088
    %6105 = vst [vmem:[#allocation10 + $0x50] sm:$0xff] %v6089
    %6106 = vst [vmem:[#allocation10 + $0x58] sm:$0xff] %v6090
    %6107 = vst [vmem:[#allocation10 + $0x60] sm:$0xff] %v6091
    %6108 = vst [vmem:[#allocation10 + $0x68] sm:$0xff] %v6092
    %6109 = vst [vmem:[#allocation10 + $0x70] sm:$0xff] %v6093
    %6110 = vst [vmem:[#allocation10 + $0x78] sm:$0xff] %v6094
    // Predicated region
    $region42: #{tpu_custom_call.1} parent=1 // pred_check
      _
    $region43: #{tpu_custom_call.1} parent=1 // pred_check_branch
      %6112 = sbr.rel (0) target = $region45
    $region44: #{tpu_custom_call.1} parent=1 // pred_region
      %s6114 = ssub.s32 2048, 2048
      %6115 = vsyncadd [#allocation6], %s6114
      %s6116 = sshll.u32 [#allocation10], 4
      %s6117 = int_to_ptr.vmem [resolvable:$true] %s6116
      %6122 = dma.vmem_to_hbm [thread:$0]  %s6117, 2048, %s7, [#allocation6], 128, 128, 8
    $region45: #{tpu_custom_call.1} parent=1 // pred_fallthru
      _
    // Predicated region
    $region46: #{tpu_custom_call.1} parent=1 // pred_check
      _
    $region47: #{tpu_custom_call.1} parent=1 // pred_check_branch
      %6124 = sbr.rel (0) target = $region49
    $region48: #{tpu_custom_call.1} parent=1 // pred_region
      %6125 = dma.done [#allocation6], 2048
    $region49: #{tpu_custom_call.1} parent=1 // pred_fallthru
      _
    %6126 = vsyncpa [#allocation5], 1
    %6127 = vsyncpa [#allocation8], 1
    %6128 = vsyncpa [#allocation6], 1

</llo_original>
